<compile_context>
chip_gen: v7x
topology: tpu7x:2x2x1
jax: 0.10.0
libtpu: 0.0.40
codegen_flags: <defaults>
</compile_context>

<pallas_src>
import functools

import jax
import jax.numpy as jnp
from jax.experimental import pallas as pl
from jax.experimental.pallas import tpu as pltpu


# ------------------------------ layout helpers ------------------------------

def _round_up(x, m):
    return ((x + m - 1) // m) * m


def _layout(H, W):
    """Padded-flat layout constants.

    Images are zero-padded to (H+3, W+2) (1 top / 2 bottom / 1 left / 1 right)
    and flattened row-major (Npi lanes per image).  Conv outputs use a
    "top-left anchored" layout of length L = H*(W+2): output pixel (y, x)
    lives at q = y*(W+2) + x and tap (dy, dx) reads padded index
    q + dy*(W+2) + dx.  Columns x in {W, W+1} of each output row are
    don't-care and are zeroed by the kernels.
    """
    Wp = W + 2
    Npi = (H + 3) * Wp
    L = H * Wp
    offs = tuple(dy * Wp + dx for dy in range(3) for dx in range(3))
    return Wp, Npi, L, offs


def _masks(H, W):
    """interior: 1 at real-pixel positions of the padded layout; valid: 1 at
    real-pixel columns of the output layout."""
    Wp = W + 2
    rows = jnp.arange(H + 3)
    cols = jnp.arange(Wp)
    interior = (((rows >= 1) & (rows <= H))[:, None]
                & ((cols >= 1) & (cols <= W))[None, :])
    interior = interior.reshape(1, (H + 3) * Wp).astype(jnp.float32)
    valid = jnp.tile((cols < W).astype(jnp.float32), H).reshape(1, H * Wp)
    return interior, valid


def pad_nchw(x):
    """NCHW image -> padded-flat (B, C, Npi) (pure reshape after a 2-D pad)."""
    B, C, H, W = x.shape
    xp = jnp.pad(x, ((0, 0), (0, 0), (1, 2), (1, 1)))
    return xp.reshape(B, C, (H + 3) * (W + 2))


def pad_layout(t, H, W):
    """Zeroed conv-output layout (B, C, H*Wp) -> padded-flat (B, C, Npi).

    Because the kernels zero the don't-care columns, re-padding a conv output
    for the next conv is a single cheap 1-D pad (no NCHW round trip)."""
    Wp = W + 2
    return jnp.pad(t, ((0, 0), (0, 0), (Wp + 1, 2 * Wp - 1)))


def layout_to_nchw(t, H, W):
    B, C, _ = t.shape
    return t.reshape(B, C, H, W + 2)[..., :W]


def _flatten_conv_w(w, cin_pad):
    """(9, Cout, Cin) conv weights -> (Cout, 9*cin_pad) matching the in-kernel
    tap-stacked operand (tap-major, channel-minor, zero-padded channels)."""
    k, co, ci = w.shape
    wpad = jnp.pad(w, ((0, 0), (0, 0), (0, cin_pad - ci)))
    return jnp.transpose(wpad, (1, 0, 2)).reshape(co, k * cin_pad)


# ------------------------------ Pallas kernels -------------------------------

def _encoder_kernel(x_ref, const_ref, interior_ref, valid_ref, w_ref, b_ref,
                    fcw_ref, fcb_ref, content_ref, style_ref, *,
                    n_content, offs, out_len, inv_hw):
    """Fused content + style encoder for one image.

    x_ref:        (1, C, Npi) padded image channels (f32)
    const_ref:    (1, Cin_pad - C, 1) per-image constant-channel values
    interior_ref: (1, Npi), valid_ref: (1, L)
    w_ref:        (Cc+Cs, 9*Cin_pad) bf16 combined conv weights
    b_ref:        (Cc+Cs, 1), fcw_ref: (nz, Cs), fcb_ref: (nz, 1)
    content_ref:  (1, Cc, L), style_ref: (1, nz, 1)
    """
    # Spatially-constant (label) channels built in VMEM: value * interior.
    const_map = const_ref[0] * interior_ref[...]
    p_full = jnp.concatenate([x_ref[0], const_map], axis=0)      # (Cin_pad, Npi)
    # One fused K = 9*Cin_pad bf16 matmul instead of 9 tiny per-tap matmuls.
    taps = jnp.concatenate([p_full[:, o:o + out_len] for o in offs], axis=0)
    acc = jnp.dot(w_ref[...], taps.astype(jnp.bfloat16),
                  preferred_element_type=jnp.float32)            # (Cc+Cs, L) f32
    feat = jnp.maximum(acc + b_ref[...], 0.0) * valid_ref[...]   # ReLU + zero pads
    content_ref[0] = feat[:n_content]
    # Style head: FC projection on the lane-dense map (f32, tiny), then the
    # global-average-pool is a lane reduction on the otherwise-idle XLU.
    proj = jnp.dot(fcw_ref[...], feat[n_content:],
                   preferred_element_type=jnp.float32)           # (nz, L)
    style_ref[0] = jnp.sum(proj, axis=1, keepdims=True) * inv_hw + fcb_ref[...]


def _decoder_kernel(content_ref, const_ref, interior_ref, valid_ref, w_ref,
                    b_ref, o_ref, *, offs, out_len):
    """Decoder conv3x3 + tanh for one image.

    content_ref: (1, Cc, Npi) padded content map (f32)
    const_ref:   (1, Cin_pad - Cc, 1) per-image [style, label, 0...] values
    w_ref:       (img_ch, 9*Cin_pad) bf16, b_ref: (img_ch, 1)
    o_ref:       (1, img_ch, L)
    """
    const_map = const_ref[0] * interior_ref[...]
    p_full = jnp.concatenate([content_ref[0], const_map], axis=0)
    taps = jnp.concatenate([p_full[:, o:o + out_len] for o in offs], axis=0)
    acc = jnp.dot(w_ref[...], taps.astype(jnp.bfloat16),
                  preferred_element_type=jnp.float32) + b_ref[...]
    o_ref[0] = jnp.tanh(acc) * valid_ref[...]                    # zero pad cols


# -------------------------------- wrappers -----------------------------------

def encode(params, x_pad, labels, *, H, W):
    """Fused content+style encoder: one launch, one matmul per image.

    x_pad: (B', C, Npi) padded-flat images; labels: (B', c_dim).
    Returns (content_layout (B', Cc, H*Wp), style (B', nz))."""
    pc, ps = params["enc_content"], params["enc_style"]
    Bp, C, Npi = x_pad.shape
    c_dim = labels.shape[1]
    Cc = pc["w"].shape[1]
    Cs = ps["w"].shape[1]
    nz = ps["fc_b"].shape[0]
    Wp, Npi_, L, offs = _layout(H, W)
    assert Npi == Npi_
    cin = C + c_dim
    cin_pad = _round_up(cin, 8)        # 8-sublane-aligned tap stacking

    # Combined weights: rows [content ; style], Cin order [image, label, pad].
    wc = jnp.pad(pc["w"], ((0, 0), (0, 0), (0, cin_pad - C)))
    ws = jnp.pad(ps["w"], ((0, 0), (0, 0), (0, cin_pad - cin)))
    w_flat = _flatten_conv_w(jnp.concatenate([wc, ws], axis=1),
                             cin_pad).astype(jnp.bfloat16)
    b_comb = jnp.concatenate([pc["b"], ps["b"]]).reshape(Cc + Cs, 1)
    # Per-image constant-channel values: [one-hot label, zero pad channels].
    const = jnp.pad(labels, ((0, 0), (0, cin_pad - cin)))[:, :, None]
    interior, valid = _masks(H, W)
    fcw = ps["fc_w"]
    fcb = ps["fc_b"].reshape(nz, 1)

    content, style = pl.pallas_call(
        functools.partial(_encoder_kernel, n_content=Cc, offs=offs,
                          out_len=L, inv_hw=1.0 / float(H * W)),
        out_shape=(jax.ShapeDtypeStruct((Bp, Cc, L), jnp.float32),
                   jax.ShapeDtypeStruct((Bp, nz, 1), jnp.float32)),
        grid=(Bp,),
        in_specs=[
            pl.BlockSpec((1, C, Npi), lambda i: (i, 0, 0)),
            pl.BlockSpec((1, cin_pad - C, 1), lambda i: (i, 0, 0)),
            pl.BlockSpec((1, Npi), lambda i: (0, 0)),
            pl.BlockSpec((1, L), lambda i: (0, 0)),
            pl.BlockSpec((Cc + Cs, 9 * cin_pad), lambda i: (0, 0)),
            pl.BlockSpec((Cc + Cs, 1), lambda i: (0, 0)),
            pl.BlockSpec((nz, Cs), lambda i: (0, 0)),
            pl.BlockSpec((nz, 1), lambda i: (0, 0)),
        ],
        out_specs=(pl.BlockSpec((1, Cc, L), lambda i: (i, 0, 0)),
                   pl.BlockSpec((1, nz, 1), lambda i: (i, 0, 0))),
        compiler_params=pltpu.CompilerParams(
            dimension_semantics=("parallel",)),
    )(x_pad, const, interior, valid, w_flat, b_comb, fcw, fcb)
    return content, style[:, :, 0]


def decode(pd, content_layout, style, labels, *, H, W):
    """Decoder: content map (zeroed layout) + per-image style/label vectors."""
    Bp, Cc, L0 = content_layout.shape
    nz = style.shape[1]
    c_dim = labels.shape[1]
    img_ch = pd["w"].shape[1]
    Wp, Npi, L, offs = _layout(H, W)
    assert L0 == L
    cin = Cc + nz + c_dim
    cin_pad = _round_up(cin, 8)

    content_pad = pad_layout(content_layout, H, W)
    # Constant channels passed as small vectors; broadcast happens in VMEM.
    const = jnp.pad(jnp.concatenate([style, labels], axis=1),
                    ((0, 0), (0, cin_pad - cin)))[:, :, None]
    w_flat = _flatten_conv_w(pd["w"], cin_pad).astype(jnp.bfloat16)
    b = pd["b"].reshape(img_ch, 1)
    interior, valid = _masks(H, W)

    return pl.pallas_call(
        functools.partial(_decoder_kernel, offs=offs, out_len=L),
        out_shape=jax.ShapeDtypeStruct((Bp, img_ch, L), jnp.float32),
        grid=(Bp,),
        in_specs=[
            pl.BlockSpec((1, Cc, Npi), lambda i: (i, 0, 0)),
            pl.BlockSpec((1, cin_pad - Cc, 1), lambda i: (i, 0, 0)),
            pl.BlockSpec((1, Npi), lambda i: (0, 0)),
            pl.BlockSpec((1, L), lambda i: (0, 0)),
            pl.BlockSpec((img_ch, 9 * cin_pad), lambda i: (0, 0)),
            pl.BlockSpec((img_ch, 1), lambda i: (0, 0)),
        ],
        out_specs=pl.BlockSpec((1, img_ch, L), lambda i: (i, 0, 0)),
        compiler_params=pltpu.CompilerParams(
            dimension_semantics=("parallel",)),
    )(content_pad, const, interior, valid, w_flat, b)


# ------------------------ synthetic SoloGAN generator ------------------------

def init_params(key, img_ch=3, c_dim=3, content_ch=8, style_ch=8, nz=8):
    keys = jax.random.split(key, 4)

    def w(k, shape, scale=0.05):
        return scale * jax.random.normal(k, shape, dtype=jnp.float32)

    return {
        "enc_content": {
            "w": w(keys[0], (9, content_ch, img_ch)),      # (tap, Cout, Cin)
            "b": jnp.zeros((content_ch,), jnp.float32),
        },
        "enc_style": {
            "w": w(keys[1], (9, style_ch, img_ch + c_dim)),
            "b": jnp.zeros((style_ch,), jnp.float32),
            "fc_w": w(keys[2], (nz, style_ch)),
            "fc_b": jnp.zeros((nz,), jnp.float32),
        },
        "dec": {
            "w": w(keys[3], (9, img_ch, content_ch + nz + c_dim)),
            "b": jnp.zeros((img_ch,), jnp.float32),
        },
    }


def solo_gan_forward(params, input_A, input_B, label_A, label_B, z_key):
    """Mirrors SoloGAN.forward(): encodes, random style, 3 decodes, display."""
    B, C, H, W = input_A.shape
    nz = params["enc_style"]["fc_b"].shape[0]

    # ---- encode A and B: one fused content+style launch ----
    x_ab = pad_nchw(jnp.concatenate([input_A, input_B], axis=0))   # (2B, C, Npi)
    lbl_ab = jnp.concatenate([label_A, label_B], axis=0)
    content_ab, style_ab = encode(params, x_ab, lbl_ab, H=H, W=W)
    z_content_a, z_content_b = content_ab[:B], content_ab[B:]
    z_style_a, z_style_b = style_ab[:B], style_ab[B:]

    z_random = jax.random.normal(z_key, (B, nz), dtype=jnp.float32)

    # ---- the two independent decodes share one launch (same weights) ----
    dec_out = decode(params["dec"],
                     jnp.concatenate([z_content_a, z_content_a], axis=0),
                     jnp.concatenate([z_random, z_style_a], axis=0),
                     jnp.concatenate([label_B, label_A], axis=0), H=H, W=W)
    fake_B_random, fake_A_recon = dec_out[:B], dec_out[B:]

    # ---- cycle branch (re-encodes fake_B_random straight from its layout) ----
    fb_pad = pad_layout(fake_B_random, H, W)
    z_content_a_prime, z_style_prime = encode(params, fb_pad, label_B, H=H, W=W)
    fake_A_cyc_recon = decode(params["dec"], z_content_a_prime, z_style_a,
                              label_A, H=H, W=W)

    img = lambda t: layout_to_nchw(t, H, W)
    fake_B_random_i = img(fake_B_random)
    fake_A_recon_i = img(fake_A_recon)
    fake_A_cyc_i = img(fake_A_cyc_recon)
    image_display = jnp.concatenate(
        [input_A, input_B, fake_A_recon_i, fake_A_cyc_i, fake_B_random_i],
        axis=0)
    return {
        "z_content_a": img(z_content_a), "z_style_a": z_style_a,
        "z_content_b": img(z_content_b), "z_style_b": z_style_b,
        "z_random": z_random,
        "fake_B_random": fake_B_random_i,
        "z_content_a_prime": img(z_content_a_prime),
        "z_style_prime": z_style_prime,
        "fake_A_cyc_recon": fake_A_cyc_i,
        "fake_A_recon": fake_A_recon_i,
        "image_display": image_display,
    }


# ---------------------- pure-JAX reference (for checking) --------------------

def _conv3x3_ref(x_nchw, w, b, activation):
    cout, cin = w.shape[1], w.shape[2]
    w_oihw = jnp.transpose(w.reshape(3, 3, cout, cin), (2, 3, 0, 1))
    y = jax.lax.conv_general_dilated(
        x_nchw, w_oihw, window_strides=(1, 1), padding="SAME",
        dimension_numbers=("NCHW", "OIHW", "NCHW"))
    y = y + b[None, :, None, None]
    return jnp.maximum(y, 0.0) if activation == "relu" else jnp.tanh(y)


def _forward_reference(params, input_A, input_B, label_A, label_B, z_random):
    pc, ps, pd = params["enc_content"], params["enc_style"], params["dec"]

    def enc_c(x):
        return _conv3x3_ref(x, pc["w"], pc["b"], "relu")

    def enc_s(x, lbl):
        B, _, H, W = x.shape
        lm = jnp.broadcast_to(lbl[:, :, None, None], (B, lbl.shape[1], H, W))
        h = _conv3x3_ref(jnp.concatenate([x, lm], axis=1),
                         ps["w"], ps["b"], "relu")
        return jnp.mean(h, axis=(2, 3)) @ ps["fc_w"].T + ps["fc_b"]

    def dec(c, s, lbl):
        B, _, H, W = c.shape
        sm = jnp.broadcast_to(s[:, :, None, None], (B, s.shape[1], H, W))
        lm = jnp.broadcast_to(lbl[:, :, None, None], (B, lbl.shape[1], H, W))
        return _conv3x3_ref(jnp.concatenate([c, sm, lm], axis=1),
                            pd["w"], pd["b"], "tanh")

    zca, zsa = enc_c(input_A), enc_s(input_A, label_A)
    zcb, zsb = enc_c(input_B), enc_s(input_B, label_B)
    f_br = dec(zca, z_random, label_B)
    zcap = enc_c(f_br)
    zsp = enc_s(f_br, label_B)
    f_acyc = dec(zcap, zsa, label_A)
    f_arec = dec(zca, zsa, label_A)
    return {"z_content_a": zca, "z_style_a": zsa, "z_content_b": zcb,
            "z_style_b": zsb, "fake_B_random": f_br,
            "z_content_a_prime": zcap, "z_style_prime": zsp,
            "fake_A_cyc_recon": f_acyc, "fake_A_recon": f_arec}


# ---------------------------------- main --------------------------------------

if __name__ == "__main__":
    key = jax.random.PRNGKey(0)
    k_params, k_a, k_b, k_z = jax.random.split(key, 4)

    B, C, H, W = 2, 3, 16, 16
    c_dim, nz, content_ch, style_ch = 3, 8, 8, 8

    params = init_params(k_params, img_ch=C, c_dim=c_dim,
                         content_ch=content_ch, style_ch=style_ch, nz=nz)

    input_A = jax.random.normal(k_a, (B, C, H, W), dtype=jnp.float32)
    input_B = jax.random.normal(k_b, (B, C, H, W), dtype=jnp.float32)
    label_A = jax.nn.one_hot(jnp.array([0, 1]), c_dim, dtype=jnp.float32)  # sl_onehot
    label_B = jax.nn.one_hot(jnp.array([2, 0]), c_dim, dtype=jnp.float32)  # tl_onehot

    fwd = jax.jit(solo_gan_forward)
    out = fwd(params, input_A, input_B, label_A, label_B, k_z)
    out = jax.tree_util.tree_map(jax.block_until_ready, out)

    assert out["z_content_a"].shape == (B, content_ch, H, W)
    assert out["z_style_a"].shape == (B, nz)
    assert out["fake_B_random"].shape == (B, C, H, W)
    assert out["fake_A_recon"].shape == (B, C, H, W)
    assert out["fake_A_cyc_recon"].shape == (B, C, H, W)
    assert out["image_display"].shape == (5 * B, C, H, W)
    assert all(jnp.isfinite(v).all() for v in jax.tree_util.tree_leaves(out))

    # Numerical check against a pure-JAX lax.conv reference.  Tolerance is
    # loosened vs. the old all-f32 path because the Pallas matmuls now use
    # bf16 operands (f32 accumulation), per the performance review.
    ref = _forward_reference(params, input_A, input_B, label_A, label_B,
                             out["z_random"])
    for name, r in ref.items():
        got = out[name]
        assert got.shape == r.shape, name
        err = float(jnp.max(jnp.abs(got - r)))
        assert jnp.allclose(got, r, rtol=3e-2, atol=3e-2), (name, err)

    print("KERNEL_OK")
</pallas_src>

<mosaic_0001>
module attributes {stable_mosaic.version = 11 : i64} {
  func.func @_encoder_kernel(%arg0: i32, %arg1: memref<1x3x342xf32, #tpu.memory_space<vmem>>, %arg2: memref<1x5x1xf32, #tpu.memory_space<vmem>>, %arg3: memref<1x342xf32, #tpu.memory_space<vmem>>, %arg4: memref<1x288xf32, #tpu.memory_space<vmem>>, %arg5: memref<16x72xbf16, #tpu.memory_space<vmem>>, %arg6: memref<16x1xf32, #tpu.memory_space<vmem>>, %arg7: memref<8x8xf32, #tpu.memory_space<vmem>>, %arg8: memref<8x1xf32, #tpu.memory_space<vmem>>, %arg9: memref<1x8x288xf32, #tpu.memory_space<vmem>>, %arg10: memref<1x8x1xf32, #tpu.memory_space<vmem>>) attributes {dimension_semantics = [#tpu.dimension_semantics<parallel>], iteration_bounds = array<i64: 4>, scalar_prefetch = 0 : i64, scratch_operands = 0 : i64, tpu.core_type = #tpu.core_type<tc>, window_params = [{transform_indices = @transform_0, window_bounds = array<i64: 1, 3, 342>}, {transform_indices = @transform_1, window_bounds = array<i64: 1, 5, 1>}, {pipeline_mode = #tpu.pipeline_mode<synchronous>, transform_indices = @transform_2, window_bounds = array<i64: 1, 342>}, {pipeline_mode = #tpu.pipeline_mode<synchronous>, transform_indices = @transform_3, window_bounds = array<i64: 1, 288>}, {pipeline_mode = #tpu.pipeline_mode<synchronous>, transform_indices = @transform_4, window_bounds = array<i64: 16, 72>}, {pipeline_mode = #tpu.pipeline_mode<synchronous>, transform_indices = @transform_5, window_bounds = array<i64: 16, 1>}, {pipeline_mode = #tpu.pipeline_mode<synchronous>, transform_indices = @transform_6, window_bounds = array<i64: 8, 8>}, {pipeline_mode = #tpu.pipeline_mode<synchronous>, transform_indices = @transform_7, window_bounds = array<i64: 8, 1>}, {transform_indices = @transform_8, window_bounds = array<i64: 1, 8, 288>}, {transform_indices = @transform_9, window_bounds = array<i64: 1, 8, 1>}]} {
    %c0 = arith.constant 0 : index
    %c0_0 = arith.constant 0 : index
    %c0_1 = arith.constant 0 : index
    %0 = vector.load %arg2[%c0, %c0_0, %c0_1] : memref<1x5x1xf32, #tpu.memory_space<vmem>>, vector<1x5x1xf32>
    %1 = vector.shape_cast %0 : vector<1x5x1xf32> to vector<5x1xf32>
    %c0_2 = arith.constant 0 : index
    %c0_3 = arith.constant 0 : index
    %2 = vector.load %arg3[%c0_2, %c0_3] : memref<1x342xf32, #tpu.memory_space<vmem>>, vector<1x342xf32>
    %3 = vector.broadcast %1 : vector<5x1xf32> to vector<5x342xf32>
    %4 = vector.broadcast %2 : vector<1x342xf32> to vector<5x342xf32>
    %5 = arith.mulf %3, %4 : vector<5x342xf32>
    %c0_4 = arith.constant 0 : index
    %c0_5 = arith.constant 0 : index
    %c0_6 = arith.constant 0 : index
    %6 = vector.load %arg1[%c0_4, %c0_5, %c0_6] : memref<1x3x342xf32, #tpu.memory_space<vmem>>, vector<1x3x342xf32>
    %7 = vector.shape_cast %6 : vector<1x3x342xf32> to vector<3x342xf32>
    %8 = tpu.concatenate %7, %5 in 0 : vector<3x342xf32>, vector<5x342xf32> -> vector<8x342xf32>
    %9 = vector.extract_strided_slice %8 {offsets = [0, 0], sizes = [8, 288], strides = [1, 1]} : vector<8x342xf32> to vector<8x288xf32>
    %10 = vector.extract_strided_slice %8 {offsets = [0, 1], sizes = [8, 288], strides = [1, 1]} : vector<8x342xf32> to vector<8x288xf32>
    %11 = vector.extract_strided_slice %8 {offsets = [0, 2], sizes = [8, 288], strides = [1, 1]} : vector<8x342xf32> to vector<8x288xf32>
    %12 = vector.extract_strided_slice %8 {offsets = [0, 18], sizes = [8, 288], strides = [1, 1]} : vector<8x342xf32> to vector<8x288xf32>
    %13 = vector.extract_strided_slice %8 {offsets = [0, 19], sizes = [8, 288], strides = [1, 1]} : vector<8x342xf32> to vector<8x288xf32>
    %14 = vector.extract_strided_slice %8 {offsets = [0, 20], sizes = [8, 288], strides = [1, 1]} : vector<8x342xf32> to vector<8x288xf32>
    %15 = vector.extract_strided_slice %8 {offsets = [0, 36], sizes = [8, 288], strides = [1, 1]} : vector<8x342xf32> to vector<8x288xf32>
    %16 = vector.extract_strided_slice %8 {offsets = [0, 37], sizes = [8, 288], strides = [1, 1]} : vector<8x342xf32> to vector<8x288xf32>
    %17 = vector.extract_strided_slice %8 {offsets = [0, 38], sizes = [8, 288], strides = [1, 1]} : vector<8x342xf32> to vector<8x288xf32>
    %18 = tpu.concatenate %9, %10, %11, %12, %13, %14, %15, %16, %17 in 0 : vector<8x288xf32>, vector<8x288xf32>, vector<8x288xf32>, vector<8x288xf32>, vector<8x288xf32>, vector<8x288xf32>, vector<8x288xf32>, vector<8x288xf32>, vector<8x288xf32> -> vector<72x288xf32>
    %c0_7 = arith.constant 0 : index
    %c0_8 = arith.constant 0 : index
    %19 = vector.load %arg5[%c0_7, %c0_8] : memref<16x72xbf16, #tpu.memory_space<vmem>>, vector<16x72xbf16>
    %20 = arith.truncf %18 : vector<72x288xf32> to vector<72x288xbf16>
    %cst = arith.constant dense<0.000000e+00> : vector<16x288xf32>
    %21 = tpu.matmul %19, %20, %cst {dimension_numbers = #tpu.dot_dimension_numbers<[1], [0], [0], [1], [0, 0, 1, 1], [], []>} : vector<16x72xbf16>, vector<72x288xbf16>, vector<16x288xf32> -> vector<16x288xf32>
    %c0_9 = arith.constant 0 : index
    %c0_10 = arith.constant 0 : index
    %22 = vector.load %arg6[%c0_9, %c0_10] : memref<16x1xf32, #tpu.memory_space<vmem>>, vector<16x1xf32>
    %23 = vector.broadcast %22 : vector<16x1xf32> to vector<16x288xf32>
    %24 = arith.addf %21, %23 : vector<16x288xf32>
    %cst_11 = arith.constant 0.000000e+00 : f32
    %25 = vector.broadcast %cst_11 : f32 to vector<16x288xf32>
    %26 = arith.maximumf %24, %25 : vector<16x288xf32>
    %c0_12 = arith.constant 0 : index
    %c0_13 = arith.constant 0 : index
    %27 = vector.load %arg4[%c0_12, %c0_13] : memref<1x288xf32, #tpu.memory_space<vmem>>, vector<1x288xf32>
    %28 = vector.broadcast %27 : vector<1x288xf32> to vector<16x288xf32>
    %29 = arith.mulf %26, %28 : vector<16x288xf32>
    %30 = vector.extract_strided_slice %29 {offsets = [0, 0], sizes = [8, 288], strides = [1, 1]} : vector<16x288xf32> to vector<8x288xf32>
    %c0_14 = arith.constant 0 : index
    %c0_15 = arith.constant 0 : index
    %c0_16 = arith.constant 0 : index
    %31 = vector.load %arg9[%c0_14, %c0_15, %c0_16] : memref<1x8x288xf32, #tpu.memory_space<vmem>>, vector<1x8x288xf32>
    %32 = vector.shape_cast %31 : vector<1x8x288xf32> to vector<8x288xf32>
    %33 = vector.shape_cast %30 : vector<8x288xf32> to vector<1x8x288xf32>
    tpu.vector_store %arg9[%c0_14, %c0_15, %c0_16], %33 {strides = array<i32>} : memref<1x8x288xf32, #tpu.memory_space<vmem>>, vector<1x8x288xf32>,
    %c0_17 = arith.constant 0 : index
    %c0_18 = arith.constant 0 : index
    %34 = vector.load %arg7[%c0_17, %c0_18] : memref<8x8xf32, #tpu.memory_space<vmem>>, vector<8x8xf32>
    %35 = vector.extract_strided_slice %29 {offsets = [8, 0], sizes = [8, 288], strides = [1, 1]} : vector<16x288xf32> to vector<8x288xf32>
    %cst_19 = arith.constant dense<0.000000e+00> : vector<8x288xf32>
    %36 = tpu.matmul %34, %35, %cst_19 {dimension_numbers = #tpu.dot_dimension_numbers<[1], [0], [0], [1], [0, 0, 1, 1], [], []>} : vector<8x8xf32>, vector<8x288xf32>, vector<8x288xf32> -> vector<8x288xf32>
    %cst_20 = arith.constant dense<0.000000e+00> : vector<8xf32>
    %37 = vector.multi_reduction <add>, %36, %cst_20 [1] : vector<8x288xf32> to vector<8xf32>
    %38 = vector.shape_cast %37 : vector<8xf32> to vector<8x1xf32>
    %cst_21 = arith.constant 3.906250e-03 : f32
    %39 = vector.broadcast %cst_21 : f32 to vector<8x1xf32>
    %40 = arith.mulf %38, %39 : vector<8x1xf32>
    %c0_22 = arith.constant 0 : index
    %c0_23 = arith.constant 0 : index
    %41 = vector.load %arg8[%c0_22, %c0_23] : memref<8x1xf32, #tpu.memory_space<vmem>>, vector<8x1xf32>
    %42 = arith.addf %40, %41 : vector<8x1xf32>
    %c0_24 = arith.constant 0 : index
    %c0_25 = arith.constant 0 : index
    %c0_26 = arith.constant 0 : index
    %43 = vector.load %arg10[%c0_24, %c0_25, %c0_26] : memref<1x8x1xf32, #tpu.memory_space<vmem>>, vector<1x8x1xf32>
    %44 = vector.shape_cast %43 : vector<1x8x1xf32> to vector<8x1xf32>
    %45 = vector.shape_cast %42 : vector<8x1xf32> to vector<1x8x1xf32>
    tpu.vector_store %arg10[%c0_24, %c0_25, %c0_26], %45 {strides = array<i32>} : memref<1x8x1xf32, #tpu.memory_space<vmem>>, vector<1x8x1xf32>,
    return
  }
  func.func @transform_0(%arg0: i32) -> (i32, i32, i32) {
    %c0_i32 = arith.constant 0 : i32
    %c0_i32_0 = arith.constant 0 : i32
    %c0_i32_1 = arith.constant 0 : i32
    return %arg0, %c0_i32, %c0_i32_0 : i32, i32, i32
  }
  func.func @transform_1(%arg0: i32) -> (i32, i32, i32) {
    %c0_i32 = arith.constant 0 : i32
    %c0_i32_0 = arith.constant 0 : i32
    %c0_i32_1 = arith.constant 0 : i32
    return %arg0, %c0_i32, %c0_i32_0 : i32, i32, i32
  }
  func.func @transform_2(%arg0: i32) -> (i32, i32) {
    %c0_i32 = arith.constant 0 : i32
    %c0_i32_0 = arith.constant 0 : i32
    %c0_i32_1 = arith.constant 0 : i32
    return %c0_i32, %c0_i32_0 : i32, i32
  }
  func.func @transform_3(%arg0: i32) -> (i32, i32) {
    %c0_i32 = arith.constant 0 : i32
    %c0_i32_0 = arith.constant 0 : i32
    %c0_i32_1 = arith.constant 0 : i32
    return %c0_i32, %c0_i32_0 : i32, i32
  }
  func.func @transform_4(%arg0: i32) -> (i32, i32) {
    %c0_i32 = arith.constant 0 : i32
    %c0_i32_0 = arith.constant 0 : i32
    %c0_i32_1 = arith.constant 0 : i32
    return %c0_i32, %c0_i32_0 : i32, i32
  }
  func.func @transform_5(%arg0: i32) -> (i32, i32) {
    %c0_i32 = arith.constant 0 : i32
    %c0_i32_0 = arith.constant 0 : i32
    %c0_i32_1 = arith.constant 0 : i32
    return %c0_i32, %c0_i32_0 : i32, i32
  }
  func.func @transform_6(%arg0: i32) -> (i32, i32) {
    %c0_i32 = arith.constant 0 : i32
    %c0_i32_0 = arith.constant 0 : i32
    %c0_i32_1 = arith.constant 0 : i32
    return %c0_i32, %c0_i32_0 : i32, i32
  }
  func.func @transform_7(%arg0: i32) -> (i32, i32) {
    %c0_i32 = arith.constant 0 : i32
    %c0_i32_0 = arith.constant 0 : i32
    %c0_i32_1 = arith.constant 0 : i32
    return %c0_i32, %c0_i32_0 : i32, i32
  }
  func.func @transform_8(%arg0: i32) -> (i32, i32, i32) {
    %c0_i32 = arith.constant 0 : i32
    %c0_i32_0 = arith.constant 0 : i32
    %c0_i32_1 = arith.constant 0 : i32
    return %arg0, %c0_i32, %c0_i32_0 : i32, i32, i32
  }
  func.func @transform_9(%arg0: i32) -> (i32, i32, i32) {
    %c0_i32 = arith.constant 0 : i32
    %c0_i32_0 = arith.constant 0 : i32
    %c0_i32_1 = arith.constant 0 : i32
    return %arg0, %c0_i32, %c0_i32_0 : i32, i32, i32
  }
}

module attributes {stable_mosaic.version = 11 : i64} {
  func.func @_encoder_kernel(%arg0: i32, %arg1: memref<1x3x342xf32, #tpu.memory_space<vmem>>, %arg2: memref<1x5x1xf32, #tpu.memory_space<vmem>>, %arg3: memref<1x342xf32, #tpu.memory_space<vmem>>, %arg4: memref<1x288xf32, #tpu.memory_space<vmem>>, %arg5: memref<16x72xbf16, #tpu.memory_space<vmem>>, %arg6: memref<16x1xf32, #tpu.memory_space<vmem>>, %arg7: memref<8x8xf32, #tpu.memory_space<vmem>>, %arg8: memref<8x1xf32, #tpu.memory_space<vmem>>, %arg9: memref<1x8x288xf32, #tpu.memory_space<vmem>>, %arg10: memref<1x8x1xf32, #tpu.memory_space<vmem>>) attributes {dimension_semantics = [#tpu.dimension_semantics<parallel>], iteration_bounds = array<i64: 2>, scalar_prefetch = 0 : i64, scratch_operands = 0 : i64, tpu.core_type = #tpu.core_type<tc>, window_params = [{transform_indices = @transform_0, window_bounds = array<i64: 1, 3, 342>}, {transform_indices = @transform_1, window_bounds = array<i64: 1, 5, 1>}, {pipeline_mode = #tpu.pipeline_mode<synchronous>, transform_indices = @transform_2, window_bounds = array<i64: 1, 342>}, {pipeline_mode = #tpu.pipeline_mode<synchronous>, transform_indices = @transform_3, window_bounds = array<i64: 1, 288>}, {pipeline_mode = #tpu.pipeline_mode<synchronous>, transform_indices = @transform_4, window_bounds = array<i64: 16, 72>}, {pipeline_mode = #tpu.pipeline_mode<synchronous>, transform_indices = @transform_5, window_bounds = array<i64: 16, 1>}, {pipeline_mode = #tpu.pipeline_mode<synchronous>, transform_indices = @transform_6, window_bounds = array<i64: 8, 8>}, {pipeline_mode = #tpu.pipeline_mode<synchronous>, transform_indices = @transform_7, window_bounds = array<i64: 8, 1>}, {transform_indices = @transform_8, window_bounds = array<i64: 1, 8, 288>}, {transform_indices = @transform_9, window_bounds = array<i64: 1, 8, 1>}]} {
    %c0 = arith.constant 0 : index
    %c0_0 = arith.constant 0 : index
    %c0_1 = arith.constant 0 : index
    %0 = vector.load %arg2[%c0, %c0_0, %c0_1] : memref<1x5x1xf32, #tpu.memory_space<vmem>>, vector<1x5x1xf32>
    %1 = vector.shape_cast %0 : vector<1x5x1xf32> to vector<5x1xf32>
    %c0_2 = arith.constant 0 : index
    %c0_3 = arith.constant 0 : index
    %2 = vector.load %arg3[%c0_2, %c0_3] : memref<1x342xf32, #tpu.memory_space<vmem>>, vector<1x342xf32>
    %3 = vector.broadcast %1 : vector<5x1xf32> to vector<5x342xf32>
    %4 = vector.broadcast %2 : vector<1x342xf32> to vector<5x342xf32>
    %5 = arith.mulf %3, %4 : vector<5x342xf32>
    %c0_4 = arith.constant 0 : index
    %c0_5 = arith.constant 0 : index
    %c0_6 = arith.constant 0 : index
    %6 = vector.load %arg1[%c0_4, %c0_5, %c0_6] : memref<1x3x342xf32, #tpu.memory_space<vmem>>, vector<1x3x342xf32>
    %7 = vector.shape_cast %6 : vector<1x3x342xf32> to vector<3x342xf32>
    %8 = tpu.concatenate %7, %5 in 0 : vector<3x342xf32>, vector<5x342xf32> -> vector<8x342xf32>
    %9 = vector.extract_strided_slice %8 {offsets = [0, 0], sizes = [8, 288], strides = [1, 1]} : vector<8x342xf32> to vector<8x288xf32>
    %10 = vector.extract_strided_slice %8 {offsets = [0, 1], sizes = [8, 288], strides = [1, 1]} : vector<8x342xf32> to vector<8x288xf32>
    %11 = vector.extract_strided_slice %8 {offsets = [0, 2], sizes = [8, 288], strides = [1, 1]} : vector<8x342xf32> to vector<8x288xf32>
    %12 = vector.extract_strided_slice %8 {offsets = [0, 18], sizes = [8, 288], strides = [1, 1]} : vector<8x342xf32> to vector<8x288xf32>
    %13 = vector.extract_strided_slice %8 {offsets = [0, 19], sizes = [8, 288], strides = [1, 1]} : vector<8x342xf32> to vector<8x288xf32>
    %14 = vector.extract_strided_slice %8 {offsets = [0, 20], sizes = [8, 288], strides = [1, 1]} : vector<8x342xf32> to vector<8x288xf32>
    %15 = vector.extract_strided_slice %8 {offsets = [0, 36], sizes = [8, 288], strides = [1, 1]} : vector<8x342xf32> to vector<8x288xf32>
    %16 = vector.extract_strided_slice %8 {offsets = [0, 37], sizes = [8, 288], strides = [1, 1]} : vector<8x342xf32> to vector<8x288xf32>
    %17 = vector.extract_strided_slice %8 {offsets = [0, 38], sizes = [8, 288], strides = [1, 1]} : vector<8x342xf32> to vector<8x288xf32>
    %18 = tpu.concatenate %9, %10, %11, %12, %13, %14, %15, %16, %17 in 0 : vector<8x288xf32>, vector<8x288xf32>, vector<8x288xf32>, vector<8x288xf32>, vector<8x288xf32>, vector<8x288xf32>, vector<8x288xf32>, vector<8x288xf32>, vector<8x288xf32> -> vector<72x288xf32>
    %c0_7 = arith.constant 0 : index
    %c0_8 = arith.constant 0 : index
    %19 = vector.load %arg5[%c0_7, %c0_8] : memref<16x72xbf16, #tpu.memory_space<vmem>>, vector<16x72xbf16>
    %20 = arith.truncf %18 : vector<72x288xf32> to vector<72x288xbf16>
    %cst = arith.constant dense<0.000000e+00> : vector<16x288xf32>
    %21 = tpu.matmul %19, %20, %cst {dimension_numbers = #tpu.dot_dimension_numbers<[1], [0], [0], [1], [0, 0, 1, 1], [], []>} : vector<16x72xbf16>, vector<72x288xbf16>, vector<16x288xf32> -> vector<16x288xf32>
    %c0_9 = arith.constant 0 : index
    %c0_10 = arith.constant 0 : index
    %22 = vector.load %arg6[%c0_9, %c0_10] : memref<16x1xf32, #tpu.memory_space<vmem>>, vector<16x1xf32>
    %23 = vector.broadcast %22 : vector<16x1xf32> to vector<16x288xf32>
    %24 = arith.addf %21, %23 : vector<16x288xf32>
    %cst_11 = arith.constant 0.000000e+00 : f32
    %25 = vector.broadcast %cst_11 : f32 to vector<16x288xf32>
    %26 = arith.maximumf %24, %25 : vector<16x288xf32>
    %c0_12 = arith.constant 0 : index
    %c0_13 = arith.constant 0 : index
    %27 = vector.load %arg4[%c0_12, %c0_13] : memref<1x288xf32, #tpu.memory_space<vmem>>, vector<1x288xf32>
    %28 = vector.broadcast %27 : vector<1x288xf32> to vector<16x288xf32>
    %29 = arith.mulf %26, %28 : vector<16x288xf32>
    %30 = vector.extract_strided_slice %29 {offsets = [0, 0], sizes = [8, 288], strides = [1, 1]} : vector<16x288xf32> to vector<8x288xf32>
    %c0_14 = arith.constant 0 : index
    %c0_15 = arith.constant 0 : index
    %c0_16 = arith.constant 0 : index
    %31 = vector.load %arg9[%c0_14, %c0_15, %c0_16] : memref<1x8x288xf32, #tpu.memory_space<vmem>>, vector<1x8x288xf32>
    %32 = vector.shape_cast %31 : vector<1x8x288xf32> to vector<8x288xf32>
    %33 = vector.shape_cast %30 : vector<8x288xf32> to vector<1x8x288xf32>
    tpu.vector_store %arg9[%c0_14, %c0_15, %c0_16], %33 {strides = array<i32>} : memref<1x8x288xf32, #tpu.memory_space<vmem>>, vector<1x8x288xf32>,
    %c0_17 = arith.constant 0 : index
    %c0_18 = arith.constant 0 : index
    %34 = vector.load %arg7[%c0_17, %c0_18] : memref<8x8xf32, #tpu.memory_space<vmem>>, vector<8x8xf32>
    %35 = vector.extract_strided_slice %29 {offsets = [8, 0], sizes = [8, 288], strides = [1, 1]} : vector<16x288xf32> to vector<8x288xf32>
    %cst_19 = arith.constant dense<0.000000e+00> : vector<8x288xf32>
    %36 = tpu.matmul %34, %35, %cst_19 {dimension_numbers = #tpu.dot_dimension_numbers<[1], [0], [0], [1], [0, 0, 1, 1], [], []>} : vector<8x8xf32>, vector<8x288xf32>, vector<8x288xf32> -> vector<8x288xf32>
    %cst_20 = arith.constant dense<0.000000e+00> : vector<8xf32>
    %37 = vector.multi_reduction <add>, %36, %cst_20 [1] : vector<8x288xf32> to vector<8xf32>
    %38 = vector.shape_cast %37 : vector<8xf32> to vector<8x1xf32>
    %cst_21 = arith.constant 3.906250e-03 : f32
    %39 = vector.broadcast %cst_21 : f32 to vector<8x1xf32>
    %40 = arith.mulf %38, %39 : vector<8x1xf32>
    %c0_22 = arith.constant 0 : index
    %c0_23 = arith.constant 0 : index
    %41 = vector.load %arg8[%c0_22, %c0_23] : memref<8x1xf32, #tpu.memory_space<vmem>>, vector<8x1xf32>
    %42 = arith.addf %40, %41 : vector<8x1xf32>
    %c0_24 = arith.constant 0 : index
    %c0_25 = arith.constant 0 : index
    %c0_26 = arith.constant 0 : index
    %43 = vector.load %arg10[%c0_24, %c0_25, %c0_26] : memref<1x8x1xf32, #tpu.memory_space<vmem>>, vector<1x8x1xf32>
    %44 = vector.shape_cast %43 : vector<1x8x1xf32> to vector<8x1xf32>
    %45 = vector.shape_cast %42 : vector<8x1xf32> to vector<1x8x1xf32>
    tpu.vector_store %arg10[%c0_24, %c0_25, %c0_26], %45 {strides = array<i32>} : memref<1x8x1xf32, #tpu.memory_space<vmem>>, vector<1x8x1xf32>,
    return
  }
  func.func @transform_0(%arg0: i32) -> (i32, i32, i32) {
    %c0_i32 = arith.constant 0 : i32
    %c0_i32_0 = arith.constant 0 : i32
    %c0_i32_1 = arith.constant 0 : i32
    return %arg0, %c0_i32, %c0_i32_0 : i32, i32, i32
  }
  func.func @transform_1(%arg0: i32) -> (i32, i32, i32) {
    %c0_i32 = arith.constant 0 : i32
    %c0_i32_0 = arith.constant 0 : i32
    %c0_i32_1 = arith.constant 0 : i32
    return %arg0, %c0_i32, %c0_i32_0 : i32, i32, i32
  }
  func.func @transform_2(%arg0: i32) -> (i32, i32) {
    %c0_i32 = arith.constant 0 : i32
    %c0_i32_0 = arith.constant 0 : i32
    %c0_i32_1 = arith.constant 0 : i32
    return %c0_i32, %c0_i32_0 : i32, i32
  }
  func.func @transform_3(%arg0: i32) -> (i32, i32) {
    %c0_i32 = arith.constant 0 : i32
    %c0_i32_0 = arith.constant 0 : i32
    %c0_i32_1 = arith.constant 0 : i32
    return %c0_i32, %c0_i32_0 : i32, i32
  }
  func.func @transform_4(%arg0: i32) -> (i32, i32) {
    %c0_i32 = arith.constant 0 : i32
    %c0_i32_0 = arith.constant 0 : i32
    %c0_i32_1 = arith.constant 0 : i32
    return %c0_i32, %c0_i32_0 : i32, i32
  }
  func.func @transform_5(%arg0: i32) -> (i32, i32) {
    %c0_i32 = arith.constant 0 : i32
    %c0_i32_0 = arith.constant 0 : i32
    %c0_i32_1 = arith.constant 0 : i32
    return %c0_i32, %c0_i32_0 : i32, i32
  }
  func.func @transform_6(%arg0: i32) -> (i32, i32) {
    %c0_i32 = arith.constant 0 : i32
    %c0_i32_0 = arith.constant 0 : i32
    %c0_i32_1 = arith.constant 0 : i32
    return %c0_i32, %c0_i32_0 : i32, i32
  }
  func.func @transform_7(%arg0: i32) -> (i32, i32) {
    %c0_i32 = arith.constant 0 : i32
    %c0_i32_0 = arith.constant 0 : i32
    %c0_i32_1 = arith.constant 0 : i32
    return %c0_i32, %c0_i32_0 : i32, i32
  }
  func.func @transform_8(%arg0: i32) -> (i32, i32, i32) {
    %c0_i32 = arith.constant 0 : i32
    %c0_i32_0 = arith.constant 0 : i32
    %c0_i32_1 = arith.constant 0 : i32
    return %arg0, %c0_i32, %c0_i32_0 : i32, i32, i32
  }
  func.func @transform_9(%arg0: i32) -> (i32, i32, i32) {
    %c0_i32 = arith.constant 0 : i32
    %c0_i32_0 = arith.constant 0 : i32
    %c0_i32_1 = arith.constant 0 : i32
    return %arg0, %c0_i32, %c0_i32_0 : i32, i32, i32
  }
}

module attributes {stable_mosaic.version = 11 : i64} {
  func.func @_decoder_kernel(%arg0: i32, %arg1: memref<1x8x342xf32, #tpu.memory_space<vmem>>, %arg2: memref<1x16x1xf32, #tpu.memory_space<vmem>>, %arg3: memref<1x342xf32, #tpu.memory_space<vmem>>, %arg4: memref<1x288xf32, #tpu.memory_space<vmem>>, %arg5: memref<3x216xbf16, #tpu.memory_space<vmem>>, %arg6: memref<3x1xf32, #tpu.memory_space<vmem>>, %arg7: memref<1x3x288xf32, #tpu.memory_space<vmem>>) attributes {dimension_semantics = [#tpu.dimension_semantics<parallel>], iteration_bounds = array<i64: 4>, scalar_prefetch = 0 : i64, scratch_operands = 0 : i64, tpu.core_type = #tpu.core_type<tc>, window_params = [{transform_indices = @transform_0, window_bounds = array<i64: 1, 8, 342>}, {transform_indices = @transform_1, window_bounds = array<i64: 1, 16, 1>}, {pipeline_mode = #tpu.pipeline_mode<synchronous>, transform_indices = @transform_2, window_bounds = array<i64: 1, 342>}, {pipeline_mode = #tpu.pipeline_mode<synchronous>, transform_indices = @transform_3, window_bounds = array<i64: 1, 288>}, {pipeline_mode = #tpu.pipeline_mode<synchronous>, transform_indices = @transform_4, window_bounds = array<i64: 3, 216>}, {pipeline_mode = #tpu.pipeline_mode<synchronous>, transform_indices = @transform_5, window_bounds = array<i64: 3, 1>}, {transform_indices = @transform_6, window_bounds = array<i64: 1, 3, 288>}]} {
    %c0 = arith.constant 0 : index
    %c0_0 = arith.constant 0 : index
    %c0_1 = arith.constant 0 : index
    %0 = vector.load %arg2[%c0, %c0_0, %c0_1] : memref<1x16x1xf32, #tpu.memory_space<vmem>>, vector<1x16x1xf32>
    %1 = vector.shape_cast %0 : vector<1x16x1xf32> to vector<16x1xf32>
    %c0_2 = arith.constant 0 : index
    %c0_3 = arith.constant 0 : index
    %2 = vector.load %arg3[%c0_2, %c0_3] : memref<1x342xf32, #tpu.memory_space<vmem>>, vector<1x342xf32>
    %3 = vector.broadcast %1 : vector<16x1xf32> to vector<16x342xf32>
    %4 = vector.broadcast %2 : vector<1x342xf32> to vector<16x342xf32>
    %5 = arith.mulf %3, %4 : vector<16x342xf32>
    %c0_4 = arith.constant 0 : index
    %c0_5 = arith.constant 0 : index
    %c0_6 = arith.constant 0 : index
    %6 = vector.load %arg1[%c0_4, %c0_5, %c0_6] : memref<1x8x342xf32, #tpu.memory_space<vmem>>, vector<1x8x342xf32>
    %7 = vector.shape_cast %6 : vector<1x8x342xf32> to vector<8x342xf32>
    %8 = tpu.concatenate %7, %5 in 0 : vector<8x342xf32>, vector<16x342xf32> -> vector<24x342xf32>
    %9 = vector.extract_strided_slice %8 {offsets = [0, 0], sizes = [24, 288], strides = [1, 1]} : vector<24x342xf32> to vector<24x288xf32>
    %10 = vector.extract_strided_slice %8 {offsets = [0, 1], sizes = [24, 288], strides = [1, 1]} : vector<24x342xf32> to vector<24x288xf32>
    %11 = vector.extract_strided_slice %8 {offsets = [0, 2], sizes = [24, 288], strides = [1, 1]} : vector<24x342xf32> to vector<24x288xf32>
    %12 = vector.extract_strided_slice %8 {offsets = [0, 18], sizes = [24, 288], strides = [1, 1]} : vector<24x342xf32> to vector<24x288xf32>
    %13 = vector.extract_strided_slice %8 {offsets = [0, 19], sizes = [24, 288], strides = [1, 1]} : vector<24x342xf32> to vector<24x288xf32>
    %14 = vector.extract_strided_slice %8 {offsets = [0, 20], sizes = [24, 288], strides = [1, 1]} : vector<24x342xf32> to vector<24x288xf32>
    %15 = vector.extract_strided_slice %8 {offsets = [0, 36], sizes = [24, 288], strides = [1, 1]} : vector<24x342xf32> to vector<24x288xf32>
    %16 = vector.extract_strided_slice %8 {offsets = [0, 37], sizes = [24, 288], strides = [1, 1]} : vector<24x342xf32> to vector<24x288xf32>
    %17 = vector.extract_strided_slice %8 {offsets = [0, 38], sizes = [24, 288], strides = [1, 1]} : vector<24x342xf32> to vector<24x288xf32>
    %18 = tpu.concatenate %9, %10, %11, %12, %13, %14, %15, %16, %17 in 0 : vector<24x288xf32>, vector<24x288xf32>, vector<24x288xf32>, vector<24x288xf32>, vector<24x288xf32>, vector<24x288xf32>, vector<24x288xf32>, vector<24x288xf32>, vector<24x288xf32> -> vector<216x288xf32>
    %c0_7 = arith.constant 0 : index
    %c0_8 = arith.constant 0 : index
    %19 = vector.load %arg5[%c0_7, %c0_8] : memref<3x216xbf16, #tpu.memory_space<vmem>>, vector<3x216xbf16>
    %20 = arith.truncf %18 : vector<216x288xf32> to vector<216x288xbf16>
    %cst = arith.constant dense<0.000000e+00> : vector<3x288xf32>
    %21 = tpu.matmul %19, %20, %cst {dimension_numbers = #tpu.dot_dimension_numbers<[1], [0], [0], [1], [0, 0, 1, 1], [], []>} : vector<3x216xbf16>, vector<216x288xbf16>, vector<3x288xf32> -> vector<3x288xf32>
    %c0_9 = arith.constant 0 : index
    %c0_10 = arith.constant 0 : index
    %22 = vector.load %arg6[%c0_9, %c0_10] : memref<3x1xf32, #tpu.memory_space<vmem>>, vector<3x1xf32>
    %23 = vector.broadcast %22 : vector<3x1xf32> to vector<3x288xf32>
    %24 = arith.addf %21, %23 : vector<3x288xf32>
    %25 = math.tanh %24 : vector<3x288xf32>
    %c0_11 = arith.constant 0 : index
    %c0_12 = arith.constant 0 : index
    %26 = vector.load %arg4[%c0_11, %c0_12] : memref<1x288xf32, #tpu.memory_space<vmem>>, vector<1x288xf32>
    %27 = vector.broadcast %26 : vector<1x288xf32> to vector<3x288xf32>
    %28 = arith.mulf %25, %27 : vector<3x288xf32>
    %c0_13 = arith.constant 0 : index
    %c0_14 = arith.constant 0 : index
    %c0_15 = arith.constant 0 : index
    %29 = vector.load %arg7[%c0_13, %c0_14, %c0_15] : memref<1x3x288xf32, #tpu.memory_space<vmem>>, vector<1x3x288xf32>
    %30 = vector.shape_cast %29 : vector<1x3x288xf32> to vector<3x288xf32>
    %31 = vector.shape_cast %28 : vector<3x288xf32> to vector<1x3x288xf32>
    tpu.vector_store %arg7[%c0_13, %c0_14, %c0_15], %31 {strides = array<i32>} : memref<1x3x288xf32, #tpu.memory_space<vmem>>, vector<1x3x288xf32>,
    return
  }
  func.func @transform_0(%arg0: i32) -> (i32, i32, i32) {
    %c0_i32 = arith.constant 0 : i32
    %c0_i32_0 = arith.constant 0 : i32
    %c0_i32_1 = arith.constant 0 : i32
    return %arg0, %c0_i32, %c0_i32_0 : i32, i32, i32
  }
  func.func @transform_1(%arg0: i32) -> (i32, i32, i32) {
    %c0_i32 = arith.constant 0 : i32
    %c0_i32_0 = arith.constant 0 : i32
    %c0_i32_1 = arith.constant 0 : i32
    return %arg0, %c0_i32, %c0_i32_0 : i32, i32, i32
  }
  func.func @transform_2(%arg0: i32) -> (i32, i32) {
    %c0_i32 = arith.constant 0 : i32
    %c0_i32_0 = arith.constant 0 : i32
    %c0_i32_1 = arith.constant 0 : i32
    return %c0_i32, %c0_i32_0 : i32, i32
  }
  func.func @transform_3(%arg0: i32) -> (i32, i32) {
    %c0_i32 = arith.constant 0 : i32
    %c0_i32_0 = arith.constant 0 : i32
    %c0_i32_1 = arith.constant 0 : i32
    return %c0_i32, %c0_i32_0 : i32, i32
  }
  func.func @transform_4(%arg0: i32) -> (i32, i32) {
    %c0_i32 = arith.constant 0 : i32
    %c0_i32_0 = arith.constant 0 : i32
    %c0_i32_1 = arith.constant 0 : i32
    return %c0_i32, %c0_i32_0 : i32, i32
  }
  func.func @transform_5(%arg0: i32) -> (i32, i32) {
    %c0_i32 = arith.constant 0 : i32
    %c0_i32_0 = arith.constant 0 : i32
    %c0_i32_1 = arith.constant 0 : i32
    return %c0_i32, %c0_i32_0 : i32, i32
  }
  func.func @transform_6(%arg0: i32) -> (i32, i32, i32) {
    %c0_i32 = arith.constant 0 : i32
    %c0_i32_0 = arith.constant 0 : i32
    %c0_i32_1 = arith.constant 0 : i32
    return %arg0, %c0_i32, %c0_i32_0 : i32, i32, i32
  }
}

module attributes {stable_mosaic.version = 11 : i64} {
  func.func @_decoder_kernel(%arg0: i32, %arg1: memref<1x8x342xf32, #tpu.memory_space<vmem>>, %arg2: memref<1x16x1xf32, #tpu.memory_space<vmem>>, %arg3: memref<1x342xf32, #tpu.memory_space<vmem>>, %arg4: memref<1x288xf32, #tpu.memory_space<vmem>>, %arg5: memref<3x216xbf16, #tpu.memory_space<vmem>>, %arg6: memref<3x1xf32, #tpu.memory_space<vmem>>, %arg7: memref<1x3x288xf32, #tpu.memory_space<vmem>>) attributes {dimension_semantics = [#tpu.dimension_semantics<parallel>], iteration_bounds = array<i64: 2>, scalar_prefetch = 0 : i64, scratch_operands = 0 : i64, tpu.core_type = #tpu.core_type<tc>, window_params = [{transform_indices = @transform_0, window_bounds = array<i64: 1, 8, 342>}, {transform_indices = @transform_1, window_bounds = array<i64: 1, 16, 1>}, {pipeline_mode = #tpu.pipeline_mode<synchronous>, transform_indices = @transform_2, window_bounds = array<i64: 1, 342>}, {pipeline_mode = #tpu.pipeline_mode<synchronous>, transform_indices = @transform_3, window_bounds = array<i64: 1, 288>}, {pipeline_mode = #tpu.pipeline_mode<synchronous>, transform_indices = @transform_4, window_bounds = array<i64: 3, 216>}, {pipeline_mode = #tpu.pipeline_mode<synchronous>, transform_indices = @transform_5, window_bounds = array<i64: 3, 1>}, {transform_indices = @transform_6, window_bounds = array<i64: 1, 3, 288>}]} {
    %c0 = arith.constant 0 : index
    %c0_0 = arith.constant 0 : index
    %c0_1 = arith.constant 0 : index
    %0 = vector.load %arg2[%c0, %c0_0, %c0_1] : memref<1x16x1xf32, #tpu.memory_space<vmem>>, vector<1x16x1xf32>
    %1 = vector.shape_cast %0 : vector<1x16x1xf32> to vector<16x1xf32>
    %c0_2 = arith.constant 0 : index
    %c0_3 = arith.constant 0 : index
    %2 = vector.load %arg3[%c0_2, %c0_3] : memref<1x342xf32, #tpu.memory_space<vmem>>, vector<1x342xf32>
    %3 = vector.broadcast %1 : vector<16x1xf32> to vector<16x342xf32>
    %4 = vector.broadcast %2 : vector<1x342xf32> to vector<16x342xf32>
    %5 = arith.mulf %3, %4 : vector<16x342xf32>
    %c0_4 = arith.constant 0 : index
    %c0_5 = arith.constant 0 : index
    %c0_6 = arith.constant 0 : index
    %6 = vector.load %arg1[%c0_4, %c0_5, %c0_6] : memref<1x8x342xf32, #tpu.memory_space<vmem>>, vector<1x8x342xf32>
    %7 = vector.shape_cast %6 : vector<1x8x342xf32> to vector<8x342xf32>
    %8 = tpu.concatenate %7, %5 in 0 : vector<8x342xf32>, vector<16x342xf32> -> vector<24x342xf32>
    %9 = vector.extract_strided_slice %8 {offsets = [0, 0], sizes = [24, 288], strides = [1, 1]} : vector<24x342xf32> to vector<24x288xf32>
    %10 = vector.extract_strided_slice %8 {offsets = [0, 1], sizes = [24, 288], strides = [1, 1]} : vector<24x342xf32> to vector<24x288xf32>
    %11 = vector.extract_strided_slice %8 {offsets = [0, 2], sizes = [24, 288], strides = [1, 1]} : vector<24x342xf32> to vector<24x288xf32>
    %12 = vector.extract_strided_slice %8 {offsets = [0, 18], sizes = [24, 288], strides = [1, 1]} : vector<24x342xf32> to vector<24x288xf32>
    %13 = vector.extract_strided_slice %8 {offsets = [0, 19], sizes = [24, 288], strides = [1, 1]} : vector<24x342xf32> to vector<24x288xf32>
    %14 = vector.extract_strided_slice %8 {offsets = [0, 20], sizes = [24, 288], strides = [1, 1]} : vector<24x342xf32> to vector<24x288xf32>
    %15 = vector.extract_strided_slice %8 {offsets = [0, 36], sizes = [24, 288], strides = [1, 1]} : vector<24x342xf32> to vector<24x288xf32>
    %16 = vector.extract_strided_slice %8 {offsets = [0, 37], sizes = [24, 288], strides = [1, 1]} : vector<24x342xf32> to vector<24x288xf32>
    %17 = vector.extract_strided_slice %8 {offsets = [0, 38], sizes = [24, 288], strides = [1, 1]} : vector<24x342xf32> to vector<24x288xf32>
    %18 = tpu.concatenate %9, %10, %11, %12, %13, %14, %15, %16, %17 in 0 : vector<24x288xf32>, vector<24x288xf32>, vector<24x288xf32>, vector<24x288xf32>, vector<24x288xf32>, vector<24x288xf32>, vector<24x288xf32>, vector<24x288xf32>, vector<24x288xf32> -> vector<216x288xf32>
    %c0_7 = arith.constant 0 : index
    %c0_8 = arith.constant 0 : index
    %19 = vector.load %arg5[%c0_7, %c0_8] : memref<3x216xbf16, #tpu.memory_space<vmem>>, vector<3x216xbf16>
    %20 = arith.truncf %18 : vector<216x288xf32> to vector<216x288xbf16>
    %cst = arith.constant dense<0.000000e+00> : vector<3x288xf32>
    %21 = tpu.matmul %19, %20, %cst {dimension_numbers = #tpu.dot_dimension_numbers<[1], [0], [0], [1], [0, 0, 1, 1], [], []>} : vector<3x216xbf16>, vector<216x288xbf16>, vector<3x288xf32> -> vector<3x288xf32>
    %c0_9 = arith.constant 0 : index
    %c0_10 = arith.constant 0 : index
    %22 = vector.load %arg6[%c0_9, %c0_10] : memref<3x1xf32, #tpu.memory_space<vmem>>, vector<3x1xf32>
    %23 = vector.broadcast %22 : vector<3x1xf32> to vector<3x288xf32>
    %24 = arith.addf %21, %23 : vector<3x288xf32>
    %25 = math.tanh %24 : vector<3x288xf32>
    %c0_11 = arith.constant 0 : index
    %c0_12 = arith.constant 0 : index
    %26 = vector.load %arg4[%c0_11, %c0_12] : memref<1x288xf32, #tpu.memory_space<vmem>>, vector<1x288xf32>
    %27 = vector.broadcast %26 : vector<1x288xf32> to vector<3x288xf32>
    %28 = arith.mulf %25, %27 : vector<3x288xf32>
    %c0_13 = arith.constant 0 : index
    %c0_14 = arith.constant 0 : index
    %c0_15 = arith.constant 0 : index
    %29 = vector.load %arg7[%c0_13, %c0_14, %c0_15] : memref<1x3x288xf32, #tpu.memory_space<vmem>>, vector<1x3x288xf32>
    %30 = vector.shape_cast %29 : vector<1x3x288xf32> to vector<3x288xf32>
    %31 = vector.shape_cast %28 : vector<3x288xf32> to vector<1x3x288xf32>
    tpu.vector_store %arg7[%c0_13, %c0_14, %c0_15], %31 {strides = array<i32>} : memref<1x3x288xf32, #tpu.memory_space<vmem>>, vector<1x3x288xf32>,
    return
  }
  func.func @transform_0(%arg0: i32) -> (i32, i32, i32) {
    %c0_i32 = arith.constant 0 : i32
    %c0_i32_0 = arith.constant 0 : i32
    %c0_i32_1 = arith.constant 0 : i32
    return %arg0, %c0_i32, %c0_i32_0 : i32, i32, i32
  }
  func.func @transform_1(%arg0: i32) -> (i32, i32, i32) {
    %c0_i32 = arith.constant 0 : i32
    %c0_i32_0 = arith.constant 0 : i32
    %c0_i32_1 = arith.constant 0 : i32
    return %arg0, %c0_i32, %c0_i32_0 : i32, i32, i32
  }
  func.func @transform_2(%arg0: i32) -> (i32, i32) {
    %c0_i32 = arith.constant 0 : i32
    %c0_i32_0 = arith.constant 0 : i32
    %c0_i32_1 = arith.constant 0 : i32
    return %c0_i32, %c0_i32_0 : i32, i32
  }
  func.func @transform_3(%arg0: i32) -> (i32, i32) {
    %c0_i32 = arith.constant 0 : i32
    %c0_i32_0 = arith.constant 0 : i32
    %c0_i32_1 = arith.constant 0 : i32
    return %c0_i32, %c0_i32_0 : i32, i32
  }
  func.func @transform_4(%arg0: i32) -> (i32, i32) {
    %c0_i32 = arith.constant 0 : i32
    %c0_i32_0 = arith.constant 0 : i32
    %c0_i32_1 = arith.constant 0 : i32
    return %c0_i32, %c0_i32_0 : i32, i32
  }
  func.func @transform_5(%arg0: i32) -> (i32, i32) {
    %c0_i32 = arith.constant 0 : i32
    %c0_i32_0 = arith.constant 0 : i32
    %c0_i32_1 = arith.constant 0 : i32
    return %c0_i32, %c0_i32_0 : i32, i32
  }
  func.func @transform_6(%arg0: i32) -> (i32, i32, i32) {
    %c0_i32 = arith.constant 0 : i32
    %c0_i32_0 = arith.constant 0 : i32
    %c0_i32_1 = arith.constant 0 : i32
    return %arg0, %c0_i32, %c0_i32_0 : i32, i32, i32
  }
}

</mosaic_0001>

<llo_original>
// kernel: tile.23
$region0: #{tile.23}
  #allocation0 [shape = 's32[1]{0}', space=sflag, size = 0x4, scoped, tag = 'scoped memory for tile.23']
  %s0 = inlined_call_operand.vmem [shape: f32[18], index: 0, kind: input, shape index: {}]
  %s1 = inlined_call_operand.vmem [shape: f32[16,18], index: 1, kind: output, shape index: {}]
  // Predicated region
  $region2: #{tile.23} parent=0 // pred_check
    _
  $region3: #{tile.23} parent=0 // pred_check_branch
    %3 = sbr.rel (0) target = $region5
  $region4: #{tile.23} parent=0 // pred_region
    _
  $region5: #{tile.23} parent=0 // pred_fallthru
    _
  %v4 = vld [vmem:[%s0] ss:$0 sm:$0xff]
  %5 = vst [vmem:[%s1] sm:$0xff] %v4
  %s6 = scalar_lea.vmem %s1, 8
  %7 = vst [vmem:[%s6] sm:$0xff] %v4

// kernel: tile.24
$region0: #{tile.24}
  %s0 = inlined_call_operand.vmem [shape: f32[16,18], index: 0, kind: input, shape index: {}]
  %s1 = inlined_call_operand.vmem [shape: f32[1,288], index: 1, kind: output, shape index: {}]
  $region1: #{tile.24} parent=0
    #allocation0 [shape = 'u8[12288]{0}', space=vmem, size = 0x3000, scoped, tag = 'scoped mem for output reshape']
    %v2 = vld [vmem:[%s0] sm:$0x1]
    %vm3 = vcmask 146432
    %4 = vst.msk [vmem:[#allocation0] sm:$0x1] %vm3, %v2
    %s5 = scalar_lea.vmem %s0, 7
    %v6 = vld [vmem:[%s5] sm:$0x1]
    %s7 = scalar_lea.vmem %s0, 7
    %v8 = vld [vmem:[%s7] sm:$0x1]
    %vm9 = vcmask 15360
    %v10 = vsel %vm9, %v8, %v6
    %11 = vrot.lane.b32.xlu0 %v10, 126
    %v12 = vpop.permute.xlu0 %11
    %vm13 = vcmask 130048
    %s14 = scalar_lea.vmem [#allocation0], 8
    %15 = vst.msk [vmem:[%s14] sm:$0x1] %vm13, %v12
    %vm16 = vcmask 1048560
    %17 = vst.msk [vmem:[#allocation0] sm:$0x1] %vm16, %v12
    %s18 = scalar_lea.vmem %s0, 14
    %v19 = vld [vmem:[%s18] sm:$0x1]
    %s20 = scalar_lea.vmem %s0, 14
    %v21 = vld [vmem:[%s20] sm:$0x1]
    %vm22 = vcmask 31744
    %v23 = vsel %vm22, %v21, %v19
    %24 = vrot.lane.b32.xlu0 %v23, 124
    %v25 = vpop.permute.xlu0 %24
    %vm26 = vcmask 113664
    %s27 = scalar_lea.vmem [#allocation0], 16
    %28 = vst.msk [vmem:[%s27] sm:$0x1] %vm26, %v25
    %vm29 = vcmask 1048544
    %s30 = scalar_lea.vmem [#allocation0], 8
    %31 = vst.msk [vmem:[%s30] sm:$0x1] %vm29, %v25
    %s32 = scalar_lea.vmem %s0, 6
    %v33 = vld [vmem:[%s32] sm:$0x1]
    %34 = vrot.lane.b32.xlu0 %v33, 108
    %v35 = vpop.permute.xlu0 %34
    %vm36 = vcmask 1032032
    %37 = vst.msk [vmem:[#allocation0] sm:$0x1] %vm36, %v35
    %s38 = scalar_lea.vmem %s0, 13
    %v39 = vld [vmem:[%s38] sm:$0x1]
    %40 = vrot.lane.b32.xlu0 %v39, 106
    %v41 = vpop.permute.xlu0 %40
    %vm42 = vcmask 1015632
    %s43 = scalar_lea.vmem [#allocation0], 8
    %44 = vst.msk [vmem:[%s43] sm:$0x1] %vm42, %v41
    %s45 = scalar_lea.vmem %s0, 5
    %v46 = vld [vmem:[%s45] sm:$0x1]
    %47 = vrot.lane.b32.xlu0 %v46, 90
    %v48 = vpop.permute.xlu0 %47
    %vm49 = vcmask 884432
    %50 = vst.msk [vmem:[#allocation0] sm:$0x1] %vm49, %v48
    %s51 = scalar_lea.vmem %s0, 12
    %v52 = vld [vmem:[%s51] sm:$0x1]
    %53 = vrot.lane.b32.xlu0 %v52, 88
    %v54 = vpop.permute.xlu0 %53
    %vm55 = vcmask 868032
    %s56 = scalar_lea.vmem [#allocation0], 8
    %57 = vst.msk [vmem:[%s56] sm:$0x1] %vm55, %v54
    %s58 = scalar_lea.vmem %s0, 4
    %v59 = vld [vmem:[%s58] sm:$0x1]
    %60 = vrot.lane.b32.xlu0 %v59, 72
    %v61 = vpop.permute.xlu0 %60
    %vm62 = vcmask 736832
    %63 = vst.msk [vmem:[#allocation0] sm:$0x1] %vm62, %v61
    %s64 = scalar_lea.vmem %s0, 11
    %v65 = vld [vmem:[%s64] sm:$0x1]
    %66 = vrot.lane.b32.xlu0 %v65, 70
    %v67 = vpop.permute.xlu0 %66
    %vm68 = vcmask 720432
    %s69 = scalar_lea.vmem [#allocation0], 8
    %70 = vst.msk [vmem:[%s69] sm:$0x1] %vm68, %v67
    %s71 = scalar_lea.vmem %s0, 3
    %v72 = vld [vmem:[%s71] sm:$0x1]
    %73 = vrot.lane.b32.xlu0 %v72, 54
    %v74 = vpop.permute.xlu0 %73
    %vm75 = vcmask 589232
    %76 = vst.msk [vmem:[#allocation0] sm:$0x1] %vm75, %v74
    %s77 = scalar_lea.vmem %s0, 10
    %v78 = vld [vmem:[%s77] sm:$0x1]
    %79 = vrot.lane.b32.xlu0 %v78, 52
    %v80 = vpop.permute.xlu0 %79
    %vm81 = vcmask 572832
    %s82 = scalar_lea.vmem [#allocation0], 8
    %83 = vst.msk [vmem:[%s82] sm:$0x1] %vm81, %v80
    %s84 = scalar_lea.vmem %s0, 2
    %v85 = vld [vmem:[%s84] sm:$0x1]
    %86 = vrot.lane.b32.xlu0 %v85, 36
    %v87 = vpop.permute.xlu0 %86
    %vm88 = vcmask 441632
    %89 = vst.msk [vmem:[#allocation0] sm:$0x1] %vm88, %v87
    %s90 = scalar_lea.vmem %s0, 9
    %v91 = vld [vmem:[%s90] sm:$0x1]
    %92 = vrot.lane.b32.xlu0 %v91, 34
    %v93 = vpop.permute.xlu0 %92
    %vm94 = vcmask 425232
    %s95 = scalar_lea.vmem [#allocation0], 8
    %96 = vst.msk [vmem:[%s95] sm:$0x1] %vm94, %v93
    %s97 = scalar_lea.vmem %s0, 1
    %v98 = vld [vmem:[%s97] sm:$0x1]
    %99 = vrot.lane.b32.xlu0 %v98, 18
    %v100 = vpop.permute.xlu0 %99
    %vm101 = vcmask 294032
    %102 = vst.msk [vmem:[#allocation0] sm:$0x1] %vm101, %v100
    %s103 = scalar_lea.vmem %s0, 8
    %v104 = vld [vmem:[%s103] sm:$0x1]
    %105 = vrot.lane.b32.xlu0 %v104, 16
    %v106 = vpop.permute.xlu0 %105
    %vm107 = vcmask 277632
    %s108 = scalar_lea.vmem [#allocation0], 8
    %109 = vst.msk [vmem:[%s108] sm:$0x1] %vm107, %v106
    %s110 = scalar_lea.vmem %s0, 15
    %v111 = vld [vmem:[%s110] sm:$0x1]
    %112 = vrot.lane.b32.xlu0 %v111, 14
    %v113 = vpop.permute.xlu0 %112
    %vm114 = vcmask 261232
    %s115 = scalar_lea.vmem [#allocation0], 16
    %116 = vst.msk [vmem:[%s115] sm:$0x1] %vm114, %v113
    %s118 = sshllo.u32 0, 1
    %v120 = vld [vmem:[#allocation0] sm:%s118]
    %s121 = sshllo.u32 0, 1
    %122 = vst [vmem:[%s1] sm:%s121] %v120
    %s123 = scalar_lea.vmem [#allocation0], 8
    %v124 = vld [vmem:[%s123] sm:%s118]
    %s125 = sshllo.u32 0, 1
    %s126 = scalar_lea.vmem %s1, 1
    %127 = vst [vmem:[%s126] sm:%s125] %v124
    %s128 = scalar_lea.vmem [#allocation0], 16
    %v129 = vld [vmem:[%s128] sm:%s118]
    %s130 = sshllo.u32 0, 1
    %s131 = smul.addr 1, 2
    %s132 = scalar_lea.vmem %s1, %s131
    %133 = vst [vmem:[%s132] sm:%s130] %v129

// kernel: solo_gan_forward.4
$region0: #{solo_gan_forward.4}
  #allocation0 [shape = 'u32[]', space=smem, size = 0x4, offset = 0x4, fixed_abs, tag = 'smem constant byte address 0x4 - core index']
  #allocation1 [shape = 'u32[144,128]{1,0:T(1,128)}', space=vmem, size = 0x12000, scoped, tag = 'internal scratch']
  %s0 = inlined_call_operand.vmem [shape: f32[4,3,342], index: 0, kind: input, shape index: {}]
  %s1 = inlined_call_operand.vmem [shape: f32[4,5,1], index: 1, kind: input, shape index: {}]
  %s2 = inlined_call_operand.vmem [shape: f32[1,342], index: 2, kind: input, shape index: {}]
  %s3 = inlined_call_operand.vmem [shape: f32[1,288], index: 3, kind: input, shape index: {}]
  %s4 = inlined_call_operand.vmem [shape: bf16[16,72], index: 4, kind: input, shape index: {}]
  %s5 = inlined_call_operand.vmem [shape: f32[16,1], index: 5, kind: input, shape index: {}]
  %s6 = inlined_call_operand.vmem [shape: f32[8,8], index: 6, kind: input, shape index: {}]
  %s7 = inlined_call_operand.vmem [shape: f32[8,1], index: 7, kind: input, shape index: {}]
  %s8 = inlined_call_operand.vmem [shape: f32[4,8,288], index: 8, kind: output, shape index: {0}]
  %s9 = inlined_call_operand.vmem [shape: f32[4,8,1], index: 9, kind: output, shape index: {1}]
  %10 = xla_tuple %s8, %s9
  %s11 = sld [smem:[#allocation0]]
  $region73: #{solo_gan_forward.4} parent=0
    _
  %s13 = ssub.s32 1, %s11
  %s14 = scalar_select 0, %s13, %s11
  loop: start=0, step=1, limit=6
  $region2: #{solo_gan_forward.4} parent=0 // loop_pre_header
    _
  $region3: #{solo_gan_forward.4} parent=0 // loop_header
    %s16 = sphi 0, %s20
    %p17 = scmp.ge.s32.totalorder %s16, 6
    %s26 = sphi 0, %s28
    %s29 = sphi 0, %s26
    %s30 = sphi 0, %s29
    %s46 = sphi 0, %s30
    %s52 = sphi 0, %s54
    %s55 = sphi 0, %s52
    %s56 = sphi 0, %s55
    %s72 = sphi 0, %s56
    %s76 = sphi 0, %s76
    %s78 = sphi 0, %s76
    %s79 = sphi 0, %s78
    %s93 = sphi 0, %s79
    %s97 = sphi 0, %s97
    %s99 = sphi 0, %s97
    %s100 = sphi 0, %s99
    %s114 = sphi 0, %s100
    %s118 = sphi 0, %s118
    %s120 = sphi 0, %s118
    %s121 = sphi 0, %s120
    %s135 = sphi 0, %s121
    %s139 = sphi 0, %s139
    %s141 = sphi 0, %s139
    %s142 = sphi 0, %s141
    %s156 = sphi 0, %s142
    %s160 = sphi 0, %s160
    %s162 = sphi 0, %s160
    %s163 = sphi 0, %s162
    %s177 = sphi 0, %s163
    %s181 = sphi 0, %s181
    %s183 = sphi 0, %s181
    %s184 = sphi 0, %s183
    %s198 = sphi 0, %s184
    %s204 = sphi 0, %s206
    %s207 = sphi 0, %s204
    %s208 = sphi 0, %s207
    %s224 = sphi 0, %s208
    %s230 = sphi 0, %s232
    %s233 = sphi 0, %s230
    %s234 = sphi 0, %s233
    %s250 = sphi 0, %s234
  $region4: #{solo_gan_forward.4} parent=0 // loop_header_branch
    %19 = sbr.rel (%p17) target = $region8
  $region5: #{solo_gan_forward.4} parent=0 // loop_body
    %s21 = ssub.s32 %s16, 1
    %s22 = ssub.s32 %s16, 2
    %s23 = sadd.s32 %s16, 1
    %s24 = ssub.s32 %s16, %s23
    %p25 = scmp.eq.s32.totalorder %s24, 0
    %s27 = sadd.s32 %s26, 1
    %s28 = scalar_select %p25, %s26, %s27
    %p31 = pneg %p25
    %p32 = scmp.eq.s32.totalorder %s16, 3
    %p33 = por %p31, %p32
    %p34 = scmp.ne.s32.totalorder %s26, %s29
    %p35 = scmp.eq.s32.totalorder %s16, 0
    %p36 = por %p34, %p35
    %p37 = scmp.ne.s32.totalorder %s26, %s29
    %p38 = scmp.eq.s32.totalorder %s21, 3
    %p39 = por %p37, %p38
    %p40 = scmp.ne.s32.totalorder %s29, %s30
    %p41 = scmp.eq.s32.totalorder %s21, 0
    %p42 = por %p40, %p41
    %p43 = scmp.ne.s32.totalorder %s29, %s30
    %p44 = scmp.eq.s32.totalorder %s22, 3
    %p45 = por %p43, %p44
    %p47 = scmp.ne.s32.totalorder %s30, %s46
    %p48 = scmp.eq.s32.totalorder %s22, 0
    %p49 = por %p47, %p48
    %s50 = ssub.s32 %s16, %s23
    %p51 = scmp.eq.s32.totalorder %s50, 0
    %s53 = sadd.s32 %s52, 1
    %s54 = scalar_select %p51, %s52, %s53
    %p57 = pneg %p51
    %p58 = scmp.eq.s32.totalorder %s16, 3
    %p59 = por %p57, %p58
    %p60 = scmp.ne.s32.totalorder %s52, %s55
    %p61 = scmp.eq.s32.totalorder %s16, 0
    %p62 = por %p60, %p61
    %p63 = scmp.ne.s32.totalorder %s52, %s55
    %p64 = scmp.eq.s32.totalorder %s21, 3
    %p65 = por %p63, %p64
    %p66 = scmp.ne.s32.totalorder %s55, %s56
    %p67 = scmp.eq.s32.totalorder %s21, 0
    %p68 = por %p66, %p67
    %p69 = scmp.ne.s32.totalorder %s55, %s56
    %p70 = scmp.eq.s32.totalorder %s22, 3
    %p71 = por %p69, %p70
    %p73 = scmp.ne.s32.totalorder %s56, %s72
    %p74 = scmp.eq.s32.totalorder %s22, 0
    %p75 = por %p73, %p74
    %s77 = sadd.s32 %s76, 1
    %p80 = scmp.eq.s32.totalorder %s16, 3
    %p81 = scmp.ne.s32.totalorder %s76, %s78
    %p82 = scmp.eq.s32.totalorder %s16, 0
    %p83 = por %p81, %p82
    %p84 = scmp.ne.s32.totalorder %s76, %s78
    %p85 = scmp.eq.s32.totalorder %s21, 3
    %p86 = por %p84, %p85
    %p87 = scmp.ne.s32.totalorder %s78, %s79
    %p88 = scmp.eq.s32.totalorder %s21, 0
    %p89 = por %p87, %p88
    %p90 = scmp.ne.s32.totalorder %s78, %s79
    %p91 = scmp.eq.s32.totalorder %s22, 3
    %p92 = por %p90, %p91
    %p94 = scmp.ne.s32.totalorder %s79, %s93
    %p95 = scmp.eq.s32.totalorder %s22, 0
    %p96 = por %p94, %p95
    %s98 = sadd.s32 %s97, 1
    %p101 = scmp.eq.s32.totalorder %s16, 3
    %p102 = scmp.ne.s32.totalorder %s97, %s99
    %p103 = scmp.eq.s32.totalorder %s16, 0
    %p104 = por %p102, %p103
    %p105 = scmp.ne.s32.totalorder %s97, %s99
    %p106 = scmp.eq.s32.totalorder %s21, 3
    %p107 = por %p105, %p106
    %p108 = scmp.ne.s32.totalorder %s99, %s100
    %p109 = scmp.eq.s32.totalorder %s21, 0
    %p110 = por %p108, %p109
    %p111 = scmp.ne.s32.totalorder %s99, %s100
    %p112 = scmp.eq.s32.totalorder %s22, 3
    %p113 = por %p111, %p112
    %p115 = scmp.ne.s32.totalorder %s100, %s114
    %p116 = scmp.eq.s32.totalorder %s22, 0
    %p117 = por %p115, %p116
    %s119 = sadd.s32 %s118, 1
    %p122 = scmp.eq.s32.totalorder %s16, 3
    %p123 = scmp.ne.s32.totalorder %s118, %s120
    %p124 = scmp.eq.s32.totalorder %s16, 0
    %p125 = por %p123, %p124
    %p126 = scmp.ne.s32.totalorder %s118, %s120
    %p127 = scmp.eq.s32.totalorder %s21, 3
    %p128 = por %p126, %p127
    %p129 = scmp.ne.s32.totalorder %s120, %s121
    %p130 = scmp.eq.s32.totalorder %s21, 0
    %p131 = por %p129, %p130
    %p132 = scmp.ne.s32.totalorder %s120, %s121
    %p133 = scmp.eq.s32.totalorder %s22, 3
    %p134 = por %p132, %p133
    %p136 = scmp.ne.s32.totalorder %s121, %s135
    %p137 = scmp.eq.s32.totalorder %s22, 0
    %p138 = por %p136, %p137
    %s140 = sadd.s32 %s139, 1
    %p143 = scmp.eq.s32.totalorder %s16, 3
    %p144 = scmp.ne.s32.totalorder %s139, %s141
    %p145 = scmp.eq.s32.totalorder %s16, 0
    %p146 = por %p144, %p145
    %p147 = scmp.ne.s32.totalorder %s139, %s141
    %p148 = scmp.eq.s32.totalorder %s21, 3
    %p149 = por %p147, %p148
    %p150 = scmp.ne.s32.totalorder %s141, %s142
    %p151 = scmp.eq.s32.totalorder %s21, 0
    %p152 = por %p150, %p151
    %p153 = scmp.ne.s32.totalorder %s141, %s142
    %p154 = scmp.eq.s32.totalorder %s22, 3
    %p155 = por %p153, %p154
    %p157 = scmp.ne.s32.totalorder %s142, %s156
    %p158 = scmp.eq.s32.totalorder %s22, 0
    %p159 = por %p157, %p158
    %s161 = sadd.s32 %s160, 1
    %p164 = scmp.eq.s32.totalorder %s16, 3
    %p165 = scmp.ne.s32.totalorder %s160, %s162
    %p166 = scmp.eq.s32.totalorder %s16, 0
    %p167 = por %p165, %p166
    %p168 = scmp.ne.s32.totalorder %s160, %s162
    %p169 = scmp.eq.s32.totalorder %s21, 3
    %p170 = por %p168, %p169
    %p171 = scmp.ne.s32.totalorder %s162, %s163
    %p172 = scmp.eq.s32.totalorder %s21, 0
    %p173 = por %p171, %p172
    %p174 = scmp.ne.s32.totalorder %s162, %s163
    %p175 = scmp.eq.s32.totalorder %s22, 3
    %p176 = por %p174, %p175
    %p178 = scmp.ne.s32.totalorder %s163, %s177
    %p179 = scmp.eq.s32.totalorder %s22, 0
    %p180 = por %p178, %p179
    %s182 = sadd.s32 %s181, 1
    %p185 = scmp.eq.s32.totalorder %s16, 3
    %p186 = scmp.ne.s32.totalorder %s181, %s183
    %p187 = scmp.eq.s32.totalorder %s16, 0
    %p188 = por %p186, %p187
    %p189 = scmp.ne.s32.totalorder %s181, %s183
    %p190 = scmp.eq.s32.totalorder %s21, 3
    %p191 = por %p189, %p190
    %p192 = scmp.ne.s32.totalorder %s183, %s184
    %p193 = scmp.eq.s32.totalorder %s21, 0
    %p194 = por %p192, %p193
    %p195 = scmp.ne.s32.totalorder %s183, %s184
    %p196 = scmp.eq.s32.totalorder %s22, 3
    %p197 = por %p195, %p196
    %p199 = scmp.ne.s32.totalorder %s184, %s198
    %p200 = scmp.eq.s32.totalorder %s22, 0
    %p201 = por %p199, %p200
    %s202 = ssub.s32 %s16, %s23
    %p203 = scmp.eq.s32.totalorder %s202, 0
    %s205 = sadd.s32 %s204, 1
    %s206 = scalar_select %p203, %s204, %s205
    %p209 = pneg %p203
    %p210 = scmp.eq.s32.totalorder %s16, 3
    %p211 = por %p209, %p210
    %p212 = scmp.ne.s32.totalorder %s204, %s207
    %p213 = scmp.eq.s32.totalorder %s16, 0
    %p214 = por %p212, %p213
    %p215 = scmp.ne.s32.totalorder %s204, %s207
    %p216 = scmp.eq.s32.totalorder %s21, 3
    %p217 = por %p215, %p216
    %p218 = scmp.ne.s32.totalorder %s207, %s208
    %p219 = scmp.eq.s32.totalorder %s21, 0
    %p220 = por %p218, %p219
    %p221 = scmp.ne.s32.totalorder %s207, %s208
    %p222 = scmp.eq.s32.totalorder %s22, 3
    %p223 = por %p221, %p222
    %p225 = scmp.ne.s32.totalorder %s208, %s224
    %p226 = scmp.eq.s32.totalorder %s22, 0
    %p227 = por %p225, %p226
    %s228 = ssub.s32 %s16, %s23
    %p229 = scmp.eq.s32.totalorder %s228, 0
    %s231 = sadd.s32 %s230, 1
    %s232 = scalar_select %p229, %s230, %s231
    %p235 = pneg %p229
    %p236 = scmp.eq.s32.totalorder %s16, 3
    %p237 = por %p235, %p236
    %p238 = scmp.ne.s32.totalorder %s230, %s233
    %p239 = scmp.eq.s32.totalorder %s16, 0
    %p240 = por %p238, %p239
    %p241 = scmp.ne.s32.totalorder %s230, %s233
    %p242 = scmp.eq.s32.totalorder %s21, 3
    %p243 = por %p241, %p242
    %p244 = scmp.ne.s32.totalorder %s233, %s234
    %p245 = scmp.eq.s32.totalorder %s21, 0
    %p246 = por %p244, %p245
    %p247 = scmp.ne.s32.totalorder %s233, %s234
    %p248 = scmp.eq.s32.totalorder %s22, 3
    %p249 = por %p247, %p248
    %p251 = scmp.ne.s32.totalorder %s234, %s250
    %p252 = scmp.eq.s32.totalorder %s22, 0
    %p253 = por %p251, %p252
    %p254 = scmp.le.s32.totalorder 1, %s16
    %p255 = scmp.lt.s32.totalorder %s16, 5
    %p256 = pnand %p254, %p255
    %p257 = pneg %p256
    // Predicated region
    $region9: #{solo_gan_forward.4} parent=5 // pred_check
      _
    $region10: #{solo_gan_forward.4} parent=5 // pred_check_branch
      %259 = sbr.rel (%p256) target = $region12
    $region11: #{solo_gan_forward.4} parent=5 // pred_region
      %s260 = ssub.s32 %s16, 1
      // Predicated region
      $region13: #{solo_gan_forward.4} parent=11 // pred_check
        %p261 = pneg %p89
      $region14: #{solo_gan_forward.4} parent=11 // pred_check_branch
        %263 = sbr.rel (%p261) target = $region16
      $region15: #{solo_gan_forward.4} parent=11 // pred_region
        _
      $region16: #{solo_gan_forward.4} parent=11 // pred_fallthru
        _
      // Predicated region
      $region17: #{solo_gan_forward.4} parent=11 // pred_check
        %p264 = pneg %p110
      $region18: #{solo_gan_forward.4} parent=11 // pred_check_branch
        %266 = sbr.rel (%p264) target = $region20
      $region19: #{solo_gan_forward.4} parent=11 // pred_region
        _
      $region20: #{solo_gan_forward.4} parent=11 // pred_fallthru
        _
      // Predicated region
      $region21: #{solo_gan_forward.4} parent=11 // pred_check
        %p267 = pneg %p131
      $region22: #{solo_gan_forward.4} parent=11 // pred_check_branch
        %269 = sbr.rel (%p267) target = $region24
      $region23: #{solo_gan_forward.4} parent=11 // pred_region
        _
      $region24: #{solo_gan_forward.4} parent=11 // pred_fallthru
        _
      // Predicated region
      $region25: #{solo_gan_forward.4} parent=11 // pred_check
        %p270 = pneg %p152
      $region26: #{solo_gan_forward.4} parent=11 // pred_check_branch
        %272 = sbr.rel (%p270) target = $region28
      $region27: #{solo_gan_forward.4} parent=11 // pred_region
        _
      $region28: #{solo_gan_forward.4} parent=11 // pred_fallthru
        _
      // Predicated region
      $region29: #{solo_gan_forward.4} parent=11 // pred_check
        %p273 = pneg %p173
      $region30: #{solo_gan_forward.4} parent=11 // pred_check_branch
        %275 = sbr.rel (%p273) target = $region32
      $region31: #{solo_gan_forward.4} parent=11 // pred_region
        _
      $region32: #{solo_gan_forward.4} parent=11 // pred_fallthru
        _
      // Predicated region
      $region33: #{solo_gan_forward.4} parent=11 // pred_check
        %p276 = pneg %p194
      $region34: #{solo_gan_forward.4} parent=11 // pred_check_branch
        %278 = sbr.rel (%p276) target = $region36
      $region35: #{solo_gan_forward.4} parent=11 // pred_region
        _
      $region36: #{solo_gan_forward.4} parent=11 // pred_fallthru
        _
    $region12: #{solo_gan_forward.4} parent=5 // pred_fallthru
      _
    %p279 = scmp.lt.s32.totalorder %s16, 4
    // Predicated region
    $region37: #{solo_gan_forward.4} parent=5 // pred_check
      %p280 = pneg %p279
    $region38: #{solo_gan_forward.4} parent=5 // pred_check_branch
      %282 = sbr.rel (%p280) target = $region40
    $region39: #{solo_gan_forward.4} parent=5 // pred_region
      // Predicated region
      $region41: #{solo_gan_forward.4} parent=39 // pred_check
        %p283 = pneg %p36
      $region42: #{solo_gan_forward.4} parent=39 // pred_check_branch
        %285 = sbr.rel (%p283) target = $region44
      $region43: #{solo_gan_forward.4} parent=39 // pred_region
        %p286 = scmp.lt.s32.totalorder %s16, 3
        %s287 = scalar_select %p286, %s16, 3
        %s288 = smul.addr %s287, 3
        %s289 = smul.addr %s288, 4
        %s290 = scalar_lea.vmem %s0, %s289
      $region44: #{solo_gan_forward.4} parent=39 // pred_fallthru
        _
      // Predicated region
      $region45: #{solo_gan_forward.4} parent=39 // pred_check
        %p291 = pneg %p62
      $region46: #{solo_gan_forward.4} parent=39 // pred_check_branch
        %293 = sbr.rel (%p291) target = $region48
      $region47: #{solo_gan_forward.4} parent=39 // pred_region
        %p294 = scmp.lt.s32.totalorder %s16, 3
        %s295 = scalar_select %p294, %s16, 3
        %s296 = smul.addr %s295, 8
        %s297 = scalar_lea.vmem %s1, %s296
      $region48: #{solo_gan_forward.4} parent=39 // pred_fallthru
        _
    $region40: #{solo_gan_forward.4} parent=5 // pred_fallthru
      _
    %p298 = scmp.le.s32.totalorder 1, %s16
    %p299 = scmp.lt.s32.totalorder %s16, 5
    %p300 = pnand %p298, %p299
    %p301 = pneg %p300
    // Predicated region
    $region49: #{solo_gan_forward.4} parent=5 // pred_check
      _
    $region50: #{solo_gan_forward.4} parent=5 // pred_check_branch
      %303 = sbr.rel (%p300) target = $region52
    $region51: #{solo_gan_forward.4} parent=5 // pred_region
      %s304 = ssub.s32 %s16, 1
      %p305 = scmp.lt.s32.totalorder %s21, 3
      %s306 = scalar_select %p305, %s21, 3
      %s307 = smul.addr %s306, 3
      %s308 = smul.addr %s307, 4
      %s309 = scalar_lea.vmem %s0, %s308
      %p310 = pneg %p42
      %p311 = pneg %p39
      %p312 = scmp.lt.s32.totalorder %s21, 3
      %s313 = scalar_select %p312, %s21, 3
      %s314 = smul.addr %s313, 8
      %s315 = scalar_lea.vmem %s1, %s314
      %p316 = pneg %p68
      %p317 = pneg %p65
      %p318 = pneg %p89
      %p319 = pneg %p86
      %p320 = pneg %p110
      %p321 = pneg %p107
      %p322 = pneg %p131
      %p323 = pneg %p128
      %p324 = pneg %p152
      %p325 = pneg %p149
      %p326 = pneg %p173
      %p327 = pneg %p170
      %p328 = pneg %p194
      %p329 = pneg %p191
      %p330 = pneg %p220
      %p331 = pneg %p217
      %p332 = scmp.lt.s32.totalorder %s21, 3
      %s333 = scalar_select %p332, %s21, 3
      %s334 = smul.addr %s333, 3
      %s335 = smul.addr %s334, 8
      %s336 = scalar_lea.vmem %s8, %s335
      %p337 = pneg %p246
      %p338 = pneg %p243
      %p339 = scmp.lt.s32.totalorder %s21, 3
      %s340 = scalar_select %p339, %s21, 3
      %s341 = smul.addr %s340, 8
      %s342 = scalar_lea.vmem %s9, %s341
      %p343 = scmp.lt.s32.totalorder %s21, 3
      %s344 = scalar_select %p343, %s21, 3
      %s345 = smul.addr %s344, 3
      %s346 = smul.addr %s345, 4
      %s347 = scalar_lea.vmem %s0, %s346
      %p348 = scmp.lt.s32.totalorder %s21, 3
      %s349 = scalar_select %p348, %s21, 3
      %s350 = smul.addr %s349, 8
      %s351 = scalar_lea.vmem %s1, %s350
      %p352 = scmp.lt.s32.totalorder %s21, 3
      %s353 = scalar_select %p352, %s21, 3
      %s354 = smul.addr %s353, 3
      %s355 = smul.addr %s354, 8
      %s356 = scalar_lea.vmem %s8, %s355
      %p357 = scmp.lt.s32.totalorder %s21, 3
      %s358 = scalar_select %p357, %s21, 3
      %s359 = smul.addr %s358, 8
      %s360 = scalar_lea.vmem %s9, %s359
      %v362 = vld [vmem:[%s351] sm:$0x1f]
      %v363 = vld [vmem:[%s2] sm:$0x7]
      %365 = vset.pattern.permute.xlu0 0
      %366 = vperm.xlu0 %365, %v362
      %v367 = vpop.permute.xlu0 %366
      %v370 = vlaneseq
      %v371 = vshrl.u32 %v370, 7
      %v372 = vsub.s32 0, %v371
      %v373 = vrot.slane %v363, %v372
      %v374 = vlaneseq
      %v375 = vshrl.u32 %v374, 7
      %v376 = vsub.s32 1, %v375
      %v377 = vrot.slane %v363, %v376
      %v378 = vlaneseq
      %v379 = vshrl.u32 %v378, 7
      %v380 = vsub.s32 2, %v379
      %v381 = vrot.slane %v363, %v380
      %v385 = vmul.f32 %v367, %v373
      %v386 = vmul.f32 %v367, %v377
      %v387 = vmul.f32 %v367, %v381
      %v388 = vld [vmem:[%s347] sm:$0x77]
      %v389 = vld [vmem:[%s347 + $0x8] sm:$0x7]
      %v391 = vcombine.high %v388, %v388
      %v396 = vrot.slane %v385, 5
      %v397 = vrot.slane %v386, 5
      %v398 = vrot.slane %v387, 5
      %vm402 = vcmask 1042432
      %v403 = vsel %vm402, %v388, %v396
      %v404 = vsel %vm402, %v391, %v397
      %v405 = vsel %vm402, %v389, %v398
      %409 = vrot.lane.b32.xlu0 %v403, 127
      %v410 = vpop.permute.xlu0 %409
      %411 = vrot.lane.b32.xlu0 %v404, 127
      %v412 = vpop.permute.xlu0 %411
      %413 = vrot.lane.b32.xlu0 %v405, 127
      %v414 = vpop.permute.xlu0 %413
      %vm415 = vcmask 1039360
      %v416 = vsel %vm415, %v410, %v412
      %v417 = vsel %vm415, %v412, %v414
      %421 = vrot.lane.b32.xlu0 %v403, 126
      %v422 = vpop.permute.xlu0 %421
      %423 = vrot.lane.b32.xlu0 %v404, 126
      %v424 = vpop.permute.xlu0 %423
      %425 = vrot.lane.b32.xlu0 %v405, 126
      %v426 = vpop.permute.xlu0 %425
      %vm427 = vcmask 1031168
      %v428 = vsel %vm427, %v422, %v424
      %v429 = vsel %vm427, %v424, %v426
      %433 = vrot.lane.b32.xlu0 %v403, 110
      %v434 = vpop.permute.xlu0 %433
      %435 = vrot.lane.b32.xlu0 %v404, 110
      %v436 = vpop.permute.xlu0 %435
      %437 = vrot.lane.b32.xlu0 %v405, 110
      %v438 = vpop.permute.xlu0 %437
      %vm439 = vcmask 900096
      %v440 = vsel %vm439, %v434, %v436
      %v441 = vsel %vm439, %v436, %v438
      %445 = vrot.lane.b32.xlu0 %v403, 109
      %v446 = vpop.permute.xlu0 %445
      %447 = vrot.lane.b32.xlu0 %v404, 109
      %v448 = vpop.permute.xlu0 %447
      %449 = vrot.lane.b32.xlu0 %v405, 109
      %v450 = vpop.permute.xlu0 %449
      %vm451 = vcmask 891904
      %v452 = vsel %vm451, %v446, %v448
      %v453 = vsel %vm451, %v448, %v450
      %457 = vrot.lane.b32.xlu0 %v403, 108
      %v458 = vpop.permute.xlu0 %457
      %459 = vrot.lane.b32.xlu0 %v404, 108
      %v460 = vpop.permute.xlu0 %459
      %461 = vrot.lane.b32.xlu0 %v405, 108
      %v462 = vpop.permute.xlu0 %461
      %vm463 = vcmask 883712
      %v464 = vsel %vm463, %v458, %v460
      %v465 = vsel %vm463, %v460, %v462
      %469 = vrot.lane.b32.xlu0 %v403, 92
      %v470 = vpop.permute.xlu0 %469
      %471 = vrot.lane.b32.xlu0 %v404, 92
      %v472 = vpop.permute.xlu0 %471
      %473 = vrot.lane.b32.xlu0 %v405, 92
      %v474 = vpop.permute.xlu0 %473
      %vm475 = vcmask 752640
      %v476 = vsel %vm475, %v470, %v472
      %v477 = vsel %vm475, %v472, %v474
      %481 = vrot.lane.b32.xlu0 %v403, 91
      %v482 = vpop.permute.xlu0 %481
      %483 = vrot.lane.b32.xlu0 %v404, 91
      %v484 = vpop.permute.xlu0 %483
      %485 = vrot.lane.b32.xlu0 %v405, 91
      %v486 = vpop.permute.xlu0 %485
      %vm487 = vcmask 744448
      %v488 = vsel %vm487, %v482, %v484
      %v489 = vsel %vm487, %v484, %v486
      %493 = vrot.lane.b32.xlu0 %v403, 90
      %v494 = vpop.permute.xlu0 %493
      %495 = vrot.lane.b32.xlu0 %v404, 90
      %v496 = vpop.permute.xlu0 %495
      %497 = vrot.lane.b32.xlu0 %v405, 90
      %v498 = vpop.permute.xlu0 %497
      %vm499 = vcmask 736256
      %v500 = vsel %vm499, %v494, %v496
      %v501 = vsel %vm499, %v496, %v498
      %v505 = vld [vmem:[%s4] sm:$0xf]
      %v506 = vld [vmem:[%s4 + $0x4] sm:$0xf]
      %v507 = vpack.c.bf16 %v416, %v403
      %v508 = vpack.c.bf16 %v417, %v404
      %v509 = vpack.c.bf16 %v414, %v405
      %v510 = vpack.c.bf16 %v440, %v428
      %v511 = vpack.c.bf16 %v441, %v429
      %v512 = vpack.c.bf16 %v438, %v426
      %v513 = vpack.c.bf16 %v464, %v452
      %v514 = vpack.c.bf16 %v465, %v453
      %v515 = vpack.c.bf16 %v462, %v450
      %v516 = vpack.c.bf16 %v488, %v476
      %v517 = vpack.c.bf16 %v489, %v477
      %v518 = vpack.c.bf16 %v486, %v474
      %v519 = vpack.c.bf16 %v500, %v500
      %v520 = vpack.c.bf16 %v501, %v501
      %v521 = vpack.c.bf16 %v498, %v498
      %v522 = vld [vmem:[%s5] sm:$0xff]
      %v523 = vld [vmem:[%s5 + $0x8] sm:$0xff]
      %525 = vset.pattern.permute.xlu0 0
      %526 = vperm.xlu0 %525, %v522
      %v527 = vpop.permute.xlu0 %526
      %530 = vset.pattern.permute.xlu0 0
      %531 = vperm.xlu0 %530, %v523
      %v532 = vpop.permute.xlu0 %531
      %v536 = vunpack.c.l.b16 %v505
      %v537 = vunpack.c.l.b16 %v506
      %v538 = vpack.c.b16 %v537, %v536
      %vm539 = vcmask 588800
      %v541 = vsel %vm539, %v538, 0
      %vm543 = vcmask 1043456
      %v545 = vsel %vm543, %v519, 0
      %v548 = vsel %vm543, %v520, 0
      %v551 = vsel %vm543, %v521, 0
      %553 = vmatprep.subr.bf16.mxu0 %v508
      %554 = vmatpush1.bf16.msra.mxu0 %v507
      %555 = vmatprep.subr.bf16.mxu0 %v511
      %556 = vmatpush1.bf16.msra.mxu0 %v510
      %557 = vmatprep.subr.bf16.mxu0 %v514
      %558 = vmatpush1.bf16.msra.mxu0 %v513
      %559 = vmatprep.subr.bf16.mxu0 %v517
      %560 = vmatpush1.bf16.msra.mxu0 %v516
      %561 = vmatprep.subr.bf16.mxu0 %v548
      %562 = vmatpush1.bf16.msra.mxu0 %v545
      %563 = vmatprep.subr.bf16.mxu0 0
      %564 = vmatpush1.bf16.msra.mxu0 0
      %565 = vmatprep.subr.bf16.mxu0 0
      %566 = vmatpush1.bf16.msra.mxu0 0
      %567 = vmatprep.subr.bf16.mxu0 0
      %568 = vmatpush1.bf16.msra.mxu0 0
      %569 = vmatprep.subr.bf16.mxu0 0
      %570 = vmatpush1.bf16.msra.mxu0 0
      %571 = vmatprep.subr.bf16.mxu0 0
      %572 = vmatpush1.bf16.msra.mxu0 0
      %573 = vmatprep.subr.bf16.mxu0 0
      %574 = vmatpush1.bf16.msra.mxu0 0
      %575 = vmatprep.subr.bf16.mxu0 0
      %576 = vmatpush1.bf16.msra.mxu0 0
      %577 = vmatprep.subr.bf16.mxu0 0
      %578 = vmatpush1.bf16.msra.mxu0 0
      %579 = vmatprep.subr.bf16.mxu0 0
      %580 = vmatpush1.bf16.msra.mxu0 0
      %581 = vmatprep.subr.bf16.mxu0 0
      %582 = vmatpush1.bf16.msra.mxu0 0
      %583 = vmatprep.subr.bf16.mxu0 0
      %584 = vmatpush1.bf16.msra.mxu0 0
      %585 = vmatprep.mubr.bf16.mxu0 0
      %586 = vmatmul.mubr.bf16.gmra.mrb[0].mxu0 %v541
      %v587 = vpop.f32.mrb[0].mxu0
      %v588 = vadd.f32 %v527, %v587
      %v589 = vpop.f32.mrb[0].mxu0
      %v590 = vadd.f32 %v527, %v589
      %v591 = vpop.f32.mrb[0].mxu0
      %v592 = vadd.f32 %v532, %v591
      %v593 = vpop.f32.mrb[0].mxu0
      %v594 = vadd.f32 %v532, %v593
      %595 = vdwg.mxu0
      %596 = vmatprep.subr.bf16.mxu0 0
      %597 = vmatpush1.bf16.msra.mxu0 %v509
      %598 = vmatprep.subr.bf16.mxu0 0
      %599 = vmatpush1.bf16.msra.mxu0 %v512
      %600 = vmatprep.subr.bf16.mxu0 0
      %601 = vmatpush1.bf16.msra.mxu0 %v515
      %602 = vmatprep.subr.bf16.mxu0 0
      %603 = vmatpush1.bf16.msra.mxu0 %v518
      %604 = vmatprep.subr.bf16.mxu0 0
      %605 = vmatpush1.bf16.msra.mxu0 %v551
      %606 = vmatprep.subr.bf16.mxu0 0
      %607 = vmatpush1.bf16.msra.mxu0 0
      %608 = vmatprep.subr.bf16.mxu0 0
      %609 = vmatpush1.bf16.msra.mxu0 0
      %610 = vmatprep.subr.bf16.mxu0 0
      %611 = vmatpush1.bf16.msra.mxu0 0
      %612 = vmatprep.subr.bf16.mxu0 0
      %613 = vmatpush1.bf16.msra.mxu0 0
      %614 = vmatprep.subr.bf16.mxu0 0
      %615 = vmatpush1.bf16.msra.mxu0 0
      %616 = vmatprep.subr.bf16.mxu0 0
      %617 = vmatpush1.bf16.msra.mxu0 0
      %618 = vmatprep.subr.bf16.mxu0 0
      %619 = vmatpush1.bf16.msra.mxu0 0
      %620 = vmatprep.subr.bf16.mxu0 0
      %621 = vmatpush1.bf16.msra.mxu0 0
      %622 = vmatprep.subr.bf16.mxu0 0
      %623 = vmatpush1.bf16.msra.mxu0 0
      %624 = vmatprep.subr.bf16.mxu0 0
      %625 = vmatpush1.bf16.msra.mxu0 0
      %626 = vmatprep.subr.bf16.mxu0 0
      %627 = vmatpush1.bf16.msra.mxu0 0
      %628 = vmatprep.mubr.bf16.mxu0 0
      %629 = vmatmul.mubr.bf16.gmra.mrb[0].mxu0 %v541
      %v630 = vpop.f32.mrb[0].mxu0
      %v631 = vadd.f32 %v527, %v630
      %v632 = vpop.f32.mrb[0].mxu0
      %v633 = vpop.f32.mrb[0].mxu0
      %v634 = vadd.f32 %v532, %v633
      %v635 = vpop.f32.mrb[0].mxu0
      %636 = vdwg.mxu0
      %v637 = vmax.f32 %v588, 0.0
      %v638 = vmax.f32 %v590, 0.0
      %v639 = vmax.f32 %v631, 0.0
      %v640 = vmax.f32 %v592, 0.0
      %v641 = vmax.f32 %v594, 0.0
      %v642 = vmax.f32 %v634, 0.0
      %v643 = vld [vmem:[%s3] sm:$0x7]
      %v645 = vlaneseq
      %v646 = vshrl.u32 %v645, 7
      %v647 = vsub.s32 0, %v646
      %v648 = vrot.slane %v643, %v647
      %v649 = vlaneseq
      %v650 = vshrl.u32 %v649, 7
      %v651 = vsub.s32 1, %v650
      %v652 = vrot.slane %v643, %v651
      %v653 = vlaneseq
      %v654 = vshrl.u32 %v653, 7
      %v655 = vsub.s32 2, %v654
      %v656 = vrot.slane %v643, %v655
      %v660 = vmul.f32 %v637, %v648
      %v661 = vmul.f32 %v638, %v652
      %v662 = vmul.f32 %v639, %v656
      %v663 = vmul.f32 %v640, %v648
      %v664 = vmul.f32 %v641, %v652
      %v665 = vmul.f32 %v642, %v656
      %666 = vst [vmem:[%s356] sm:$0xff] %v660
      %667 = vst [vmem:[%s356 + $0x8] sm:$0xff] %v661
      %vm668 = vcmask 261120
      %669 = vst.msk [vmem:[%s356 + $0x10] sm:$0xff] %vm668, %v662
      %v670 = vld [vmem:[%s6] sm:$0xff]
      %vm671 = vcmask 64512
      %v673 = vsel %vm671, %v670, 0
      %675 = vmatprep.subr.mxu0 %v664
      %676 = vmatpush1.msra.mxu0 %v663
      %677 = vmatprep.subr.mxu0 0.0
      %678 = vmatpush1.msra.mxu0 0.0
      %679 = vmatprep.subr.mxu0 0.0
      %680 = vmatpush1.msra.mxu0 0.0
      %681 = vmatprep.subr.mxu0 0.0
      %682 = vmatpush1.msra.mxu0 0.0
      %683 = vmatprep.subr.mxu0 0.0
      %684 = vmatpush1.msra.mxu0 0.0
      %685 = vmatprep.subr.mxu0 0.0
      %686 = vmatpush1.msra.mxu0 0.0
      %687 = vmatprep.subr.mxu0 0.0
      %688 = vmatpush1.msra.mxu0 0.0
      %689 = vmatprep.subr.mxu0 0.0
      %690 = vmatpush1.msra.mxu0 0.0
      %691 = vmatprep.subr.mxu0 0.0
      %692 = vmatpush1.msra.mxu0 0.0
      %693 = vmatprep.subr.mxu0 0.0
      %694 = vmatpush1.msra.mxu0 0.0
      %695 = vmatprep.subr.mxu0 0.0
      %696 = vmatpush1.msra.mxu0 0.0
      %697 = vmatprep.subr.mxu0 0.0
      %698 = vmatpush1.msra.mxu0 0.0
      %699 = vmatprep.subr.mxu0 0.0
      %700 = vmatpush1.msra.mxu0 0.0
      %701 = vmatprep.subr.mxu0 0.0
      %702 = vmatpush1.msra.mxu0 0.0
      %703 = vmatprep.subr.mxu0 0.0
      %704 = vmatpush1.msra.mxu0 0.0
      %705 = vmatprep.subr.mxu0 0.0
      %706 = vmatpush1.msra.mxu0 0.0
      %707 = vmatprep.subr.mxu0 0.0
      %708 = vmatpush1.msra.mxu0 0.0
      %709 = vmatprep.subr.mxu0 0.0
      %710 = vmatpush1.msra.mxu0 0.0
      %711 = vmatprep.subr.mxu0 0.0
      %712 = vmatpush1.msra.mxu0 0.0
      %713 = vmatprep.subr.mxu0 0.0
      %714 = vmatpush1.msra.mxu0 0.0
      %715 = vmatprep.subr.mxu0 0.0
      %716 = vmatpush1.msra.mxu0 0.0
      %717 = vmatprep.subr.mxu0 0.0
      %718 = vmatpush1.msra.mxu0 0.0
      %719 = vmatprep.subr.mxu0 0.0
      %720 = vmatpush1.msra.mxu0 0.0
      %721 = vmatprep.subr.mxu0 0.0
      %722 = vmatpush1.msra.mxu0 0.0
      %723 = vmatprep.subr.mxu0 0.0
      %724 = vmatpush1.msra.mxu0 0.0
      %725 = vmatprep.subr.mxu0 0.0
      %726 = vmatpush1.msra.mxu0 0.0
      %727 = vmatprep.subr.mxu0 0.0
      %728 = vmatpush1.msra.mxu0 0.0
      %729 = vmatprep.subr.mxu0 0.0
      %730 = vmatpush1.msra.mxu0 0.0
      %731 = vmatprep.subr.mxu0 0.0
      %732 = vmatpush1.msra.mxu0 0.0
      %733 = vmatprep.subr.mxu0 0.0
      %734 = vmatpush1.msra.mxu0 0.0
      %735 = vmatprep.subr.mxu0 0.0
      %736 = vmatpush1.msra.mxu0 0.0
      %737 = vmatprep.subr.mxu0 0.0
      %738 = vmatpush1.msra.mxu0 0.0
      %739 = vmatprep.mubr.f32.mxu0 0.0
      %740 = vmatmul.mubr.f32.gmra.mrb[0].mxu0 %v673
      %v741 = vpop.f32.mrb[0].mxu0
      %v742 = vadd.f32 0.0, %v741
      %v743 = vpop.f32.mrb[0].mxu0
      %v744 = vadd.f32 0.0, %v743
      %745 = vdwg.mxu0
      %746 = vmatprep.subr.mxu0 0.0
      %747 = vmatpush1.msra.mxu0 %v665
      %748 = vmatprep.subr.mxu0 0.0
      %749 = vmatpush1.msra.mxu0 0.0
      %750 = vmatprep.subr.mxu0 0.0
      %751 = vmatpush1.msra.mxu0 0.0
      %752 = vmatprep.subr.mxu0 0.0
      %753 = vmatpush1.msra.mxu0 0.0
      %754 = vmatprep.subr.mxu0 0.0
      %755 = vmatpush1.msra.mxu0 0.0
      %756 = vmatprep.subr.mxu0 0.0
      %757 = vmatpush1.msra.mxu0 0.0
      %758 = vmatprep.subr.mxu0 0.0
      %759 = vmatpush1.msra.mxu0 0.0
      %760 = vmatprep.subr.mxu0 0.0
      %761 = vmatpush1.msra.mxu0 0.0
      %762 = vmatprep.subr.mxu0 0.0
      %763 = vmatpush1.msra.mxu0 0.0
      %764 = vmatprep.subr.mxu0 0.0
      %765 = vmatpush1.msra.mxu0 0.0
      %766 = vmatprep.subr.mxu0 0.0
      %767 = vmatpush1.msra.mxu0 0.0
      %768 = vmatprep.subr.mxu0 0.0
      %769 = vmatpush1.msra.mxu0 0.0
      %770 = vmatprep.subr.mxu0 0.0
      %771 = vmatpush1.msra.mxu0 0.0
      %772 = vmatprep.subr.mxu0 0.0
      %773 = vmatpush1.msra.mxu0 0.0
      %774 = vmatprep.subr.mxu0 0.0
      %775 = vmatpush1.msra.mxu0 0.0
      %776 = vmatprep.subr.mxu0 0.0
      %777 = vmatpush1.msra.mxu0 0.0
      %778 = vmatprep.subr.mxu0 0.0
      %779 = vmatpush1.msra.mxu0 0.0
      %780 = vmatprep.subr.mxu0 0.0
      %781 = vmatpush1.msra.mxu0 0.0
      %782 = vmatprep.subr.mxu0 0.0
      %783 = vmatpush1.msra.mxu0 0.0
      %784 = vmatprep.subr.mxu0 0.0
      %785 = vmatpush1.msra.mxu0 0.0
      %786 = vmatprep.subr.mxu0 0.0
      %787 = vmatpush1.msra.mxu0 0.0
      %788 = vmatprep.subr.mxu0 0.0
      %789 = vmatpush1.msra.mxu0 0.0
      %790 = vmatprep.subr.mxu0 0.0
      %791 = vmatpush1.msra.mxu0 0.0
      %792 = vmatprep.subr.mxu0 0.0
      %793 = vmatpush1.msra.mxu0 0.0
      %794 = vmatprep.subr.mxu0 0.0
      %795 = vmatpush1.msra.mxu0 0.0
      %796 = vmatprep.subr.mxu0 0.0
      %797 = vmatpush1.msra.mxu0 0.0
      %798 = vmatprep.subr.mxu0 0.0
      %799 = vmatpush1.msra.mxu0 0.0
      %800 = vmatprep.subr.mxu0 0.0
      %801 = vmatpush1.msra.mxu0 0.0
      %802 = vmatprep.subr.mxu0 0.0
      %803 = vmatpush1.msra.mxu0 0.0
      %804 = vmatprep.subr.mxu0 0.0
      %805 = vmatpush1.msra.mxu0 0.0
      %806 = vmatprep.subr.mxu0 0.0
      %807 = vmatpush1.msra.mxu0 0.0
      %808 = vmatprep.subr.mxu0 0.0
      %809 = vmatpush1.msra.mxu0 0.0
      %810 = vmatprep.mubr.f32.mxu0 0.0
      %811 = vmatmul.mubr.f32.gmra.mrb[0].mxu0 %v673
      %v812 = vpop.f32.mrb[0].mxu0
      %v813 = vadd.f32 0.0, %v812
      %v814 = vpop.f32.mrb[0].mxu0
      %815 = vdwg.mxu0
      %v816 = vadd.f32 %v742, %v744
      %v817 = vsel %vm668, %v813, 0.0
      %v818 = vadd.f32 %v816, %v817
      %819 = vadd.xlane.f32.xlu0 %v818
      %v820 = vpop.xlane.xlu0 %819
      %v821 = vmul.f32 %v820, 0.00390625
      %v822 = vld [vmem:[%s7] sm:$0xff]
      %v823 = vadd.f32 %v821, %v822
      %vm824 = vcmask 7168
      %825 = vst.msk [vmem:[%s360] sm:$0xff] %vm824, %v823
      %p826 = scmp.lt.s32.totalorder %s21, 3
      %s827 = scalar_select %p826, %s21, 3
      %s828 = smul.addr %s827, 3
      %s829 = smul.addr %s828, 8
      %s830 = scalar_lea.vmem %s8, %s829
      %p831 = scmp.lt.s32.totalorder %s21, 3
      %s832 = scalar_select %p831, %s21, 3
      %s833 = smul.addr %s832, 8
      %s834 = scalar_lea.vmem %s9, %s833
      // Predicated region
      $region53: #{solo_gan_forward.4} parent=51 // pred_check
        %p835 = pneg %p217
      $region54: #{solo_gan_forward.4} parent=51 // pred_check_branch
        %837 = sbr.rel (%p835) target = $region56
      $region55: #{solo_gan_forward.4} parent=51 // pred_region
        _
      $region56: #{solo_gan_forward.4} parent=51 // pred_fallthru
        _
      // Predicated region
      $region57: #{solo_gan_forward.4} parent=51 // pred_check
        %p838 = pneg %p243
      $region58: #{solo_gan_forward.4} parent=51 // pred_check_branch
        %840 = sbr.rel (%p838) target = $region60
      $region59: #{solo_gan_forward.4} parent=51 // pred_region
        _
      $region60: #{solo_gan_forward.4} parent=51 // pred_fallthru
        _
    $region52: #{solo_gan_forward.4} parent=5 // pred_fallthru
      _
    %p841 = scmp.le.s32.totalorder 2, %s16
    // Predicated region
    $region61: #{solo_gan_forward.4} parent=5 // pred_check
      %p842 = pneg %p841
    $region62: #{solo_gan_forward.4} parent=5 // pred_check_branch
      %844 = sbr.rel (%p842) target = $region64
    $region63: #{solo_gan_forward.4} parent=5 // pred_region
      %s845 = ssub.s32 %s16, 2
      // Predicated region
      $region65: #{solo_gan_forward.4} parent=63 // pred_check
        %p846 = pneg %p223
      $region66: #{solo_gan_forward.4} parent=63 // pred_check_branch
        %848 = sbr.rel (%p846) target = $region68
      $region67: #{solo_gan_forward.4} parent=63 // pred_region
        %p849 = scmp.lt.s32.totalorder %s22, 3
        %s850 = scalar_select %p849, %s22, 3
        %s851 = smul.addr %s850, 3
        %s852 = smul.addr %s851, 8
        %s853 = scalar_lea.vmem %s8, %s852
      $region68: #{solo_gan_forward.4} parent=63 // pred_fallthru
        _
      // Predicated region
      $region69: #{solo_gan_forward.4} parent=63 // pred_check
        %p854 = pneg %p249
      $region70: #{solo_gan_forward.4} parent=63 // pred_check_branch
        %856 = sbr.rel (%p854) target = $region72
      $region71: #{solo_gan_forward.4} parent=63 // pred_region
        %p857 = scmp.lt.s32.totalorder %s22, 3
        %s858 = scalar_select %p857, %s22, 3
        %s859 = smul.addr %s858, 8
        %s860 = scalar_lea.vmem %s9, %s859
      $region72: #{solo_gan_forward.4} parent=63 // pred_fallthru
        _
    $region64: #{solo_gan_forward.4} parent=5 // pred_fallthru
      _
  $region6: #{solo_gan_forward.4} parent=0 // loop_footer
    %s20 = sadd.s32 1, %s16
  $region7: #{solo_gan_forward.4} parent=0 // loop_footer_branch
    %15 = sbr.rel target = $region3
  $region8: #{solo_gan_forward.4} parent=0 // loop_exit
    _

// kernel: solo_gan_forward.6
$region0: #{solo_gan_forward.6}
  #allocation0 [shape = 'u32[]', space=smem, size = 0x4, offset = 0x4, fixed_abs, tag = 'smem constant byte address 0x4 - core index']
  #allocation1 [shape = 'u32[144,128]{1,0:T(1,128)}', space=vmem, size = 0x12000, scoped, tag = 'internal scratch']
  %s0 = inlined_call_operand.vmem [shape: f32[2,3,342], index: 0, kind: input, shape index: {}]
  %s1 = inlined_call_operand.vmem [shape: f32[2,5,1], index: 1, kind: input, shape index: {}]
  %s2 = inlined_call_operand.vmem [shape: f32[1,342], index: 2, kind: input, shape index: {}]
  %s3 = inlined_call_operand.vmem [shape: f32[1,288], index: 3, kind: input, shape index: {}]
  %s4 = inlined_call_operand.vmem [shape: bf16[16,72], index: 4, kind: input, shape index: {}]
  %s5 = inlined_call_operand.vmem [shape: f32[16,1], index: 5, kind: input, shape index: {}]
  %s6 = inlined_call_operand.vmem [shape: f32[8,8], index: 6, kind: input, shape index: {}]
  %s7 = inlined_call_operand.vmem [shape: f32[8,1], index: 7, kind: input, shape index: {}]
  %s8 = inlined_call_operand.vmem [shape: f32[2,8,288], index: 8, kind: output, shape index: {0}]
  %s9 = inlined_call_operand.vmem [shape: f32[2,8,1], index: 9, kind: output, shape index: {1}]
  %10 = xla_tuple %s8, %s9
  %s11 = sld [smem:[#allocation0]]
  $region73: #{solo_gan_forward.6} parent=0
    _
  %s13 = ssub.s32 1, %s11
  %s14 = scalar_select 0, %s13, %s11
  loop: start=0, step=1, limit=4
  $region2: #{solo_gan_forward.6} parent=0 // loop_pre_header
    _
  $region3: #{solo_gan_forward.6} parent=0 // loop_header
    %s16 = sphi 0, %s20
    %p17 = scmp.ge.s32.totalorder %s16, 4
    %s26 = sphi 0, %s28
    %s29 = sphi 0, %s26
    %s30 = sphi 0, %s29
    %s46 = sphi 0, %s30
    %s52 = sphi 0, %s54
    %s55 = sphi 0, %s52
    %s56 = sphi 0, %s55
    %s72 = sphi 0, %s56
    %s76 = sphi 0, %s76
    %s78 = sphi 0, %s76
    %s79 = sphi 0, %s78
    %s93 = sphi 0, %s79
    %s97 = sphi 0, %s97
    %s99 = sphi 0, %s97
    %s100 = sphi 0, %s99
    %s114 = sphi 0, %s100
    %s118 = sphi 0, %s118
    %s120 = sphi 0, %s118
    %s121 = sphi 0, %s120
    %s135 = sphi 0, %s121
    %s139 = sphi 0, %s139
    %s141 = sphi 0, %s139
    %s142 = sphi 0, %s141
    %s156 = sphi 0, %s142
    %s160 = sphi 0, %s160
    %s162 = sphi 0, %s160
    %s163 = sphi 0, %s162
    %s177 = sphi 0, %s163
    %s181 = sphi 0, %s181
    %s183 = sphi 0, %s181
    %s184 = sphi 0, %s183
    %s198 = sphi 0, %s184
    %s204 = sphi 0, %s206
    %s207 = sphi 0, %s204
    %s208 = sphi 0, %s207
    %s224 = sphi 0, %s208
    %s230 = sphi 0, %s232
    %s233 = sphi 0, %s230
    %s234 = sphi 0, %s233
    %s250 = sphi 0, %s234
  $region4: #{solo_gan_forward.6} parent=0 // loop_header_branch
    %19 = sbr.rel (%p17) target = $region8
  $region5: #{solo_gan_forward.6} parent=0 // loop_body
    %s21 = ssub.s32 %s16, 1
    %s22 = ssub.s32 %s16, 2
    %s23 = sadd.s32 %s16, 1
    %s24 = ssub.s32 %s16, %s23
    %p25 = scmp.eq.s32.totalorder %s24, 0
    %s27 = sadd.s32 %s26, 1
    %s28 = scalar_select %p25, %s26, %s27
    %p31 = pneg %p25
    %p32 = scmp.eq.s32.totalorder %s16, 1
    %p33 = por %p31, %p32
    %p34 = scmp.ne.s32.totalorder %s26, %s29
    %p35 = scmp.eq.s32.totalorder %s16, 0
    %p36 = por %p34, %p35
    %p37 = scmp.ne.s32.totalorder %s26, %s29
    %p38 = scmp.eq.s32.totalorder %s21, 1
    %p39 = por %p37, %p38
    %p40 = scmp.ne.s32.totalorder %s29, %s30
    %p41 = scmp.eq.s32.totalorder %s21, 0
    %p42 = por %p40, %p41
    %p43 = scmp.ne.s32.totalorder %s29, %s30
    %p44 = scmp.eq.s32.totalorder %s22, 1
    %p45 = por %p43, %p44
    %p47 = scmp.ne.s32.totalorder %s30, %s46
    %p48 = scmp.eq.s32.totalorder %s22, 0
    %p49 = por %p47, %p48
    %s50 = ssub.s32 %s16, %s23
    %p51 = scmp.eq.s32.totalorder %s50, 0
    %s53 = sadd.s32 %s52, 1
    %s54 = scalar_select %p51, %s52, %s53
    %p57 = pneg %p51
    %p58 = scmp.eq.s32.totalorder %s16, 1
    %p59 = por %p57, %p58
    %p60 = scmp.ne.s32.totalorder %s52, %s55
    %p61 = scmp.eq.s32.totalorder %s16, 0
    %p62 = por %p60, %p61
    %p63 = scmp.ne.s32.totalorder %s52, %s55
    %p64 = scmp.eq.s32.totalorder %s21, 1
    %p65 = por %p63, %p64
    %p66 = scmp.ne.s32.totalorder %s55, %s56
    %p67 = scmp.eq.s32.totalorder %s21, 0
    %p68 = por %p66, %p67
    %p69 = scmp.ne.s32.totalorder %s55, %s56
    %p70 = scmp.eq.s32.totalorder %s22, 1
    %p71 = por %p69, %p70
    %p73 = scmp.ne.s32.totalorder %s56, %s72
    %p74 = scmp.eq.s32.totalorder %s22, 0
    %p75 = por %p73, %p74
    %s77 = sadd.s32 %s76, 1
    %p80 = scmp.eq.s32.totalorder %s16, 1
    %p81 = scmp.ne.s32.totalorder %s76, %s78
    %p82 = scmp.eq.s32.totalorder %s16, 0
    %p83 = por %p81, %p82
    %p84 = scmp.ne.s32.totalorder %s76, %s78
    %p85 = scmp.eq.s32.totalorder %s21, 1
    %p86 = por %p84, %p85
    %p87 = scmp.ne.s32.totalorder %s78, %s79
    %p88 = scmp.eq.s32.totalorder %s21, 0
    %p89 = por %p87, %p88
    %p90 = scmp.ne.s32.totalorder %s78, %s79
    %p91 = scmp.eq.s32.totalorder %s22, 1
    %p92 = por %p90, %p91
    %p94 = scmp.ne.s32.totalorder %s79, %s93
    %p95 = scmp.eq.s32.totalorder %s22, 0
    %p96 = por %p94, %p95
    %s98 = sadd.s32 %s97, 1
    %p101 = scmp.eq.s32.totalorder %s16, 1
    %p102 = scmp.ne.s32.totalorder %s97, %s99
    %p103 = scmp.eq.s32.totalorder %s16, 0
    %p104 = por %p102, %p103
    %p105 = scmp.ne.s32.totalorder %s97, %s99
    %p106 = scmp.eq.s32.totalorder %s21, 1
    %p107 = por %p105, %p106
    %p108 = scmp.ne.s32.totalorder %s99, %s100
    %p109 = scmp.eq.s32.totalorder %s21, 0
    %p110 = por %p108, %p109
    %p111 = scmp.ne.s32.totalorder %s99, %s100
    %p112 = scmp.eq.s32.totalorder %s22, 1
    %p113 = por %p111, %p112
    %p115 = scmp.ne.s32.totalorder %s100, %s114
    %p116 = scmp.eq.s32.totalorder %s22, 0
    %p117 = por %p115, %p116
    %s119 = sadd.s32 %s118, 1
    %p122 = scmp.eq.s32.totalorder %s16, 1
    %p123 = scmp.ne.s32.totalorder %s118, %s120
    %p124 = scmp.eq.s32.totalorder %s16, 0
    %p125 = por %p123, %p124
    %p126 = scmp.ne.s32.totalorder %s118, %s120
    %p127 = scmp.eq.s32.totalorder %s21, 1
    %p128 = por %p126, %p127
    %p129 = scmp.ne.s32.totalorder %s120, %s121
    %p130 = scmp.eq.s32.totalorder %s21, 0
    %p131 = por %p129, %p130
    %p132 = scmp.ne.s32.totalorder %s120, %s121
    %p133 = scmp.eq.s32.totalorder %s22, 1
    %p134 = por %p132, %p133
    %p136 = scmp.ne.s32.totalorder %s121, %s135
    %p137 = scmp.eq.s32.totalorder %s22, 0
    %p138 = por %p136, %p137
    %s140 = sadd.s32 %s139, 1
    %p143 = scmp.eq.s32.totalorder %s16, 1
    %p144 = scmp.ne.s32.totalorder %s139, %s141
    %p145 = scmp.eq.s32.totalorder %s16, 0
    %p146 = por %p144, %p145
    %p147 = scmp.ne.s32.totalorder %s139, %s141
    %p148 = scmp.eq.s32.totalorder %s21, 1
    %p149 = por %p147, %p148
    %p150 = scmp.ne.s32.totalorder %s141, %s142
    %p151 = scmp.eq.s32.totalorder %s21, 0
    %p152 = por %p150, %p151
    %p153 = scmp.ne.s32.totalorder %s141, %s142
    %p154 = scmp.eq.s32.totalorder %s22, 1
    %p155 = por %p153, %p154
    %p157 = scmp.ne.s32.totalorder %s142, %s156
    %p158 = scmp.eq.s32.totalorder %s22, 0
    %p159 = por %p157, %p158
    %s161 = sadd.s32 %s160, 1
    %p164 = scmp.eq.s32.totalorder %s16, 1
    %p165 = scmp.ne.s32.totalorder %s160, %s162
    %p166 = scmp.eq.s32.totalorder %s16, 0
    %p167 = por %p165, %p166
    %p168 = scmp.ne.s32.totalorder %s160, %s162
    %p169 = scmp.eq.s32.totalorder %s21, 1
    %p170 = por %p168, %p169
    %p171 = scmp.ne.s32.totalorder %s162, %s163
    %p172 = scmp.eq.s32.totalorder %s21, 0
    %p173 = por %p171, %p172
    %p174 = scmp.ne.s32.totalorder %s162, %s163
    %p175 = scmp.eq.s32.totalorder %s22, 1
    %p176 = por %p174, %p175
    %p178 = scmp.ne.s32.totalorder %s163, %s177
    %p179 = scmp.eq.s32.totalorder %s22, 0
    %p180 = por %p178, %p179
    %s182 = sadd.s32 %s181, 1
    %p185 = scmp.eq.s32.totalorder %s16, 1
    %p186 = scmp.ne.s32.totalorder %s181, %s183
    %p187 = scmp.eq.s32.totalorder %s16, 0
    %p188 = por %p186, %p187
    %p189 = scmp.ne.s32.totalorder %s181, %s183
    %p190 = scmp.eq.s32.totalorder %s21, 1
    %p191 = por %p189, %p190
    %p192 = scmp.ne.s32.totalorder %s183, %s184
    %p193 = scmp.eq.s32.totalorder %s21, 0
    %p194 = por %p192, %p193
    %p195 = scmp.ne.s32.totalorder %s183, %s184
    %p196 = scmp.eq.s32.totalorder %s22, 1
    %p197 = por %p195, %p196
    %p199 = scmp.ne.s32.totalorder %s184, %s198
    %p200 = scmp.eq.s32.totalorder %s22, 0
    %p201 = por %p199, %p200
    %s202 = ssub.s32 %s16, %s23
    %p203 = scmp.eq.s32.totalorder %s202, 0
    %s205 = sadd.s32 %s204, 1
    %s206 = scalar_select %p203, %s204, %s205
    %p209 = pneg %p203
    %p210 = scmp.eq.s32.totalorder %s16, 1
    %p211 = por %p209, %p210
    %p212 = scmp.ne.s32.totalorder %s204, %s207
    %p213 = scmp.eq.s32.totalorder %s16, 0
    %p214 = por %p212, %p213
    %p215 = scmp.ne.s32.totalorder %s204, %s207
    %p216 = scmp.eq.s32.totalorder %s21, 1
    %p217 = por %p215, %p216
    %p218 = scmp.ne.s32.totalorder %s207, %s208
    %p219 = scmp.eq.s32.totalorder %s21, 0
    %p220 = por %p218, %p219
    %p221 = scmp.ne.s32.totalorder %s207, %s208
    %p222 = scmp.eq.s32.totalorder %s22, 1
    %p223 = por %p221, %p222
    %p225 = scmp.ne.s32.totalorder %s208, %s224
    %p226 = scmp.eq.s32.totalorder %s22, 0
    %p227 = por %p225, %p226
    %s228 = ssub.s32 %s16, %s23
    %p229 = scmp.eq.s32.totalorder %s228, 0
    %s231 = sadd.s32 %s230, 1
    %s232 = scalar_select %p229, %s230, %s231
    %p235 = pneg %p229
    %p236 = scmp.eq.s32.totalorder %s16, 1
    %p237 = por %p235, %p236
    %p238 = scmp.ne.s32.totalorder %s230, %s233
    %p239 = scmp.eq.s32.totalorder %s16, 0
    %p240 = por %p238, %p239
    %p241 = scmp.ne.s32.totalorder %s230, %s233
    %p242 = scmp.eq.s32.totalorder %s21, 1
    %p243 = por %p241, %p242
    %p244 = scmp.ne.s32.totalorder %s233, %s234
    %p245 = scmp.eq.s32.totalorder %s21, 0
    %p246 = por %p244, %p245
    %p247 = scmp.ne.s32.totalorder %s233, %s234
    %p248 = scmp.eq.s32.totalorder %s22, 1
    %p249 = por %p247, %p248
    %p251 = scmp.ne.s32.totalorder %s234, %s250
    %p252 = scmp.eq.s32.totalorder %s22, 0
    %p253 = por %p251, %p252
    %p254 = scmp.le.s32.totalorder 1, %s16
    %p255 = scmp.lt.s32.totalorder %s16, 3
    %p256 = pnand %p254, %p255
    %p257 = pneg %p256
    // Predicated region
    $region9: #{solo_gan_forward.6} parent=5 // pred_check
      _
    $region10: #{solo_gan_forward.6} parent=5 // pred_check_branch
      %259 = sbr.rel (%p256) target = $region12
    $region11: #{solo_gan_forward.6} parent=5 // pred_region
      %s260 = ssub.s32 %s16, 1
      // Predicated region
      $region13: #{solo_gan_forward.6} parent=11 // pred_check
        %p261 = pneg %p89
      $region14: #{solo_gan_forward.6} parent=11 // pred_check_branch
        %263 = sbr.rel (%p261) target = $region16
      $region15: #{solo_gan_forward.6} parent=11 // pred_region
        _
      $region16: #{solo_gan_forward.6} parent=11 // pred_fallthru
        _
      // Predicated region
      $region17: #{solo_gan_forward.6} parent=11 // pred_check
        %p264 = pneg %p110
      $region18: #{solo_gan_forward.6} parent=11 // pred_check_branch
        %266 = sbr.rel (%p264) target = $region20
      $region19: #{solo_gan_forward.6} parent=11 // pred_region
        _
      $region20: #{solo_gan_forward.6} parent=11 // pred_fallthru
        _
      // Predicated region
      $region21: #{solo_gan_forward.6} parent=11 // pred_check
        %p267 = pneg %p131
      $region22: #{solo_gan_forward.6} parent=11 // pred_check_branch
        %269 = sbr.rel (%p267) target = $region24
      $region23: #{solo_gan_forward.6} parent=11 // pred_region
        _
      $region24: #{solo_gan_forward.6} parent=11 // pred_fallthru
        _
      // Predicated region
      $region25: #{solo_gan_forward.6} parent=11 // pred_check
        %p270 = pneg %p152
      $region26: #{solo_gan_forward.6} parent=11 // pred_check_branch
        %272 = sbr.rel (%p270) target = $region28
      $region27: #{solo_gan_forward.6} parent=11 // pred_region
        _
      $region28: #{solo_gan_forward.6} parent=11 // pred_fallthru
        _
      // Predicated region
      $region29: #{solo_gan_forward.6} parent=11 // pred_check
        %p273 = pneg %p173
      $region30: #{solo_gan_forward.6} parent=11 // pred_check_branch
        %275 = sbr.rel (%p273) target = $region32
      $region31: #{solo_gan_forward.6} parent=11 // pred_region
        _
      $region32: #{solo_gan_forward.6} parent=11 // pred_fallthru
        _
      // Predicated region
      $region33: #{solo_gan_forward.6} parent=11 // pred_check
        %p276 = pneg %p194
      $region34: #{solo_gan_forward.6} parent=11 // pred_check_branch
        %278 = sbr.rel (%p276) target = $region36
      $region35: #{solo_gan_forward.6} parent=11 // pred_region
        _
      $region36: #{solo_gan_forward.6} parent=11 // pred_fallthru
        _
    $region12: #{solo_gan_forward.6} parent=5 // pred_fallthru
      _
    %p279 = scmp.lt.s32.totalorder %s16, 2
    // Predicated region
    $region37: #{solo_gan_forward.6} parent=5 // pred_check
      %p280 = pneg %p279
    $region38: #{solo_gan_forward.6} parent=5 // pred_check_branch
      %282 = sbr.rel (%p280) target = $region40
    $region39: #{solo_gan_forward.6} parent=5 // pred_region
      // Predicated region
      $region41: #{solo_gan_forward.6} parent=39 // pred_check
        %p283 = pneg %p36
      $region42: #{solo_gan_forward.6} parent=39 // pred_check_branch
        %285 = sbr.rel (%p283) target = $region44
      $region43: #{solo_gan_forward.6} parent=39 // pred_region
        %p286 = scmp.lt.s32.totalorder %s16, 1
        %s287 = scalar_select %p286, %s16, 1
        %s288 = smul.addr %s287, 3
        %s289 = smul.addr %s288, 4
        %s290 = scalar_lea.vmem %s0, %s289
      $region44: #{solo_gan_forward.6} parent=39 // pred_fallthru
        _
      // Predicated region
      $region45: #{solo_gan_forward.6} parent=39 // pred_check
        %p291 = pneg %p62
      $region46: #{solo_gan_forward.6} parent=39 // pred_check_branch
        %293 = sbr.rel (%p291) target = $region48
      $region47: #{solo_gan_forward.6} parent=39 // pred_region
        %p294 = scmp.lt.s32.totalorder %s16, 1
        %s295 = scalar_select %p294, %s16, 1
        %s296 = smul.addr %s295, 8
        %s297 = scalar_lea.vmem %s1, %s296
      $region48: #{solo_gan_forward.6} parent=39 // pred_fallthru
        _
    $region40: #{solo_gan_forward.6} parent=5 // pred_fallthru
      _
    %p298 = scmp.le.s32.totalorder 1, %s16
    %p299 = scmp.lt.s32.totalorder %s16, 3
    %p300 = pnand %p298, %p299
    %p301 = pneg %p300
    // Predicated region
    $region49: #{solo_gan_forward.6} parent=5 // pred_check
      _
    $region50: #{solo_gan_forward.6} parent=5 // pred_check_branch
      %303 = sbr.rel (%p300) target = $region52
    $region51: #{solo_gan_forward.6} parent=5 // pred_region
      %s304 = ssub.s32 %s16, 1
      %p305 = scmp.lt.s32.totalorder %s21, 1
      %s306 = scalar_select %p305, %s21, 1
      %s307 = smul.addr %s306, 3
      %s308 = smul.addr %s307, 4
      %s309 = scalar_lea.vmem %s0, %s308
      %p310 = pneg %p42
      %p311 = pneg %p39
      %p312 = scmp.lt.s32.totalorder %s21, 1
      %s313 = scalar_select %p312, %s21, 1
      %s314 = smul.addr %s313, 8
      %s315 = scalar_lea.vmem %s1, %s314
      %p316 = pneg %p68
      %p317 = pneg %p65
      %p318 = pneg %p89
      %p319 = pneg %p86
      %p320 = pneg %p110
      %p321 = pneg %p107
      %p322 = pneg %p131
      %p323 = pneg %p128
      %p324 = pneg %p152
      %p325 = pneg %p149
      %p326 = pneg %p173
      %p327 = pneg %p170
      %p328 = pneg %p194
      %p329 = pneg %p191
      %p330 = pneg %p220
      %p331 = pneg %p217
      %p332 = scmp.lt.s32.totalorder %s21, 1
      %s333 = scalar_select %p332, %s21, 1
      %s334 = smul.addr %s333, 3
      %s335 = smul.addr %s334, 8
      %s336 = scalar_lea.vmem %s8, %s335
      %p337 = pneg %p246
      %p338 = pneg %p243
      %p339 = scmp.lt.s32.totalorder %s21, 1
      %s340 = scalar_select %p339, %s21, 1
      %s341 = smul.addr %s340, 8
      %s342 = scalar_lea.vmem %s9, %s341
      %p343 = scmp.lt.s32.totalorder %s21, 1
      %s344 = scalar_select %p343, %s21, 1
      %s345 = smul.addr %s344, 3
      %s346 = smul.addr %s345, 4
      %s347 = scalar_lea.vmem %s0, %s346
      %p348 = scmp.lt.s32.totalorder %s21, 1
      %s349 = scalar_select %p348, %s21, 1
      %s350 = smul.addr %s349, 8
      %s351 = scalar_lea.vmem %s1, %s350
      %p352 = scmp.lt.s32.totalorder %s21, 1
      %s353 = scalar_select %p352, %s21, 1
      %s354 = smul.addr %s353, 3
      %s355 = smul.addr %s354, 8
      %s356 = scalar_lea.vmem %s8, %s355
      %p357 = scmp.lt.s32.totalorder %s21, 1
      %s358 = scalar_select %p357, %s21, 1
      %s359 = smul.addr %s358, 8
      %s360 = scalar_lea.vmem %s9, %s359
      %v362 = vld [vmem:[%s351] sm:$0x1f]
      %v363 = vld [vmem:[%s2] sm:$0x7]
      %365 = vset.pattern.permute.xlu0 0
      %366 = vperm.xlu0 %365, %v362
      %v367 = vpop.permute.xlu0 %366
      %v370 = vlaneseq
      %v371 = vshrl.u32 %v370, 7
      %v372 = vsub.s32 0, %v371
      %v373 = vrot.slane %v363, %v372
      %v374 = vlaneseq
      %v375 = vshrl.u32 %v374, 7
      %v376 = vsub.s32 1, %v375
      %v377 = vrot.slane %v363, %v376
      %v378 = vlaneseq
      %v379 = vshrl.u32 %v378, 7
      %v380 = vsub.s32 2, %v379
      %v381 = vrot.slane %v363, %v380
      %v385 = vmul.f32 %v367, %v373
      %v386 = vmul.f32 %v367, %v377
      %v387 = vmul.f32 %v367, %v381
      %v388 = vld [vmem:[%s347] sm:$0x77]
      %v389 = vld [vmem:[%s347 + $0x8] sm:$0x7]
      %v391 = vcombine.high %v388, %v388
      %v396 = vrot.slane %v385, 5
      %v397 = vrot.slane %v386, 5
      %v398 = vrot.slane %v387, 5
      %vm402 = vcmask 1042432
      %v403 = vsel %vm402, %v388, %v396
      %v404 = vsel %vm402, %v391, %v397
      %v405 = vsel %vm402, %v389, %v398
      %409 = vrot.lane.b32.xlu0 %v403, 127
      %v410 = vpop.permute.xlu0 %409
      %411 = vrot.lane.b32.xlu0 %v404, 127
      %v412 = vpop.permute.xlu0 %411
      %413 = vrot.lane.b32.xlu0 %v405, 127
      %v414 = vpop.permute.xlu0 %413
      %vm415 = vcmask 1039360
      %v416 = vsel %vm415, %v410, %v412
      %v417 = vsel %vm415, %v412, %v414
      %421 = vrot.lane.b32.xlu0 %v403, 126
      %v422 = vpop.permute.xlu0 %421
      %423 = vrot.lane.b32.xlu0 %v404, 126
      %v424 = vpop.permute.xlu0 %423
      %425 = vrot.lane.b32.xlu0 %v405, 126
      %v426 = vpop.permute.xlu0 %425
      %vm427 = vcmask 1031168
      %v428 = vsel %vm427, %v422, %v424
      %v429 = vsel %vm427, %v424, %v426
      %433 = vrot.lane.b32.xlu0 %v403, 110
      %v434 = vpop.permute.xlu0 %433
      %435 = vrot.lane.b32.xlu0 %v404, 110
      %v436 = vpop.permute.xlu0 %435
      %437 = vrot.lane.b32.xlu0 %v405, 110
      %v438 = vpop.permute.xlu0 %437
      %vm439 = vcmask 900096
      %v440 = vsel %vm439, %v434, %v436
      %v441 = vsel %vm439, %v436, %v438
      %445 = vrot.lane.b32.xlu0 %v403, 109
      %v446 = vpop.permute.xlu0 %445
      %447 = vrot.lane.b32.xlu0 %v404, 109
      %v448 = vpop.permute.xlu0 %447
      %449 = vrot.lane.b32.xlu0 %v405, 109
      %v450 = vpop.permute.xlu0 %449
      %vm451 = vcmask 891904
      %v452 = vsel %vm451, %v446, %v448
      %v453 = vsel %vm451, %v448, %v450
      %457 = vrot.lane.b32.xlu0 %v403, 108
      %v458 = vpop.permute.xlu0 %457
      %459 = vrot.lane.b32.xlu0 %v404, 108
      %v460 = vpop.permute.xlu0 %459
      %461 = vrot.lane.b32.xlu0 %v405, 108
      %v462 = vpop.permute.xlu0 %461
      %vm463 = vcmask 883712
      %v464 = vsel %vm463, %v458, %v460
      %v465 = vsel %vm463, %v460, %v462
      %469 = vrot.lane.b32.xlu0 %v403, 92
      %v470 = vpop.permute.xlu0 %469
      %471 = vrot.lane.b32.xlu0 %v404, 92
      %v472 = vpop.permute.xlu0 %471
      %473 = vrot.lane.b32.xlu0 %v405, 92
      %v474 = vpop.permute.xlu0 %473
      %vm475 = vcmask 752640
      %v476 = vsel %vm475, %v470, %v472
      %v477 = vsel %vm475, %v472, %v474
      %481 = vrot.lane.b32.xlu0 %v403, 91
      %v482 = vpop.permute.xlu0 %481
      %483 = vrot.lane.b32.xlu0 %v404, 91
      %v484 = vpop.permute.xlu0 %483
      %485 = vrot.lane.b32.xlu0 %v405, 91
      %v486 = vpop.permute.xlu0 %485
      %vm487 = vcmask 744448
      %v488 = vsel %vm487, %v482, %v484
      %v489 = vsel %vm487, %v484, %v486
      %493 = vrot.lane.b32.xlu0 %v403, 90
      %v494 = vpop.permute.xlu0 %493
      %495 = vrot.lane.b32.xlu0 %v404, 90
      %v496 = vpop.permute.xlu0 %495
      %497 = vrot.lane.b32.xlu0 %v405, 90
      %v498 = vpop.permute.xlu0 %497
      %vm499 = vcmask 736256
      %v500 = vsel %vm499, %v494, %v496
      %v501 = vsel %vm499, %v496, %v498
      %v505 = vld [vmem:[%s4] sm:$0xf]
      %v506 = vld [vmem:[%s4 + $0x4] sm:$0xf]
      %v507 = vpack.c.bf16 %v416, %v403
      %v508 = vpack.c.bf16 %v417, %v404
      %v509 = vpack.c.bf16 %v414, %v405
      %v510 = vpack.c.bf16 %v440, %v428
      %v511 = vpack.c.bf16 %v441, %v429
      %v512 = vpack.c.bf16 %v438, %v426
      %v513 = vpack.c.bf16 %v464, %v452
      %v514 = vpack.c.bf16 %v465, %v453
      %v515 = vpack.c.bf16 %v462, %v450
      %v516 = vpack.c.bf16 %v488, %v476
      %v517 = vpack.c.bf16 %v489, %v477
      %v518 = vpack.c.bf16 %v486, %v474
      %v519 = vpack.c.bf16 %v500, %v500
      %v520 = vpack.c.bf16 %v501, %v501
      %v521 = vpack.c.bf16 %v498, %v498
      %v522 = vld [vmem:[%s5] sm:$0xff]
      %v523 = vld [vmem:[%s5 + $0x8] sm:$0xff]
      %525 = vset.pattern.permute.xlu0 0
      %526 = vperm.xlu0 %525, %v522
      %v527 = vpop.permute.xlu0 %526
      %530 = vset.pattern.permute.xlu0 0
      %531 = vperm.xlu0 %530, %v523
      %v532 = vpop.permute.xlu0 %531
      %v536 = vunpack.c.l.b16 %v505
      %v537 = vunpack.c.l.b16 %v506
      %v538 = vpack.c.b16 %v537, %v536
      %vm539 = vcmask 588800
      %v541 = vsel %vm539, %v538, 0
      %vm543 = vcmask 1043456
      %v545 = vsel %vm543, %v519, 0
      %v548 = vsel %vm543, %v520, 0
      %v551 = vsel %vm543, %v521, 0
      %553 = vmatprep.subr.bf16.mxu0 %v508
      %554 = vmatpush1.bf16.msra.mxu0 %v507
      %555 = vmatprep.subr.bf16.mxu0 %v511
      %556 = vmatpush1.bf16.msra.mxu0 %v510
      %557 = vmatprep.subr.bf16.mxu0 %v514
      %558 = vmatpush1.bf16.msra.mxu0 %v513
      %559 = vmatprep.subr.bf16.mxu0 %v517
      %560 = vmatpush1.bf16.msra.mxu0 %v516
      %561 = vmatprep.subr.bf16.mxu0 %v548
      %562 = vmatpush1.bf16.msra.mxu0 %v545
      %563 = vmatprep.subr.bf16.mxu0 0
      %564 = vmatpush1.bf16.msra.mxu0 0
      %565 = vmatprep.subr.bf16.mxu0 0
      %566 = vmatpush1.bf16.msra.mxu0 0
      %567 = vmatprep.subr.bf16.mxu0 0
      %568 = vmatpush1.bf16.msra.mxu0 0
      %569 = vmatprep.subr.bf16.mxu0 0
      %570 = vmatpush1.bf16.msra.mxu0 0
      %571 = vmatprep.subr.bf16.mxu0 0
      %572 = vmatpush1.bf16.msra.mxu0 0
      %573 = vmatprep.subr.bf16.mxu0 0
      %574 = vmatpush1.bf16.msra.mxu0 0
      %575 = vmatprep.subr.bf16.mxu0 0
      %576 = vmatpush1.bf16.msra.mxu0 0
      %577 = vmatprep.subr.bf16.mxu0 0
      %578 = vmatpush1.bf16.msra.mxu0 0
      %579 = vmatprep.subr.bf16.mxu0 0
      %580 = vmatpush1.bf16.msra.mxu0 0
      %581 = vmatprep.subr.bf16.mxu0 0
      %582 = vmatpush1.bf16.msra.mxu0 0
      %583 = vmatprep.subr.bf16.mxu0 0
      %584 = vmatpush1.bf16.msra.mxu0 0
      %585 = vmatprep.mubr.bf16.mxu0 0
      %586 = vmatmul.mubr.bf16.gmra.mrb[0].mxu0 %v541
      %v587 = vpop.f32.mrb[0].mxu0
      %v588 = vadd.f32 %v527, %v587
      %v589 = vpop.f32.mrb[0].mxu0
      %v590 = vadd.f32 %v527, %v589
      %v591 = vpop.f32.mrb[0].mxu0
      %v592 = vadd.f32 %v532, %v591
      %v593 = vpop.f32.mrb[0].mxu0
      %v594 = vadd.f32 %v532, %v593
      %595 = vdwg.mxu0
      %596 = vmatprep.subr.bf16.mxu0 0
      %597 = vmatpush1.bf16.msra.mxu0 %v509
      %598 = vmatprep.subr.bf16.mxu0 0
      %599 = vmatpush1.bf16.msra.mxu0 %v512
      %600 = vmatprep.subr.bf16.mxu0 0
      %601 = vmatpush1.bf16.msra.mxu0 %v515
      %602 = vmatprep.subr.bf16.mxu0 0
      %603 = vmatpush1.bf16.msra.mxu0 %v518
      %604 = vmatprep.subr.bf16.mxu0 0
      %605 = vmatpush1.bf16.msra.mxu0 %v551
      %606 = vmatprep.subr.bf16.mxu0 0
      %607 = vmatpush1.bf16.msra.mxu0 0
      %608 = vmatprep.subr.bf16.mxu0 0
      %609 = vmatpush1.bf16.msra.mxu0 0
      %610 = vmatprep.subr.bf16.mxu0 0
      %611 = vmatpush1.bf16.msra.mxu0 0
      %612 = vmatprep.subr.bf16.mxu0 0
      %613 = vmatpush1.bf16.msra.mxu0 0
      %614 = vmatprep.subr.bf16.mxu0 0
      %615 = vmatpush1.bf16.msra.mxu0 0
      %616 = vmatprep.subr.bf16.mxu0 0
      %617 = vmatpush1.bf16.msra.mxu0 0
      %618 = vmatprep.subr.bf16.mxu0 0
      %619 = vmatpush1.bf16.msra.mxu0 0
      %620 = vmatprep.subr.bf16.mxu0 0
      %621 = vmatpush1.bf16.msra.mxu0 0
      %622 = vmatprep.subr.bf16.mxu0 0
      %623 = vmatpush1.bf16.msra.mxu0 0
      %624 = vmatprep.subr.bf16.mxu0 0
      %625 = vmatpush1.bf16.msra.mxu0 0
      %626 = vmatprep.subr.bf16.mxu0 0
      %627 = vmatpush1.bf16.msra.mxu0 0
      %628 = vmatprep.mubr.bf16.mxu0 0
      %629 = vmatmul.mubr.bf16.gmra.mrb[0].mxu0 %v541
      %v630 = vpop.f32.mrb[0].mxu0
      %v631 = vadd.f32 %v527, %v630
      %v632 = vpop.f32.mrb[0].mxu0
      %v633 = vpop.f32.mrb[0].mxu0
      %v634 = vadd.f32 %v532, %v633
      %v635 = vpop.f32.mrb[0].mxu0
      %636 = vdwg.mxu0
      %v637 = vmax.f32 %v588, 0.0
      %v638 = vmax.f32 %v590, 0.0
      %v639 = vmax.f32 %v631, 0.0
      %v640 = vmax.f32 %v592, 0.0
      %v641 = vmax.f32 %v594, 0.0
      %v642 = vmax.f32 %v634, 0.0
      %v643 = vld [vmem:[%s3] sm:$0x7]
      %v645 = vlaneseq
      %v646 = vshrl.u32 %v645, 7
      %v647 = vsub.s32 0, %v646
      %v648 = vrot.slane %v643, %v647
      %v649 = vlaneseq
      %v650 = vshrl.u32 %v649, 7
      %v651 = vsub.s32 1, %v650
      %v652 = vrot.slane %v643, %v651
      %v653 = vlaneseq
      %v654 = vshrl.u32 %v653, 7
      %v655 = vsub.s32 2, %v654
      %v656 = vrot.slane %v643, %v655
      %v660 = vmul.f32 %v637, %v648
      %v661 = vmul.f32 %v638, %v652
      %v662 = vmul.f32 %v639, %v656
      %v663 = vmul.f32 %v640, %v648
      %v664 = vmul.f32 %v641, %v652
      %v665 = vmul.f32 %v642, %v656
      %666 = vst [vmem:[%s356] sm:$0xff] %v660
      %667 = vst [vmem:[%s356 + $0x8] sm:$0xff] %v661
      %vm668 = vcmask 261120
      %669 = vst.msk [vmem:[%s356 + $0x10] sm:$0xff] %vm668, %v662
      %v670 = vld [vmem:[%s6] sm:$0xff]
      %vm671 = vcmask 64512
      %v673 = vsel %vm671, %v670, 0
      %675 = vmatprep.subr.mxu0 %v664
      %676 = vmatpush1.msra.mxu0 %v663
      %677 = vmatprep.subr.mxu0 0.0
      %678 = vmatpush1.msra.mxu0 0.0
      %679 = vmatprep.subr.mxu0 0.0
      %680 = vmatpush1.msra.mxu0 0.0
      %681 = vmatprep.subr.mxu0 0.0
      %682 = vmatpush1.msra.mxu0 0.0
      %683 = vmatprep.subr.mxu0 0.0
      %684 = vmatpush1.msra.mxu0 0.0
      %685 = vmatprep.subr.mxu0 0.0
      %686 = vmatpush1.msra.mxu0 0.0
      %687 = vmatprep.subr.mxu0 0.0
      %688 = vmatpush1.msra.mxu0 0.0
      %689 = vmatprep.subr.mxu0 0.0
      %690 = vmatpush1.msra.mxu0 0.0
      %691 = vmatprep.subr.mxu0 0.0
      %692 = vmatpush1.msra.mxu0 0.0
      %693 = vmatprep.subr.mxu0 0.0
      %694 = vmatpush1.msra.mxu0 0.0
      %695 = vmatprep.subr.mxu0 0.0
      %696 = vmatpush1.msra.mxu0 0.0
      %697 = vmatprep.subr.mxu0 0.0
      %698 = vmatpush1.msra.mxu0 0.0
      %699 = vmatprep.subr.mxu0 0.0
      %700 = vmatpush1.msra.mxu0 0.0
      %701 = vmatprep.subr.mxu0 0.0
      %702 = vmatpush1.msra.mxu0 0.0
      %703 = vmatprep.subr.mxu0 0.0
      %704 = vmatpush1.msra.mxu0 0.0
      %705 = vmatprep.subr.mxu0 0.0
      %706 = vmatpush1.msra.mxu0 0.0
      %707 = vmatprep.subr.mxu0 0.0
      %708 = vmatpush1.msra.mxu0 0.0
      %709 = vmatprep.subr.mxu0 0.0
      %710 = vmatpush1.msra.mxu0 0.0
      %711 = vmatprep.subr.mxu0 0.0
      %712 = vmatpush1.msra.mxu0 0.0
      %713 = vmatprep.subr.mxu0 0.0
      %714 = vmatpush1.msra.mxu0 0.0
      %715 = vmatprep.subr.mxu0 0.0
      %716 = vmatpush1.msra.mxu0 0.0
      %717 = vmatprep.subr.mxu0 0.0
      %718 = vmatpush1.msra.mxu0 0.0
      %719 = vmatprep.subr.mxu0 0.0
      %720 = vmatpush1.msra.mxu0 0.0
      %721 = vmatprep.subr.mxu0 0.0
      %722 = vmatpush1.msra.mxu0 0.0
      %723 = vmatprep.subr.mxu0 0.0
      %724 = vmatpush1.msra.mxu0 0.0
      %725 = vmatprep.subr.mxu0 0.0
      %726 = vmatpush1.msra.mxu0 0.0
      %727 = vmatprep.subr.mxu0 0.0
      %728 = vmatpush1.msra.mxu0 0.0
      %729 = vmatprep.subr.mxu0 0.0
      %730 = vmatpush1.msra.mxu0 0.0
      %731 = vmatprep.subr.mxu0 0.0
      %732 = vmatpush1.msra.mxu0 0.0
      %733 = vmatprep.subr.mxu0 0.0
      %734 = vmatpush1.msra.mxu0 0.0
      %735 = vmatprep.subr.mxu0 0.0
      %736 = vmatpush1.msra.mxu0 0.0
      %737 = vmatprep.subr.mxu0 0.0
      %738 = vmatpush1.msra.mxu0 0.0
      %739 = vmatprep.mubr.f32.mxu0 0.0
      %740 = vmatmul.mubr.f32.gmra.mrb[0].mxu0 %v673
      %v741 = vpop.f32.mrb[0].mxu0
      %v742 = vadd.f32 0.0, %v741
      %v743 = vpop.f32.mrb[0].mxu0
      %v744 = vadd.f32 0.0, %v743
      %745 = vdwg.mxu0
      %746 = vmatprep.subr.mxu0 0.0
      %747 = vmatpush1.msra.mxu0 %v665
      %748 = vmatprep.subr.mxu0 0.0
      %749 = vmatpush1.msra.mxu0 0.0
      %750 = vmatprep.subr.mxu0 0.0
      %751 = vmatpush1.msra.mxu0 0.0
      %752 = vmatprep.subr.mxu0 0.0
      %753 = vmatpush1.msra.mxu0 0.0
      %754 = vmatprep.subr.mxu0 0.0
      %755 = vmatpush1.msra.mxu0 0.0
      %756 = vmatprep.subr.mxu0 0.0
      %757 = vmatpush1.msra.mxu0 0.0
      %758 = vmatprep.subr.mxu0 0.0
      %759 = vmatpush1.msra.mxu0 0.0
      %760 = vmatprep.subr.mxu0 0.0
      %761 = vmatpush1.msra.mxu0 0.0
      %762 = vmatprep.subr.mxu0 0.0
      %763 = vmatpush1.msra.mxu0 0.0
      %764 = vmatprep.subr.mxu0 0.0
      %765 = vmatpush1.msra.mxu0 0.0
      %766 = vmatprep.subr.mxu0 0.0
      %767 = vmatpush1.msra.mxu0 0.0
      %768 = vmatprep.subr.mxu0 0.0
      %769 = vmatpush1.msra.mxu0 0.0
      %770 = vmatprep.subr.mxu0 0.0
      %771 = vmatpush1.msra.mxu0 0.0
      %772 = vmatprep.subr.mxu0 0.0
      %773 = vmatpush1.msra.mxu0 0.0
      %774 = vmatprep.subr.mxu0 0.0
      %775 = vmatpush1.msra.mxu0 0.0
      %776 = vmatprep.subr.mxu0 0.0
      %777 = vmatpush1.msra.mxu0 0.0
      %778 = vmatprep.subr.mxu0 0.0
      %779 = vmatpush1.msra.mxu0 0.0
      %780 = vmatprep.subr.mxu0 0.0
      %781 = vmatpush1.msra.mxu0 0.0
      %782 = vmatprep.subr.mxu0 0.0
      %783 = vmatpush1.msra.mxu0 0.0
      %784 = vmatprep.subr.mxu0 0.0
      %785 = vmatpush1.msra.mxu0 0.0
      %786 = vmatprep.subr.mxu0 0.0
      %787 = vmatpush1.msra.mxu0 0.0
      %788 = vmatprep.subr.mxu0 0.0
      %789 = vmatpush1.msra.mxu0 0.0
      %790 = vmatprep.subr.mxu0 0.0
      %791 = vmatpush1.msra.mxu0 0.0
      %792 = vmatprep.subr.mxu0 0.0
      %793 = vmatpush1.msra.mxu0 0.0
      %794 = vmatprep.subr.mxu0 0.0
      %795 = vmatpush1.msra.mxu0 0.0
      %796 = vmatprep.subr.mxu0 0.0
      %797 = vmatpush1.msra.mxu0 0.0
      %798 = vmatprep.subr.mxu0 0.0
      %799 = vmatpush1.msra.mxu0 0.0
      %800 = vmatprep.subr.mxu0 0.0
      %801 = vmatpush1.msra.mxu0 0.0
      %802 = vmatprep.subr.mxu0 0.0
      %803 = vmatpush1.msra.mxu0 0.0
      %804 = vmatprep.subr.mxu0 0.0
      %805 = vmatpush1.msra.mxu0 0.0
      %806 = vmatprep.subr.mxu0 0.0
      %807 = vmatpush1.msra.mxu0 0.0
      %808 = vmatprep.subr.mxu0 0.0
      %809 = vmatpush1.msra.mxu0 0.0
      %810 = vmatprep.mubr.f32.mxu0 0.0
      %811 = vmatmul.mubr.f32.gmra.mrb[0].mxu0 %v673
      %v812 = vpop.f32.mrb[0].mxu0
      %v813 = vadd.f32 0.0, %v812
      %v814 = vpop.f32.mrb[0].mxu0
      %815 = vdwg.mxu0
      %v816 = vadd.f32 %v742, %v744
      %v817 = vsel %vm668, %v813, 0.0
      %v818 = vadd.f32 %v816, %v817
      %819 = vadd.xlane.f32.xlu0 %v818
      %v820 = vpop.xlane.xlu0 %819
      %v821 = vmul.f32 %v820, 0.00390625
      %v822 = vld [vmem:[%s7] sm:$0xff]
      %v823 = vadd.f32 %v821, %v822
      %vm824 = vcmask 7168
      %825 = vst.msk [vmem:[%s360] sm:$0xff] %vm824, %v823
      %p826 = scmp.lt.s32.totalorder %s21, 1
      %s827 = scalar_select %p826, %s21, 1
      %s828 = smul.addr %s827, 3
      %s829 = smul.addr %s828, 8
      %s830 = scalar_lea.vmem %s8, %s829
      %p831 = scmp.lt.s32.totalorder %s21, 1
      %s832 = scalar_select %p831, %s21, 1
      %s833 = smul.addr %s832, 8
      %s834 = scalar_lea.vmem %s9, %s833
      // Predicated region
      $region53: #{solo_gan_forward.6} parent=51 // pred_check
        %p835 = pneg %p217
      $region54: #{solo_gan_forward.6} parent=51 // pred_check_branch
        %837 = sbr.rel (%p835) target = $region56
      $region55: #{solo_gan_forward.6} parent=51 // pred_region
        _
      $region56: #{solo_gan_forward.6} parent=51 // pred_fallthru
        _
      // Predicated region
      $region57: #{solo_gan_forward.6} parent=51 // pred_check
        %p838 = pneg %p243
      $region58: #{solo_gan_forward.6} parent=51 // pred_check_branch
        %840 = sbr.rel (%p838) target = $region60
      $region59: #{solo_gan_forward.6} parent=51 // pred_region
        _
      $region60: #{solo_gan_forward.6} parent=51 // pred_fallthru
        _
    $region52: #{solo_gan_forward.6} parent=5 // pred_fallthru
      _
    %p841 = scmp.le.s32.totalorder 2, %s16
    // Predicated region
    $region61: #{solo_gan_forward.6} parent=5 // pred_check
      %p842 = pneg %p841
    $region62: #{solo_gan_forward.6} parent=5 // pred_check_branch
      %844 = sbr.rel (%p842) target = $region64
    $region63: #{solo_gan_forward.6} parent=5 // pred_region
      %s845 = ssub.s32 %s16, 2
      // Predicated region
      $region65: #{solo_gan_forward.6} parent=63 // pred_check
        %p846 = pneg %p223
      $region66: #{solo_gan_forward.6} parent=63 // pred_check_branch
        %848 = sbr.rel (%p846) target = $region68
      $region67: #{solo_gan_forward.6} parent=63 // pred_region
        %p849 = scmp.lt.s32.totalorder %s22, 1
        %s850 = scalar_select %p849, %s22, 1
        %s851 = smul.addr %s850, 3
        %s852 = smul.addr %s851, 8
        %s853 = scalar_lea.vmem %s8, %s852
      $region68: #{solo_gan_forward.6} parent=63 // pred_fallthru
        _
      // Predicated region
      $region69: #{solo_gan_forward.6} parent=63 // pred_check
        %p854 = pneg %p249
      $region70: #{solo_gan_forward.6} parent=63 // pred_check_branch
        %856 = sbr.rel (%p854) target = $region72
      $region71: #{solo_gan_forward.6} parent=63 // pred_region
        %p857 = scmp.lt.s32.totalorder %s22, 1
        %s858 = scalar_select %p857, %s22, 1
        %s859 = smul.addr %s858, 8
        %s860 = scalar_lea.vmem %s9, %s859
      $region72: #{solo_gan_forward.6} parent=63 // pred_fallthru
        _
    $region64: #{solo_gan_forward.6} parent=5 // pred_fallthru
      _
  $region6: #{solo_gan_forward.6} parent=0 // loop_footer
    %s20 = sadd.s32 1, %s16
  $region7: #{solo_gan_forward.6} parent=0 // loop_footer_branch
    %15 = sbr.rel target = $region3
  $region8: #{solo_gan_forward.6} parent=0 // loop_exit
    _

// kernel: solo_gan_forward.5
$region0: #{solo_gan_forward.5}
  #allocation0 [shape = 'u32[]', space=smem, size = 0x4, offset = 0x4, fixed_abs, tag = 'smem constant byte address 0x4 - core index']
  #allocation1 [shape = 'u32[144,128]{1,0:T(1,128)}', space=vmem, size = 0x12000, scoped, tag = 'internal scratch']
  %s0 = inlined_call_operand.vmem [shape: f32[4,8,342], index: 0, kind: input, shape index: {}]
  %s1 = inlined_call_operand.vmem [shape: f32[4,16,1], index: 1, kind: input, shape index: {}]
  %s2 = inlined_call_operand.vmem [shape: f32[1,342], index: 2, kind: input, shape index: {}]
  %s3 = inlined_call_operand.vmem [shape: f32[1,288], index: 3, kind: input, shape index: {}]
  %s4 = inlined_call_operand.vmem [shape: bf16[3,216], index: 4, kind: input, shape index: {}]
  %s5 = inlined_call_operand.vmem [shape: f32[3,1], index: 5, kind: input, shape index: {}]
  %s6 = inlined_call_operand.vmem [shape: f32[4,3,288], index: 6, kind: output, shape index: {}]
  %s7 = sld [smem:[#allocation0]]
  $region57: #{solo_gan_forward.5} parent=0
    _
  %s9 = ssub.s32 1, %s7
  %s10 = scalar_select 0, %s9, %s7
  loop: start=0, step=1, limit=6
  $region2: #{solo_gan_forward.5} parent=0 // loop_pre_header
    _
  $region3: #{solo_gan_forward.5} parent=0 // loop_header
    %s12 = sphi 0, %s16
    %p13 = scmp.ge.s32.totalorder %s12, 6
    %s22 = sphi 0, %s24
    %s25 = sphi 0, %s22
    %s26 = sphi 0, %s25
    %s42 = sphi 0, %s26
    %s48 = sphi 0, %s50
    %s51 = sphi 0, %s48
    %s52 = sphi 0, %s51
    %s68 = sphi 0, %s52
    %s72 = sphi 0, %s72
    %s74 = sphi 0, %s72
    %s75 = sphi 0, %s74
    %s89 = sphi 0, %s75
    %s93 = sphi 0, %s93
    %s95 = sphi 0, %s93
    %s96 = sphi 0, %s95
    %s110 = sphi 0, %s96
    %s114 = sphi 0, %s114
    %s116 = sphi 0, %s114
    %s117 = sphi 0, %s116
    %s131 = sphi 0, %s117
    %s135 = sphi 0, %s135
    %s137 = sphi 0, %s135
    %s138 = sphi 0, %s137
    %s152 = sphi 0, %s138
    %s158 = sphi 0, %s160
    %s161 = sphi 0, %s158
    %s162 = sphi 0, %s161
    %s178 = sphi 0, %s162
  $region4: #{solo_gan_forward.5} parent=0 // loop_header_branch
    %15 = sbr.rel (%p13) target = $region8
  $region5: #{solo_gan_forward.5} parent=0 // loop_body
    %s17 = ssub.s32 %s12, 1
    %s18 = ssub.s32 %s12, 2
    %s19 = sadd.s32 %s12, 1
    %s20 = ssub.s32 %s12, %s19
    %p21 = scmp.eq.s32.totalorder %s20, 0
    %s23 = sadd.s32 %s22, 1
    %s24 = scalar_select %p21, %s22, %s23
    %p27 = pneg %p21
    %p28 = scmp.eq.s32.totalorder %s12, 3
    %p29 = por %p27, %p28
    %p30 = scmp.ne.s32.totalorder %s22, %s25
    %p31 = scmp.eq.s32.totalorder %s12, 0
    %p32 = por %p30, %p31
    %p33 = scmp.ne.s32.totalorder %s22, %s25
    %p34 = scmp.eq.s32.totalorder %s17, 3
    %p35 = por %p33, %p34
    %p36 = scmp.ne.s32.totalorder %s25, %s26
    %p37 = scmp.eq.s32.totalorder %s17, 0
    %p38 = por %p36, %p37
    %p39 = scmp.ne.s32.totalorder %s25, %s26
    %p40 = scmp.eq.s32.totalorder %s18, 3
    %p41 = por %p39, %p40
    %p43 = scmp.ne.s32.totalorder %s26, %s42
    %p44 = scmp.eq.s32.totalorder %s18, 0
    %p45 = por %p43, %p44
    %s46 = ssub.s32 %s12, %s19
    %p47 = scmp.eq.s32.totalorder %s46, 0
    %s49 = sadd.s32 %s48, 1
    %s50 = scalar_select %p47, %s48, %s49
    %p53 = pneg %p47
    %p54 = scmp.eq.s32.totalorder %s12, 3
    %p55 = por %p53, %p54
    %p56 = scmp.ne.s32.totalorder %s48, %s51
    %p57 = scmp.eq.s32.totalorder %s12, 0
    %p58 = por %p56, %p57
    %p59 = scmp.ne.s32.totalorder %s48, %s51
    %p60 = scmp.eq.s32.totalorder %s17, 3
    %p61 = por %p59, %p60
    %p62 = scmp.ne.s32.totalorder %s51, %s52
    %p63 = scmp.eq.s32.totalorder %s17, 0
    %p64 = por %p62, %p63
    %p65 = scmp.ne.s32.totalorder %s51, %s52
    %p66 = scmp.eq.s32.totalorder %s18, 3
    %p67 = por %p65, %p66
    %p69 = scmp.ne.s32.totalorder %s52, %s68
    %p70 = scmp.eq.s32.totalorder %s18, 0
    %p71 = por %p69, %p70
    %s73 = sadd.s32 %s72, 1
    %p76 = scmp.eq.s32.totalorder %s12, 3
    %p77 = scmp.ne.s32.totalorder %s72, %s74
    %p78 = scmp.eq.s32.totalorder %s12, 0
    %p79 = por %p77, %p78
    %p80 = scmp.ne.s32.totalorder %s72, %s74
    %p81 = scmp.eq.s32.totalorder %s17, 3
    %p82 = por %p80, %p81
    %p83 = scmp.ne.s32.totalorder %s74, %s75
    %p84 = scmp.eq.s32.totalorder %s17, 0
    %p85 = por %p83, %p84
    %p86 = scmp.ne.s32.totalorder %s74, %s75
    %p87 = scmp.eq.s32.totalorder %s18, 3
    %p88 = por %p86, %p87
    %p90 = scmp.ne.s32.totalorder %s75, %s89
    %p91 = scmp.eq.s32.totalorder %s18, 0
    %p92 = por %p90, %p91
    %s94 = sadd.s32 %s93, 1
    %p97 = scmp.eq.s32.totalorder %s12, 3
    %p98 = scmp.ne.s32.totalorder %s93, %s95
    %p99 = scmp.eq.s32.totalorder %s12, 0
    %p100 = por %p98, %p99
    %p101 = scmp.ne.s32.totalorder %s93, %s95
    %p102 = scmp.eq.s32.totalorder %s17, 3
    %p103 = por %p101, %p102
    %p104 = scmp.ne.s32.totalorder %s95, %s96
    %p105 = scmp.eq.s32.totalorder %s17, 0
    %p106 = por %p104, %p105
    %p107 = scmp.ne.s32.totalorder %s95, %s96
    %p108 = scmp.eq.s32.totalorder %s18, 3
    %p109 = por %p107, %p108
    %p111 = scmp.ne.s32.totalorder %s96, %s110
    %p112 = scmp.eq.s32.totalorder %s18, 0
    %p113 = por %p111, %p112
    %s115 = sadd.s32 %s114, 1
    %p118 = scmp.eq.s32.totalorder %s12, 3
    %p119 = scmp.ne.s32.totalorder %s114, %s116
    %p120 = scmp.eq.s32.totalorder %s12, 0
    %p121 = por %p119, %p120
    %p122 = scmp.ne.s32.totalorder %s114, %s116
    %p123 = scmp.eq.s32.totalorder %s17, 3
    %p124 = por %p122, %p123
    %p125 = scmp.ne.s32.totalorder %s116, %s117
    %p126 = scmp.eq.s32.totalorder %s17, 0
    %p127 = por %p125, %p126
    %p128 = scmp.ne.s32.totalorder %s116, %s117
    %p129 = scmp.eq.s32.totalorder %s18, 3
    %p130 = por %p128, %p129
    %p132 = scmp.ne.s32.totalorder %s117, %s131
    %p133 = scmp.eq.s32.totalorder %s18, 0
    %p134 = por %p132, %p133
    %s136 = sadd.s32 %s135, 1
    %p139 = scmp.eq.s32.totalorder %s12, 3
    %p140 = scmp.ne.s32.totalorder %s135, %s137
    %p141 = scmp.eq.s32.totalorder %s12, 0
    %p142 = por %p140, %p141
    %p143 = scmp.ne.s32.totalorder %s135, %s137
    %p144 = scmp.eq.s32.totalorder %s17, 3
    %p145 = por %p143, %p144
    %p146 = scmp.ne.s32.totalorder %s137, %s138
    %p147 = scmp.eq.s32.totalorder %s17, 0
    %p148 = por %p146, %p147
    %p149 = scmp.ne.s32.totalorder %s137, %s138
    %p150 = scmp.eq.s32.totalorder %s18, 3
    %p151 = por %p149, %p150
    %p153 = scmp.ne.s32.totalorder %s138, %s152
    %p154 = scmp.eq.s32.totalorder %s18, 0
    %p155 = por %p153, %p154
    %s156 = ssub.s32 %s12, %s19
    %p157 = scmp.eq.s32.totalorder %s156, 0
    %s159 = sadd.s32 %s158, 1
    %s160 = scalar_select %p157, %s158, %s159
    %p163 = pneg %p157
    %p164 = scmp.eq.s32.totalorder %s12, 3
    %p165 = por %p163, %p164
    %p166 = scmp.ne.s32.totalorder %s158, %s161
    %p167 = scmp.eq.s32.totalorder %s12, 0
    %p168 = por %p166, %p167
    %p169 = scmp.ne.s32.totalorder %s158, %s161
    %p170 = scmp.eq.s32.totalorder %s17, 3
    %p171 = por %p169, %p170
    %p172 = scmp.ne.s32.totalorder %s161, %s162
    %p173 = scmp.eq.s32.totalorder %s17, 0
    %p174 = por %p172, %p173
    %p175 = scmp.ne.s32.totalorder %s161, %s162
    %p176 = scmp.eq.s32.totalorder %s18, 3
    %p177 = por %p175, %p176
    %p179 = scmp.ne.s32.totalorder %s162, %s178
    %p180 = scmp.eq.s32.totalorder %s18, 0
    %p181 = por %p179, %p180
    %p182 = scmp.le.s32.totalorder 1, %s12
    %p183 = scmp.lt.s32.totalorder %s12, 5
    %p184 = pnand %p182, %p183
    %p185 = pneg %p184
    // Predicated region
    $region9: #{solo_gan_forward.5} parent=5 // pred_check
      _
    $region10: #{solo_gan_forward.5} parent=5 // pred_check_branch
      %187 = sbr.rel (%p184) target = $region12
    $region11: #{solo_gan_forward.5} parent=5 // pred_region
      %s188 = ssub.s32 %s12, 1
      // Predicated region
      $region13: #{solo_gan_forward.5} parent=11 // pred_check
        %p189 = pneg %p85
      $region14: #{solo_gan_forward.5} parent=11 // pred_check_branch
        %191 = sbr.rel (%p189) target = $region16
      $region15: #{solo_gan_forward.5} parent=11 // pred_region
        _
      $region16: #{solo_gan_forward.5} parent=11 // pred_fallthru
        _
      // Predicated region
      $region17: #{solo_gan_forward.5} parent=11 // pred_check
        %p192 = pneg %p106
      $region18: #{solo_gan_forward.5} parent=11 // pred_check_branch
        %194 = sbr.rel (%p192) target = $region20
      $region19: #{solo_gan_forward.5} parent=11 // pred_region
        _
      $region20: #{solo_gan_forward.5} parent=11 // pred_fallthru
        _
      // Predicated region
      $region21: #{solo_gan_forward.5} parent=11 // pred_check
        %p195 = pneg %p127
      $region22: #{solo_gan_forward.5} parent=11 // pred_check_branch
        %197 = sbr.rel (%p195) target = $region24
      $region23: #{solo_gan_forward.5} parent=11 // pred_region
        _
      $region24: #{solo_gan_forward.5} parent=11 // pred_fallthru
        _
      // Predicated region
      $region25: #{solo_gan_forward.5} parent=11 // pred_check
        %p198 = pneg %p148
      $region26: #{solo_gan_forward.5} parent=11 // pred_check_branch
        %200 = sbr.rel (%p198) target = $region28
      $region27: #{solo_gan_forward.5} parent=11 // pred_region
        _
      $region28: #{solo_gan_forward.5} parent=11 // pred_fallthru
        _
    $region12: #{solo_gan_forward.5} parent=5 // pred_fallthru
      _
    %p201 = scmp.lt.s32.totalorder %s12, 4
    // Predicated region
    $region29: #{solo_gan_forward.5} parent=5 // pred_check
      %p202 = pneg %p201
    $region30: #{solo_gan_forward.5} parent=5 // pred_check_branch
      %204 = sbr.rel (%p202) target = $region32
    $region31: #{solo_gan_forward.5} parent=5 // pred_region
      // Predicated region
      $region33: #{solo_gan_forward.5} parent=31 // pred_check
        %p205 = pneg %p32
      $region34: #{solo_gan_forward.5} parent=31 // pred_check_branch
        %207 = sbr.rel (%p205) target = $region36
      $region35: #{solo_gan_forward.5} parent=31 // pred_region
        %p208 = scmp.lt.s32.totalorder %s12, 3
        %s209 = scalar_select %p208, %s12, 3
        %s210 = smul.addr %s209, 3
        %s211 = smul.addr %s210, 8
        %s212 = scalar_lea.vmem %s0, %s211
      $region36: #{solo_gan_forward.5} parent=31 // pred_fallthru
        _
      // Predicated region
      $region37: #{solo_gan_forward.5} parent=31 // pred_check
        %p213 = pneg %p58
      $region38: #{solo_gan_forward.5} parent=31 // pred_check_branch
        %215 = sbr.rel (%p213) target = $region40
      $region39: #{solo_gan_forward.5} parent=31 // pred_region
        %p216 = scmp.lt.s32.totalorder %s12, 3
        %s217 = scalar_select %p216, %s12, 3
        %s218 = smul.addr %s217, 2
        %s219 = smul.addr %s218, 8
        %s220 = scalar_lea.vmem %s1, %s219
      $region40: #{solo_gan_forward.5} parent=31 // pred_fallthru
        _
    $region32: #{solo_gan_forward.5} parent=5 // pred_fallthru
      _
    %p221 = scmp.le.s32.totalorder 1, %s12
    %p222 = scmp.lt.s32.totalorder %s12, 5
    %p223 = pnand %p221, %p222
    %p224 = pneg %p223
    // Predicated region
    $region41: #{solo_gan_forward.5} parent=5 // pred_check
      _
    $region42: #{solo_gan_forward.5} parent=5 // pred_check_branch
      %226 = sbr.rel (%p223) target = $region44
    $region43: #{solo_gan_forward.5} parent=5 // pred_region
      %s227 = ssub.s32 %s12, 1
      %p228 = scmp.lt.s32.totalorder %s17, 3
      %s229 = scalar_select %p228, %s17, 3
      %s230 = smul.addr %s229, 3
      %s231 = smul.addr %s230, 8
      %s232 = scalar_lea.vmem %s0, %s231
      %p233 = pneg %p38
      %p234 = pneg %p35
      %p235 = scmp.lt.s32.totalorder %s17, 3
      %s236 = scalar_select %p235, %s17, 3
      %s237 = smul.addr %s236, 2
      %s238 = smul.addr %s237, 8
      %s239 = scalar_lea.vmem %s1, %s238
      %p240 = pneg %p64
      %p241 = pneg %p61
      %p242 = pneg %p85
      %p243 = pneg %p82
      %p244 = pneg %p106
      %p245 = pneg %p103
      %p246 = pneg %p127
      %p247 = pneg %p124
      %p248 = pneg %p148
      %p249 = pneg %p145
      %p250 = pneg %p174
      %p251 = pneg %p171
      %p252 = scmp.lt.s32.totalorder %s17, 3
      %s253 = scalar_select %p252, %s17, 3
      %s254 = smul.addr %s253, 3
      %s255 = smul.addr %s254, 4
      %s256 = scalar_lea.vmem %s6, %s255
      %p257 = scmp.lt.s32.totalorder %s17, 3
      %s258 = scalar_select %p257, %s17, 3
      %s259 = smul.addr %s258, 3
      %s260 = smul.addr %s259, 8
      %s261 = scalar_lea.vmem %s0, %s260
      %p262 = scmp.lt.s32.totalorder %s17, 3
      %s263 = scalar_select %p262, %s17, 3
      %s264 = smul.addr %s263, 2
      %s265 = smul.addr %s264, 8
      %s266 = scalar_lea.vmem %s1, %s265
      %p267 = scmp.lt.s32.totalorder %s17, 3
      %s268 = scalar_select %p267, %s17, 3
      %s269 = smul.addr %s268, 3
      %s270 = smul.addr %s269, 4
      %s271 = scalar_lea.vmem %s6, %s270
      %v273 = vld [vmem:[%s266] sm:$0xff]
      %v274 = vld [vmem:[%s266 + $0x8] sm:$0xff]
      %v275 = vld [vmem:[%s2] sm:$0x7]
      %277 = vset.pattern.permute.xlu0 0
      %278 = vperm.xlu0 %277, %v273
      %v279 = vpop.permute.xlu0 %278
      %282 = vset.pattern.permute.xlu0 0
      %283 = vperm.xlu0 %282, %v274
      %v284 = vpop.permute.xlu0 %283
      %v287 = vlaneseq
      %v288 = vshrl.u32 %v287, 7
      %v289 = vsub.s32 0, %v288
      %v290 = vrot.slane %v275, %v289
      %v291 = vlaneseq
      %v292 = vshrl.u32 %v291, 7
      %v293 = vsub.s32 1, %v292
      %v294 = vrot.slane %v275, %v293
      %v295 = vlaneseq
      %v296 = vshrl.u32 %v295, 7
      %v297 = vsub.s32 2, %v296
      %v298 = vrot.slane %v275, %v297
      %v302 = vmul.f32 %v279, %v290
      %v303 = vmul.f32 %v279, %v294
      %v304 = vmul.f32 %v279, %v298
      %v305 = vmul.f32 %v284, %v290
      %v306 = vmul.f32 %v284, %v294
      %v307 = vmul.f32 %v284, %v298
      %v308 = vld [vmem:[%s261] sm:$0xff]
      %v309 = vld [vmem:[%s261 + $0x8] sm:$0xff]
      %v310 = vld [vmem:[%s261 + $0x10] sm:$0xff]
      %320 = vrot.lane.b32.xlu0 %v308, 127
      %v321 = vpop.permute.xlu0 %320
      %322 = vrot.lane.b32.xlu0 %v309, 127
      %v323 = vpop.permute.xlu0 %322
      %324 = vrot.lane.b32.xlu0 %v310, 127
      %v325 = vpop.permute.xlu0 %324
      %326 = vrot.lane.b32.xlu0 %v302, 127
      %v327 = vpop.permute.xlu0 %326
      %328 = vrot.lane.b32.xlu0 %v303, 127
      %v329 = vpop.permute.xlu0 %328
      %330 = vrot.lane.b32.xlu0 %v304, 127
      %v331 = vpop.permute.xlu0 %330
      %332 = vrot.lane.b32.xlu0 %v305, 127
      %v333 = vpop.permute.xlu0 %332
      %334 = vrot.lane.b32.xlu0 %v306, 127
      %v335 = vpop.permute.xlu0 %334
      %336 = vrot.lane.b32.xlu0 %v307, 127
      %v337 = vpop.permute.xlu0 %336
      %vm338 = vcmask 1039360
      %v339 = vsel %vm338, %v321, %v323
      %v340 = vsel %vm338, %v323, %v325
      %v341 = vsel %vm338, %v327, %v329
      %v342 = vsel %vm338, %v329, %v331
      %v343 = vsel %vm338, %v333, %v335
      %v344 = vsel %vm338, %v335, %v337
      %354 = vrot.lane.b32.xlu0 %v308, 126
      %v355 = vpop.permute.xlu0 %354
      %356 = vrot.lane.b32.xlu0 %v309, 126
      %v357 = vpop.permute.xlu0 %356
      %358 = vrot.lane.b32.xlu0 %v310, 126
      %v359 = vpop.permute.xlu0 %358
      %360 = vrot.lane.b32.xlu0 %v302, 126
      %v361 = vpop.permute.xlu0 %360
      %362 = vrot.lane.b32.xlu0 %v303, 126
      %v363 = vpop.permute.xlu0 %362
      %364 = vrot.lane.b32.xlu0 %v304, 126
      %v365 = vpop.permute.xlu0 %364
      %366 = vrot.lane.b32.xlu0 %v305, 126
      %v367 = vpop.permute.xlu0 %366
      %368 = vrot.lane.b32.xlu0 %v306, 126
      %v369 = vpop.permute.xlu0 %368
      %370 = vrot.lane.b32.xlu0 %v307, 126
      %v371 = vpop.permute.xlu0 %370
      %vm372 = vcmask 1031168
      %v373 = vsel %vm372, %v355, %v357
      %v374 = vsel %vm372, %v357, %v359
      %v375 = vsel %vm372, %v361, %v363
      %v376 = vsel %vm372, %v363, %v365
      %v377 = vsel %vm372, %v367, %v369
      %v378 = vsel %vm372, %v369, %v371
      %388 = vrot.lane.b32.xlu0 %v308, 110
      %v389 = vpop.permute.xlu0 %388
      %390 = vrot.lane.b32.xlu0 %v309, 110
      %v391 = vpop.permute.xlu0 %390
      %392 = vrot.lane.b32.xlu0 %v310, 110
      %v393 = vpop.permute.xlu0 %392
      %394 = vrot.lane.b32.xlu0 %v302, 110
      %v395 = vpop.permute.xlu0 %394
      %396 = vrot.lane.b32.xlu0 %v303, 110
      %v397 = vpop.permute.xlu0 %396
      %398 = vrot.lane.b32.xlu0 %v304, 110
      %v399 = vpop.permute.xlu0 %398
      %400 = vrot.lane.b32.xlu0 %v305, 110
      %v401 = vpop.permute.xlu0 %400
      %402 = vrot.lane.b32.xlu0 %v306, 110
      %v403 = vpop.permute.xlu0 %402
      %404 = vrot.lane.b32.xlu0 %v307, 110
      %v405 = vpop.permute.xlu0 %404
      %vm406 = vcmask 900096
      %v407 = vsel %vm406, %v389, %v391
      %v408 = vsel %vm406, %v391, %v393
      %v409 = vsel %vm406, %v395, %v397
      %v410 = vsel %vm406, %v397, %v399
      %v411 = vsel %vm406, %v401, %v403
      %v412 = vsel %vm406, %v403, %v405
      %422 = vrot.lane.b32.xlu0 %v308, 109
      %v423 = vpop.permute.xlu0 %422
      %424 = vrot.lane.b32.xlu0 %v309, 109
      %v425 = vpop.permute.xlu0 %424
      %426 = vrot.lane.b32.xlu0 %v310, 109
      %v427 = vpop.permute.xlu0 %426
      %428 = vrot.lane.b32.xlu0 %v302, 109
      %v429 = vpop.permute.xlu0 %428
      %430 = vrot.lane.b32.xlu0 %v303, 109
      %v431 = vpop.permute.xlu0 %430
      %432 = vrot.lane.b32.xlu0 %v304, 109
      %v433 = vpop.permute.xlu0 %432
      %434 = vrot.lane.b32.xlu0 %v305, 109
      %v435 = vpop.permute.xlu0 %434
      %436 = vrot.lane.b32.xlu0 %v306, 109
      %v437 = vpop.permute.xlu0 %436
      %438 = vrot.lane.b32.xlu0 %v307, 109
      %v439 = vpop.permute.xlu0 %438
      %vm440 = vcmask 891904
      %v441 = vsel %vm440, %v423, %v425
      %v442 = vsel %vm440, %v425, %v427
      %v443 = vsel %vm440, %v429, %v431
      %v444 = vsel %vm440, %v431, %v433
      %v445 = vsel %vm440, %v435, %v437
      %v446 = vsel %vm440, %v437, %v439
      %456 = vrot.lane.b32.xlu0 %v308, 108
      %v457 = vpop.permute.xlu0 %456
      %458 = vrot.lane.b32.xlu0 %v309, 108
      %v459 = vpop.permute.xlu0 %458
      %460 = vrot.lane.b32.xlu0 %v310, 108
      %v461 = vpop.permute.xlu0 %460
      %462 = vrot.lane.b32.xlu0 %v302, 108
      %v463 = vpop.permute.xlu0 %462
      %464 = vrot.lane.b32.xlu0 %v303, 108
      %v465 = vpop.permute.xlu0 %464
      %466 = vrot.lane.b32.xlu0 %v304, 108
      %v467 = vpop.permute.xlu0 %466
      %468 = vrot.lane.b32.xlu0 %v305, 108
      %v469 = vpop.permute.xlu0 %468
      %470 = vrot.lane.b32.xlu0 %v306, 108
      %v471 = vpop.permute.xlu0 %470
      %472 = vrot.lane.b32.xlu0 %v307, 108
      %v473 = vpop.permute.xlu0 %472
      %vm474 = vcmask 883712
      %v475 = vsel %vm474, %v457, %v459
      %v476 = vsel %vm474, %v459, %v461
      %v477 = vsel %vm474, %v463, %v465
      %v478 = vsel %vm474, %v465, %v467
      %v479 = vsel %vm474, %v469, %v471
      %v480 = vsel %vm474, %v471, %v473
      %490 = vrot.lane.b32.xlu0 %v308, 92
      %v491 = vpop.permute.xlu0 %490
      %492 = vrot.lane.b32.xlu0 %v309, 92
      %v493 = vpop.permute.xlu0 %492
      %494 = vrot.lane.b32.xlu0 %v310, 92
      %v495 = vpop.permute.xlu0 %494
      %496 = vrot.lane.b32.xlu0 %v302, 92
      %v497 = vpop.permute.xlu0 %496
      %498 = vrot.lane.b32.xlu0 %v303, 92
      %v499 = vpop.permute.xlu0 %498
      %500 = vrot.lane.b32.xlu0 %v304, 92
      %v501 = vpop.permute.xlu0 %500
      %502 = vrot.lane.b32.xlu0 %v305, 92
      %v503 = vpop.permute.xlu0 %502
      %504 = vrot.lane.b32.xlu0 %v306, 92
      %v505 = vpop.permute.xlu0 %504
      %506 = vrot.lane.b32.xlu0 %v307, 92
      %v507 = vpop.permute.xlu0 %506
      %vm508 = vcmask 752640
      %v509 = vsel %vm508, %v491, %v493
      %v510 = vsel %vm508, %v493, %v495
      %v511 = vsel %vm508, %v497, %v499
      %v512 = vsel %vm508, %v499, %v501
      %v513 = vsel %vm508, %v503, %v505
      %v514 = vsel %vm508, %v505, %v507
      %524 = vrot.lane.b32.xlu0 %v308, 91
      %v525 = vpop.permute.xlu0 %524
      %526 = vrot.lane.b32.xlu0 %v309, 91
      %v527 = vpop.permute.xlu0 %526
      %528 = vrot.lane.b32.xlu0 %v310, 91
      %v529 = vpop.permute.xlu0 %528
      %530 = vrot.lane.b32.xlu0 %v302, 91
      %v531 = vpop.permute.xlu0 %530
      %532 = vrot.lane.b32.xlu0 %v303, 91
      %v533 = vpop.permute.xlu0 %532
      %534 = vrot.lane.b32.xlu0 %v304, 91
      %v535 = vpop.permute.xlu0 %534
      %536 = vrot.lane.b32.xlu0 %v305, 91
      %v537 = vpop.permute.xlu0 %536
      %538 = vrot.lane.b32.xlu0 %v306, 91
      %v539 = vpop.permute.xlu0 %538
      %540 = vrot.lane.b32.xlu0 %v307, 91
      %v541 = vpop.permute.xlu0 %540
      %vm542 = vcmask 744448
      %v543 = vsel %vm542, %v525, %v527
      %v544 = vsel %vm542, %v527, %v529
      %v545 = vsel %vm542, %v531, %v533
      %v546 = vsel %vm542, %v533, %v535
      %v547 = vsel %vm542, %v537, %v539
      %v548 = vsel %vm542, %v539, %v541
      %558 = vrot.lane.b32.xlu0 %v308, 90
      %v559 = vpop.permute.xlu0 %558
      %560 = vrot.lane.b32.xlu0 %v309, 90
      %v561 = vpop.permute.xlu0 %560
      %562 = vrot.lane.b32.xlu0 %v310, 90
      %v563 = vpop.permute.xlu0 %562
      %564 = vrot.lane.b32.xlu0 %v302, 90
      %v565 = vpop.permute.xlu0 %564
      %566 = vrot.lane.b32.xlu0 %v303, 90
      %v567 = vpop.permute.xlu0 %566
      %568 = vrot.lane.b32.xlu0 %v304, 90
      %v569 = vpop.permute.xlu0 %568
      %570 = vrot.lane.b32.xlu0 %v305, 90
      %v571 = vpop.permute.xlu0 %570
      %572 = vrot.lane.b32.xlu0 %v306, 90
      %v573 = vpop.permute.xlu0 %572
      %574 = vrot.lane.b32.xlu0 %v307, 90
      %v575 = vpop.permute.xlu0 %574
      %vm576 = vcmask 736256
      %v577 = vsel %vm576, %v559, %v561
      %v578 = vsel %vm576, %v561, %v563
      %v579 = vsel %vm576, %v565, %v567
      %v580 = vsel %vm576, %v567, %v569
      %v581 = vsel %vm576, %v571, %v573
      %v582 = vsel %vm576, %v573, %v575
      %v592 = vld [vmem:[%s4] sm:$0xf]
      %v593 = vpack.c.bf16 %v302, %v308
      %v594 = vpack.c.bf16 %v303, %v309
      %v595 = vpack.c.bf16 %v304, %v310
      %v596 = vpack.c.bf16 %v339, %v305
      %v597 = vpack.c.bf16 %v340, %v306
      %v598 = vpack.c.bf16 %v325, %v307
      %v599 = vpack.c.bf16 %v343, %v341
      %v600 = vpack.c.bf16 %v344, %v342
      %v601 = vpack.c.bf16 %v337, %v331
      %v602 = vpack.c.bf16 %v375, %v373
      %v603 = vpack.c.bf16 %v376, %v374
      %v604 = vpack.c.bf16 %v365, %v359
      %v605 = vpack.c.bf16 %v407, %v377
      %v606 = vpack.c.bf16 %v408, %v378
      %v607 = vpack.c.bf16 %v393, %v371
      %v608 = vpack.c.bf16 %v411, %v409
      %v609 = vpack.c.bf16 %v412, %v410
      %v610 = vpack.c.bf16 %v405, %v399
      %v611 = vpack.c.bf16 %v443, %v441
      %v612 = vpack.c.bf16 %v444, %v442
      %v613 = vpack.c.bf16 %v433, %v427
      %v614 = vpack.c.bf16 %v475, %v445
      %v615 = vpack.c.bf16 %v476, %v446
      %v616 = vpack.c.bf16 %v461, %v439
      %v617 = vpack.c.bf16 %v479, %v477
      %v618 = vpack.c.bf16 %v480, %v478
      %v619 = vpack.c.bf16 %v473, %v467
      %v620 = vpack.c.bf16 %v511, %v509
      %v621 = vpack.c.bf16 %v512, %v510
      %v622 = vpack.c.bf16 %v501, %v495
      %v623 = vpack.c.bf16 %v543, %v513
      %v624 = vpack.c.bf16 %v544, %v514
      %v625 = vpack.c.bf16 %v529, %v507
      %v626 = vpack.c.bf16 %v547, %v545
      %v627 = vpack.c.bf16 %v548, %v546
      %v628 = vpack.c.bf16 %v541, %v535
      %v629 = vpack.c.bf16 %v579, %v577
      %v630 = vpack.c.bf16 %v580, %v578
      %v631 = vpack.c.bf16 %v569, %v563
      %v632 = vpack.c.bf16 %v581, %v581
      %v633 = vpack.c.bf16 %v582, %v582
      %v634 = vpack.c.bf16 %v575, %v575
      %v635 = vld [vmem:[%s5] sm:$0x7]
      %637 = vset.pattern.permute.xlu0 0
      %638 = vperm.xlu0 %637, %v635
      %v639 = vpop.permute.xlu0 %638
      %v643 = vunpack.c.l.s4 1983009808
      %v644 = vunpack.c.0.s8 %v643
      %v645 = vlaneseq
      %v646 = vshrl.u32 %v645, 7
      %v647 = vsub.s32 %v644, %v646
      %v648 = vrot.slane %v592, %v647
      %v649 = vcombine.high %v648, %v648
      %vm651 = vcmask 719872
      %v653 = vsel %vm651, %v649, 0
      %vm655 = vcmask 1043456
      %v657 = vsel %vm655, %v632, 0
      %v660 = vsel %vm655, %v633, 0
      %v663 = vsel %vm655, %v634, 0
      %665 = vmatprep.subr.bf16.mxu0 %v594
      %666 = vmatpush1.bf16.msra.mxu0 %v593
      %667 = vmatprep.subr.bf16.mxu0 %v597
      %668 = vmatpush1.bf16.msra.mxu0 %v596
      %669 = vmatprep.subr.bf16.mxu0 %v600
      %670 = vmatpush1.bf16.msra.mxu0 %v599
      %671 = vmatprep.subr.bf16.mxu0 %v603
      %672 = vmatpush1.bf16.msra.mxu0 %v602
      %673 = vmatprep.subr.bf16.mxu0 %v606
      %674 = vmatpush1.bf16.msra.mxu0 %v605
      %675 = vmatprep.subr.bf16.mxu0 %v609
      %676 = vmatpush1.bf16.msra.mxu0 %v608
      %677 = vmatprep.subr.bf16.mxu0 %v612
      %678 = vmatpush1.bf16.msra.mxu0 %v611
      %679 = vmatprep.subr.bf16.mxu0 %v615
      %680 = vmatpush1.bf16.msra.mxu0 %v614
      %681 = vmatprep.subr.bf16.mxu0 %v618
      %682 = vmatpush1.bf16.msra.mxu0 %v617
      %683 = vmatprep.subr.bf16.mxu0 %v621
      %684 = vmatpush1.bf16.msra.mxu0 %v620
      %685 = vmatprep.subr.bf16.mxu0 %v624
      %686 = vmatpush1.bf16.msra.mxu0 %v623
      %687 = vmatprep.subr.bf16.mxu0 %v627
      %688 = vmatpush1.bf16.msra.mxu0 %v626
      %689 = vmatprep.subr.bf16.mxu0 %v630
      %690 = vmatpush1.bf16.msra.mxu0 %v629
      %691 = vmatprep.subr.bf16.mxu0 %v660
      %692 = vmatpush1.bf16.msra.mxu0 %v657
      %693 = vmatprep.subr.bf16.mxu0 0
      %694 = vmatpush1.bf16.msra.mxu0 0
      %695 = vmatprep.subr.bf16.mxu0 0
      %696 = vmatpush1.bf16.msra.mxu0 0
      %697 = vmatprep.mubr.bf16.mxu0 %v653
      %698 = vmatmul.mubr.bf16.gmra.mrb[0].mxu0 %v648
      %v699 = vpop.f32.mrb[0].mxu0
      %v700 = vadd.f32 %v639, %v699
      %v701 = vpop.f32.mrb[0].mxu0
      %v702 = vadd.f32 %v639, %v701
      %v703 = vpop.f32.mrb[0].mxu0
      %v704 = vpop.f32.mrb[0].mxu0
      %705 = vdwg.mxu0
      %706 = vmatprep.subr.bf16.mxu0 0
      %707 = vmatpush1.bf16.msra.mxu0 %v595
      %708 = vmatprep.subr.bf16.mxu0 0
      %709 = vmatpush1.bf16.msra.mxu0 %v598
      %710 = vmatprep.subr.bf16.mxu0 0
      %711 = vmatpush1.bf16.msra.mxu0 %v601
      %712 = vmatprep.subr.bf16.mxu0 0
      %713 = vmatpush1.bf16.msra.mxu0 %v604
      %714 = vmatprep.subr.bf16.mxu0 0
      %715 = vmatpush1.bf16.msra.mxu0 %v607
      %716 = vmatprep.subr.bf16.mxu0 0
      %717 = vmatpush1.bf16.msra.mxu0 %v610
      %718 = vmatprep.subr.bf16.mxu0 0
      %719 = vmatpush1.bf16.msra.mxu0 %v613
      %720 = vmatprep.subr.bf16.mxu0 0
      %721 = vmatpush1.bf16.msra.mxu0 %v616
      %722 = vmatprep.subr.bf16.mxu0 0
      %723 = vmatpush1.bf16.msra.mxu0 %v619
      %724 = vmatprep.subr.bf16.mxu0 0
      %725 = vmatpush1.bf16.msra.mxu0 %v622
      %726 = vmatprep.subr.bf16.mxu0 0
      %727 = vmatpush1.bf16.msra.mxu0 %v625
      %728 = vmatprep.subr.bf16.mxu0 0
      %729 = vmatpush1.bf16.msra.mxu0 %v628
      %730 = vmatprep.subr.bf16.mxu0 0
      %731 = vmatpush1.bf16.msra.mxu0 %v631
      %732 = vmatprep.subr.bf16.mxu0 0
      %733 = vmatpush1.bf16.msra.mxu0 %v663
      %734 = vmatprep.subr.bf16.mxu0 0
      %735 = vmatpush1.bf16.msra.mxu0 0
      %736 = vmatprep.subr.bf16.mxu0 0
      %737 = vmatpush1.bf16.msra.mxu0 0
      %738 = vmatprep.mubr.bf16.mxu0 %v653
      %739 = vmatmul.mubr.bf16.gmra.mrb[0].mxu0 %v648
      %v740 = vpop.f32.mrb[0].mxu0
      %v741 = vadd.f32 %v639, %v740
      %v742 = vpop.f32.mrb[0].mxu0
      %v743 = vpop.f32.mrb[0].mxu0
      %v744 = vpop.f32.mrb[0].mxu0
      %745 = vdwg.mxu0
      %v746 = vtanh.pop %v700
      %v747 = vtanh.pop %v702
      %v748 = vtanh.pop %v741
      %v749 = vld [vmem:[%s3] sm:$0x7]
      %v751 = vlaneseq
      %v752 = vshrl.u32 %v751, 7
      %v753 = vsub.s32 0, %v752
      %v754 = vrot.slane %v749, %v753
      %v755 = vlaneseq
      %v756 = vshrl.u32 %v755, 7
      %v757 = vsub.s32 1, %v756
      %v758 = vrot.slane %v749, %v757
      %v759 = vlaneseq
      %v760 = vshrl.u32 %v759, 7
      %v761 = vsub.s32 2, %v760
      %v762 = vrot.slane %v749, %v761
      %v766 = vmul.f32 %v746, %v754
      %v767 = vmul.f32 %v747, %v758
      %v768 = vmul.f32 %v748, %v762
      %v771 = vcombine.low %v766, %v767
      %773 = vst [vmem:[%s271] sm:$0x77] %v771
      %vm774 = vcmask 256000
      %775 = vst.msk [vmem:[%s271 + $0x8] sm:$0x7] %vm774, %v768
      %p776 = scmp.lt.s32.totalorder %s17, 3
      %s777 = scalar_select %p776, %s17, 3
      %s778 = smul.addr %s777, 3
      %s779 = smul.addr %s778, 4
      %s780 = scalar_lea.vmem %s6, %s779
      // Predicated region
      $region45: #{solo_gan_forward.5} parent=43 // pred_check
        %p781 = pneg %p171
      $region46: #{solo_gan_forward.5} parent=43 // pred_check_branch
        %783 = sbr.rel (%p781) target = $region48
      $region47: #{solo_gan_forward.5} parent=43 // pred_region
        _
      $region48: #{solo_gan_forward.5} parent=43 // pred_fallthru
        _
    $region44: #{solo_gan_forward.5} parent=5 // pred_fallthru
      _
    %p784 = scmp.le.s32.totalorder 2, %s12
    // Predicated region
    $region49: #{solo_gan_forward.5} parent=5 // pred_check
      %p785 = pneg %p784
    $region50: #{solo_gan_forward.5} parent=5 // pred_check_branch
      %787 = sbr.rel (%p785) target = $region52
    $region51: #{solo_gan_forward.5} parent=5 // pred_region
      %s788 = ssub.s32 %s12, 2
      // Predicated region
      $region53: #{solo_gan_forward.5} parent=51 // pred_check
        %p789 = pneg %p177
      $region54: #{solo_gan_forward.5} parent=51 // pred_check_branch
        %791 = sbr.rel (%p789) target = $region56
      $region55: #{solo_gan_forward.5} parent=51 // pred_region
        %p792 = scmp.lt.s32.totalorder %s18, 3
        %s793 = scalar_select %p792, %s18, 3
        %s794 = smul.addr %s793, 3
        %s795 = smul.addr %s794, 4
        %s796 = scalar_lea.vmem %s6, %s795
      $region56: #{solo_gan_forward.5} parent=51 // pred_fallthru
        _
    $region52: #{solo_gan_forward.5} parent=5 // pred_fallthru
      _
  $region6: #{solo_gan_forward.5} parent=0 // loop_footer
    %s16 = sadd.s32 1, %s12
  $region7: #{solo_gan_forward.5} parent=0 // loop_footer_branch
    %11 = sbr.rel target = $region3
  $region8: #{solo_gan_forward.5} parent=0 // loop_exit
    _

// kernel: solo_gan_forward.7
$region0: #{solo_gan_forward.7}
  #allocation0 [shape = 'u32[]', space=smem, size = 0x4, offset = 0x4, fixed_abs, tag = 'smem constant byte address 0x4 - core index']
  #allocation1 [shape = 'u32[144,128]{1,0:T(1,128)}', space=vmem, size = 0x12000, scoped, tag = 'internal scratch']
  %s0 = inlined_call_operand.vmem [shape: f32[2,8,342], index: 0, kind: input, shape index: {}]
  %s1 = inlined_call_operand.vmem [shape: f32[2,16,1], index: 1, kind: input, shape index: {}]
  %s2 = inlined_call_operand.vmem [shape: f32[1,342], index: 2, kind: input, shape index: {}]
  %s3 = inlined_call_operand.vmem [shape: f32[1,288], index: 3, kind: input, shape index: {}]
  %s4 = inlined_call_operand.vmem [shape: bf16[3,216], index: 4, kind: input, shape index: {}]
  %s5 = inlined_call_operand.vmem [shape: f32[3,1], index: 5, kind: input, shape index: {}]
  %s6 = inlined_call_operand.vmem [shape: f32[2,3,288], index: 6, kind: output, shape index: {}]
  %s7 = sld [smem:[#allocation0]]
  $region57: #{solo_gan_forward.7} parent=0
    _
  %s9 = ssub.s32 1, %s7
  %s10 = scalar_select 0, %s9, %s7
  loop: start=0, step=1, limit=4
  $region2: #{solo_gan_forward.7} parent=0 // loop_pre_header
    _
  $region3: #{solo_gan_forward.7} parent=0 // loop_header
    %s12 = sphi 0, %s16
    %p13 = scmp.ge.s32.totalorder %s12, 4
    %s22 = sphi 0, %s24
    %s25 = sphi 0, %s22
    %s26 = sphi 0, %s25
    %s42 = sphi 0, %s26
    %s48 = sphi 0, %s50
    %s51 = sphi 0, %s48
    %s52 = sphi 0, %s51
    %s68 = sphi 0, %s52
    %s72 = sphi 0, %s72
    %s74 = sphi 0, %s72
    %s75 = sphi 0, %s74
    %s89 = sphi 0, %s75
    %s93 = sphi 0, %s93
    %s95 = sphi 0, %s93
    %s96 = sphi 0, %s95
    %s110 = sphi 0, %s96
    %s114 = sphi 0, %s114
    %s116 = sphi 0, %s114
    %s117 = sphi 0, %s116
    %s131 = sphi 0, %s117
    %s135 = sphi 0, %s135
    %s137 = sphi 0, %s135
    %s138 = sphi 0, %s137
    %s152 = sphi 0, %s138
    %s158 = sphi 0, %s160
    %s161 = sphi 0, %s158
    %s162 = sphi 0, %s161
    %s178 = sphi 0, %s162
  $region4: #{solo_gan_forward.7} parent=0 // loop_header_branch
    %15 = sbr.rel (%p13) target = $region8
  $region5: #{solo_gan_forward.7} parent=0 // loop_body
    %s17 = ssub.s32 %s12, 1
    %s18 = ssub.s32 %s12, 2
    %s19 = sadd.s32 %s12, 1
    %s20 = ssub.s32 %s12, %s19
    %p21 = scmp.eq.s32.totalorder %s20, 0
    %s23 = sadd.s32 %s22, 1
    %s24 = scalar_select %p21, %s22, %s23
    %p27 = pneg %p21
    %p28 = scmp.eq.s32.totalorder %s12, 1
    %p29 = por %p27, %p28
    %p30 = scmp.ne.s32.totalorder %s22, %s25
    %p31 = scmp.eq.s32.totalorder %s12, 0
    %p32 = por %p30, %p31
    %p33 = scmp.ne.s32.totalorder %s22, %s25
    %p34 = scmp.eq.s32.totalorder %s17, 1
    %p35 = por %p33, %p34
    %p36 = scmp.ne.s32.totalorder %s25, %s26
    %p37 = scmp.eq.s32.totalorder %s17, 0
    %p38 = por %p36, %p37
    %p39 = scmp.ne.s32.totalorder %s25, %s26
    %p40 = scmp.eq.s32.totalorder %s18, 1
    %p41 = por %p39, %p40
    %p43 = scmp.ne.s32.totalorder %s26, %s42
    %p44 = scmp.eq.s32.totalorder %s18, 0
    %p45 = por %p43, %p44
    %s46 = ssub.s32 %s12, %s19
    %p47 = scmp.eq.s32.totalorder %s46, 0
    %s49 = sadd.s32 %s48, 1
    %s50 = scalar_select %p47, %s48, %s49
    %p53 = pneg %p47
    %p54 = scmp.eq.s32.totalorder %s12, 1
    %p55 = por %p53, %p54
    %p56 = scmp.ne.s32.totalorder %s48, %s51
    %p57 = scmp.eq.s32.totalorder %s12, 0
    %p58 = por %p56, %p57
    %p59 = scmp.ne.s32.totalorder %s48, %s51
    %p60 = scmp.eq.s32.totalorder %s17, 1
    %p61 = por %p59, %p60
    %p62 = scmp.ne.s32.totalorder %s51, %s52
    %p63 = scmp.eq.s32.totalorder %s17, 0
    %p64 = por %p62, %p63
    %p65 = scmp.ne.s32.totalorder %s51, %s52
    %p66 = scmp.eq.s32.totalorder %s18, 1
    %p67 = por %p65, %p66
    %p69 = scmp.ne.s32.totalorder %s52, %s68
    %p70 = scmp.eq.s32.totalorder %s18, 0
    %p71 = por %p69, %p70
    %s73 = sadd.s32 %s72, 1
    %p76 = scmp.eq.s32.totalorder %s12, 1
    %p77 = scmp.ne.s32.totalorder %s72, %s74
    %p78 = scmp.eq.s32.totalorder %s12, 0
    %p79 = por %p77, %p78
    %p80 = scmp.ne.s32.totalorder %s72, %s74
    %p81 = scmp.eq.s32.totalorder %s17, 1
    %p82 = por %p80, %p81
    %p83 = scmp.ne.s32.totalorder %s74, %s75
    %p84 = scmp.eq.s32.totalorder %s17, 0
    %p85 = por %p83, %p84
    %p86 = scmp.ne.s32.totalorder %s74, %s75
    %p87 = scmp.eq.s32.totalorder %s18, 1
    %p88 = por %p86, %p87
    %p90 = scmp.ne.s32.totalorder %s75, %s89
    %p91 = scmp.eq.s32.totalorder %s18, 0
    %p92 = por %p90, %p91
    %s94 = sadd.s32 %s93, 1
    %p97 = scmp.eq.s32.totalorder %s12, 1
    %p98 = scmp.ne.s32.totalorder %s93, %s95
    %p99 = scmp.eq.s32.totalorder %s12, 0
    %p100 = por %p98, %p99
    %p101 = scmp.ne.s32.totalorder %s93, %s95
    %p102 = scmp.eq.s32.totalorder %s17, 1
    %p103 = por %p101, %p102
    %p104 = scmp.ne.s32.totalorder %s95, %s96
    %p105 = scmp.eq.s32.totalorder %s17, 0
    %p106 = por %p104, %p105
    %p107 = scmp.ne.s32.totalorder %s95, %s96
    %p108 = scmp.eq.s32.totalorder %s18, 1
    %p109 = por %p107, %p108
    %p111 = scmp.ne.s32.totalorder %s96, %s110
    %p112 = scmp.eq.s32.totalorder %s18, 0
    %p113 = por %p111, %p112
    %s115 = sadd.s32 %s114, 1
    %p118 = scmp.eq.s32.totalorder %s12, 1
    %p119 = scmp.ne.s32.totalorder %s114, %s116
    %p120 = scmp.eq.s32.totalorder %s12, 0
    %p121 = por %p119, %p120
    %p122 = scmp.ne.s32.totalorder %s114, %s116
    %p123 = scmp.eq.s32.totalorder %s17, 1
    %p124 = por %p122, %p123
    %p125 = scmp.ne.s32.totalorder %s116, %s117
    %p126 = scmp.eq.s32.totalorder %s17, 0
    %p127 = por %p125, %p126
    %p128 = scmp.ne.s32.totalorder %s116, %s117
    %p129 = scmp.eq.s32.totalorder %s18, 1
    %p130 = por %p128, %p129
    %p132 = scmp.ne.s32.totalorder %s117, %s131
    %p133 = scmp.eq.s32.totalorder %s18, 0
    %p134 = por %p132, %p133
    %s136 = sadd.s32 %s135, 1
    %p139 = scmp.eq.s32.totalorder %s12, 1
    %p140 = scmp.ne.s32.totalorder %s135, %s137
    %p141 = scmp.eq.s32.totalorder %s12, 0
    %p142 = por %p140, %p141
    %p143 = scmp.ne.s32.totalorder %s135, %s137
    %p144 = scmp.eq.s32.totalorder %s17, 1
    %p145 = por %p143, %p144
    %p146 = scmp.ne.s32.totalorder %s137, %s138
    %p147 = scmp.eq.s32.totalorder %s17, 0
    %p148 = por %p146, %p147
    %p149 = scmp.ne.s32.totalorder %s137, %s138
    %p150 = scmp.eq.s32.totalorder %s18, 1
    %p151 = por %p149, %p150
    %p153 = scmp.ne.s32.totalorder %s138, %s152
    %p154 = scmp.eq.s32.totalorder %s18, 0
    %p155 = por %p153, %p154
    %s156 = ssub.s32 %s12, %s19
    %p157 = scmp.eq.s32.totalorder %s156, 0
    %s159 = sadd.s32 %s158, 1
    %s160 = scalar_select %p157, %s158, %s159
    %p163 = pneg %p157
    %p164 = scmp.eq.s32.totalorder %s12, 1
    %p165 = por %p163, %p164
    %p166 = scmp.ne.s32.totalorder %s158, %s161
    %p167 = scmp.eq.s32.totalorder %s12, 0
    %p168 = por %p166, %p167
    %p169 = scmp.ne.s32.totalorder %s158, %s161
    %p170 = scmp.eq.s32.totalorder %s17, 1
    %p171 = por %p169, %p170
    %p172 = scmp.ne.s32.totalorder %s161, %s162
    %p173 = scmp.eq.s32.totalorder %s17, 0
    %p174 = por %p172, %p173
    %p175 = scmp.ne.s32.totalorder %s161, %s162
    %p176 = scmp.eq.s32.totalorder %s18, 1
    %p177 = por %p175, %p176
    %p179 = scmp.ne.s32.totalorder %s162, %s178
    %p180 = scmp.eq.s32.totalorder %s18, 0
    %p181 = por %p179, %p180
    %p182 = scmp.le.s32.totalorder 1, %s12
    %p183 = scmp.lt.s32.totalorder %s12, 3
    %p184 = pnand %p182, %p183
    %p185 = pneg %p184
    // Predicated region
    $region9: #{solo_gan_forward.7} parent=5 // pred_check
      _
    $region10: #{solo_gan_forward.7} parent=5 // pred_check_branch
      %187 = sbr.rel (%p184) target = $region12
    $region11: #{solo_gan_forward.7} parent=5 // pred_region
      %s188 = ssub.s32 %s12, 1
      // Predicated region
      $region13: #{solo_gan_forward.7} parent=11 // pred_check
        %p189 = pneg %p85
      $region14: #{solo_gan_forward.7} parent=11 // pred_check_branch
        %191 = sbr.rel (%p189) target = $region16
      $region15: #{solo_gan_forward.7} parent=11 // pred_region
        _
      $region16: #{solo_gan_forward.7} parent=11 // pred_fallthru
        _
      // Predicated region
      $region17: #{solo_gan_forward.7} parent=11 // pred_check
        %p192 = pneg %p106
      $region18: #{solo_gan_forward.7} parent=11 // pred_check_branch
        %194 = sbr.rel (%p192) target = $region20
      $region19: #{solo_gan_forward.7} parent=11 // pred_region
        _
      $region20: #{solo_gan_forward.7} parent=11 // pred_fallthru
        _
      // Predicated region
      $region21: #{solo_gan_forward.7} parent=11 // pred_check
        %p195 = pneg %p127
      $region22: #{solo_gan_forward.7} parent=11 // pred_check_branch
        %197 = sbr.rel (%p195) target = $region24
      $region23: #{solo_gan_forward.7} parent=11 // pred_region
        _
      $region24: #{solo_gan_forward.7} parent=11 // pred_fallthru
        _
      // Predicated region
      $region25: #{solo_gan_forward.7} parent=11 // pred_check
        %p198 = pneg %p148
      $region26: #{solo_gan_forward.7} parent=11 // pred_check_branch
        %200 = sbr.rel (%p198) target = $region28
      $region27: #{solo_gan_forward.7} parent=11 // pred_region
        _
      $region28: #{solo_gan_forward.7} parent=11 // pred_fallthru
        _
    $region12: #{solo_gan_forward.7} parent=5 // pred_fallthru
      _
    %p201 = scmp.lt.s32.totalorder %s12, 2
    // Predicated region
    $region29: #{solo_gan_forward.7} parent=5 // pred_check
      %p202 = pneg %p201
    $region30: #{solo_gan_forward.7} parent=5 // pred_check_branch
      %204 = sbr.rel (%p202) target = $region32
    $region31: #{solo_gan_forward.7} parent=5 // pred_region
      // Predicated region
      $region33: #{solo_gan_forward.7} parent=31 // pred_check
        %p205 = pneg %p32
      $region34: #{solo_gan_forward.7} parent=31 // pred_check_branch
        %207 = sbr.rel (%p205) target = $region36
      $region35: #{solo_gan_forward.7} parent=31 // pred_region
        %p208 = scmp.lt.s32.totalorder %s12, 1
        %s209 = scalar_select %p208, %s12, 1
        %s210 = smul.addr %s209, 3
        %s211 = smul.addr %s210, 8
        %s212 = scalar_lea.vmem %s0, %s211
      $region36: #{solo_gan_forward.7} parent=31 // pred_fallthru
        _
      // Predicated region
      $region37: #{solo_gan_forward.7} parent=31 // pred_check
        %p213 = pneg %p58
      $region38: #{solo_gan_forward.7} parent=31 // pred_check_branch
        %215 = sbr.rel (%p213) target = $region40
      $region39: #{solo_gan_forward.7} parent=31 // pred_region
        %p216 = scmp.lt.s32.totalorder %s12, 1
        %s217 = scalar_select %p216, %s12, 1
        %s218 = smul.addr %s217, 2
        %s219 = smul.addr %s218, 8
        %s220 = scalar_lea.vmem %s1, %s219
      $region40: #{solo_gan_forward.7} parent=31 // pred_fallthru
        _
    $region32: #{solo_gan_forward.7} parent=5 // pred_fallthru
      _
    %p221 = scmp.le.s32.totalorder 1, %s12
    %p222 = scmp.lt.s32.totalorder %s12, 3
    %p223 = pnand %p221, %p222
    %p224 = pneg %p223
    // Predicated region
    $region41: #{solo_gan_forward.7} parent=5 // pred_check
      _
    $region42: #{solo_gan_forward.7} parent=5 // pred_check_branch
      %226 = sbr.rel (%p223) target = $region44
    $region43: #{solo_gan_forward.7} parent=5 // pred_region
      %s227 = ssub.s32 %s12, 1
      %p228 = scmp.lt.s32.totalorder %s17, 1
      %s229 = scalar_select %p228, %s17, 1
      %s230 = smul.addr %s229, 3
      %s231 = smul.addr %s230, 8
      %s232 = scalar_lea.vmem %s0, %s231
      %p233 = pneg %p38
      %p234 = pneg %p35
      %p235 = scmp.lt.s32.totalorder %s17, 1
      %s236 = scalar_select %p235, %s17, 1
      %s237 = smul.addr %s236, 2
      %s238 = smul.addr %s237, 8
      %s239 = scalar_lea.vmem %s1, %s238
      %p240 = pneg %p64
      %p241 = pneg %p61
      %p242 = pneg %p85
      %p243 = pneg %p82
      %p244 = pneg %p106
      %p245 = pneg %p103
      %p246 = pneg %p127
      %p247 = pneg %p124
      %p248 = pneg %p148
      %p249 = pneg %p145
      %p250 = pneg %p174
      %p251 = pneg %p171
      %p252 = scmp.lt.s32.totalorder %s17, 1
      %s253 = scalar_select %p252, %s17, 1
      %s254 = smul.addr %s253, 3
      %s255 = smul.addr %s254, 4
      %s256 = scalar_lea.vmem %s6, %s255
      %p257 = scmp.lt.s32.totalorder %s17, 1
      %s258 = scalar_select %p257, %s17, 1
      %s259 = smul.addr %s258, 3
      %s260 = smul.addr %s259, 8
      %s261 = scalar_lea.vmem %s0, %s260
      %p262 = scmp.lt.s32.totalorder %s17, 1
      %s263 = scalar_select %p262, %s17, 1
      %s264 = smul.addr %s263, 2
      %s265 = smul.addr %s264, 8
      %s266 = scalar_lea.vmem %s1, %s265
      %p267 = scmp.lt.s32.totalorder %s17, 1
      %s268 = scalar_select %p267, %s17, 1
      %s269 = smul.addr %s268, 3
      %s270 = smul.addr %s269, 4
      %s271 = scalar_lea.vmem %s6, %s270
      %v273 = vld [vmem:[%s266] sm:$0xff]
      %v274 = vld [vmem:[%s266 + $0x8] sm:$0xff]
      %v275 = vld [vmem:[%s2] sm:$0x7]
      %277 = vset.pattern.permute.xlu0 0
      %278 = vperm.xlu0 %277, %v273
      %v279 = vpop.permute.xlu0 %278
      %282 = vset.pattern.permute.xlu0 0
      %283 = vperm.xlu0 %282, %v274
      %v284 = vpop.permute.xlu0 %283
      %v287 = vlaneseq
      %v288 = vshrl.u32 %v287, 7
      %v289 = vsub.s32 0, %v288
      %v290 = vrot.slane %v275, %v289
      %v291 = vlaneseq
      %v292 = vshrl.u32 %v291, 7
      %v293 = vsub.s32 1, %v292
      %v294 = vrot.slane %v275, %v293
      %v295 = vlaneseq
      %v296 = vshrl.u32 %v295, 7
      %v297 = vsub.s32 2, %v296
      %v298 = vrot.slane %v275, %v297
      %v302 = vmul.f32 %v279, %v290
      %v303 = vmul.f32 %v279, %v294
      %v304 = vmul.f32 %v279, %v298
      %v305 = vmul.f32 %v284, %v290
      %v306 = vmul.f32 %v284, %v294
      %v307 = vmul.f32 %v284, %v298
      %v308 = vld [vmem:[%s261] sm:$0xff]
      %v309 = vld [vmem:[%s261 + $0x8] sm:$0xff]
      %v310 = vld [vmem:[%s261 + $0x10] sm:$0xff]
      %320 = vrot.lane.b32.xlu0 %v308, 127
      %v321 = vpop.permute.xlu0 %320
      %322 = vrot.lane.b32.xlu0 %v309, 127
      %v323 = vpop.permute.xlu0 %322
      %324 = vrot.lane.b32.xlu0 %v310, 127
      %v325 = vpop.permute.xlu0 %324
      %326 = vrot.lane.b32.xlu0 %v302, 127
      %v327 = vpop.permute.xlu0 %326
      %328 = vrot.lane.b32.xlu0 %v303, 127
      %v329 = vpop.permute.xlu0 %328
      %330 = vrot.lane.b32.xlu0 %v304, 127
      %v331 = vpop.permute.xlu0 %330
      %332 = vrot.lane.b32.xlu0 %v305, 127
      %v333 = vpop.permute.xlu0 %332
      %334 = vrot.lane.b32.xlu0 %v306, 127
      %v335 = vpop.permute.xlu0 %334
      %336 = vrot.lane.b32.xlu0 %v307, 127
      %v337 = vpop.permute.xlu0 %336
      %vm338 = vcmask 1039360
      %v339 = vsel %vm338, %v321, %v323
      %v340 = vsel %vm338, %v323, %v325
      %v341 = vsel %vm338, %v327, %v329
      %v342 = vsel %vm338, %v329, %v331
      %v343 = vsel %vm338, %v333, %v335
      %v344 = vsel %vm338, %v335, %v337
      %354 = vrot.lane.b32.xlu0 %v308, 126
      %v355 = vpop.permute.xlu0 %354
      %356 = vrot.lane.b32.xlu0 %v309, 126
      %v357 = vpop.permute.xlu0 %356
      %358 = vrot.lane.b32.xlu0 %v310, 126
      %v359 = vpop.permute.xlu0 %358
      %360 = vrot.lane.b32.xlu0 %v302, 126
      %v361 = vpop.permute.xlu0 %360
      %362 = vrot.lane.b32.xlu0 %v303, 126
      %v363 = vpop.permute.xlu0 %362
      %364 = vrot.lane.b32.xlu0 %v304, 126
      %v365 = vpop.permute.xlu0 %364
      %366 = vrot.lane.b32.xlu0 %v305, 126
      %v367 = vpop.permute.xlu0 %366
      %368 = vrot.lane.b32.xlu0 %v306, 126
      %v369 = vpop.permute.xlu0 %368
      %370 = vrot.lane.b32.xlu0 %v307, 126
      %v371 = vpop.permute.xlu0 %370
      %vm372 = vcmask 1031168
      %v373 = vsel %vm372, %v355, %v357
      %v374 = vsel %vm372, %v357, %v359
      %v375 = vsel %vm372, %v361, %v363
      %v376 = vsel %vm372, %v363, %v365
      %v377 = vsel %vm372, %v367, %v369
      %v378 = vsel %vm372, %v369, %v371
      %388 = vrot.lane.b32.xlu0 %v308, 110
      %v389 = vpop.permute.xlu0 %388
      %390 = vrot.lane.b32.xlu0 %v309, 110
      %v391 = vpop.permute.xlu0 %390
      %392 = vrot.lane.b32.xlu0 %v310, 110
      %v393 = vpop.permute.xlu0 %392
      %394 = vrot.lane.b32.xlu0 %v302, 110
      %v395 = vpop.permute.xlu0 %394
      %396 = vrot.lane.b32.xlu0 %v303, 110
      %v397 = vpop.permute.xlu0 %396
      %398 = vrot.lane.b32.xlu0 %v304, 110
      %v399 = vpop.permute.xlu0 %398
      %400 = vrot.lane.b32.xlu0 %v305, 110
      %v401 = vpop.permute.xlu0 %400
      %402 = vrot.lane.b32.xlu0 %v306, 110
      %v403 = vpop.permute.xlu0 %402
      %404 = vrot.lane.b32.xlu0 %v307, 110
      %v405 = vpop.permute.xlu0 %404
      %vm406 = vcmask 900096
      %v407 = vsel %vm406, %v389, %v391
      %v408 = vsel %vm406, %v391, %v393
      %v409 = vsel %vm406, %v395, %v397
      %v410 = vsel %vm406, %v397, %v399
      %v411 = vsel %vm406, %v401, %v403
      %v412 = vsel %vm406, %v403, %v405
      %422 = vrot.lane.b32.xlu0 %v308, 109
      %v423 = vpop.permute.xlu0 %422
      %424 = vrot.lane.b32.xlu0 %v309, 109
      %v425 = vpop.permute.xlu0 %424
      %426 = vrot.lane.b32.xlu0 %v310, 109
      %v427 = vpop.permute.xlu0 %426
      %428 = vrot.lane.b32.xlu0 %v302, 109
      %v429 = vpop.permute.xlu0 %428
      %430 = vrot.lane.b32.xlu0 %v303, 109
      %v431 = vpop.permute.xlu0 %430
      %432 = vrot.lane.b32.xlu0 %v304, 109
      %v433 = vpop.permute.xlu0 %432
      %434 = vrot.lane.b32.xlu0 %v305, 109
      %v435 = vpop.permute.xlu0 %434
      %436 = vrot.lane.b32.xlu0 %v306, 109
      %v437 = vpop.permute.xlu0 %436
      %438 = vrot.lane.b32.xlu0 %v307, 109
      %v439 = vpop.permute.xlu0 %438
      %vm440 = vcmask 891904
      %v441 = vsel %vm440, %v423, %v425
      %v442 = vsel %vm440, %v425, %v427
      %v443 = vsel %vm440, %v429, %v431
      %v444 = vsel %vm440, %v431, %v433
      %v445 = vsel %vm440, %v435, %v437
      %v446 = vsel %vm440, %v437, %v439
      %456 = vrot.lane.b32.xlu0 %v308, 108
      %v457 = vpop.permute.xlu0 %456
      %458 = vrot.lane.b32.xlu0 %v309, 108
      %v459 = vpop.permute.xlu0 %458
      %460 = vrot.lane.b32.xlu0 %v310, 108
      %v461 = vpop.permute.xlu0 %460
      %462 = vrot.lane.b32.xlu0 %v302, 108
      %v463 = vpop.permute.xlu0 %462
      %464 = vrot.lane.b32.xlu0 %v303, 108
      %v465 = vpop.permute.xlu0 %464
      %466 = vrot.lane.b32.xlu0 %v304, 108
      %v467 = vpop.permute.xlu0 %466
      %468 = vrot.lane.b32.xlu0 %v305, 108
      %v469 = vpop.permute.xlu0 %468
      %470 = vrot.lane.b32.xlu0 %v306, 108
      %v471 = vpop.permute.xlu0 %470
      %472 = vrot.lane.b32.xlu0 %v307, 108
      %v473 = vpop.permute.xlu0 %472
      %vm474 = vcmask 883712
      %v475 = vsel %vm474, %v457, %v459
      %v476 = vsel %vm474, %v459, %v461
      %v477 = vsel %vm474, %v463, %v465
      %v478 = vsel %vm474, %v465, %v467
      %v479 = vsel %vm474, %v469, %v471
      %v480 = vsel %vm474, %v471, %v473
      %490 = vrot.lane.b32.xlu0 %v308, 92
      %v491 = vpop.permute.xlu0 %490
      %492 = vrot.lane.b32.xlu0 %v309, 92
      %v493 = vpop.permute.xlu0 %492
      %494 = vrot.lane.b32.xlu0 %v310, 92
      %v495 = vpop.permute.xlu0 %494
      %496 = vrot.lane.b32.xlu0 %v302, 92
      %v497 = vpop.permute.xlu0 %496
      %498 = vrot.lane.b32.xlu0 %v303, 92
      %v499 = vpop.permute.xlu0 %498
      %500 = vrot.lane.b32.xlu0 %v304, 92
      %v501 = vpop.permute.xlu0 %500
      %502 = vrot.lane.b32.xlu0 %v305, 92
      %v503 = vpop.permute.xlu0 %502
      %504 = vrot.lane.b32.xlu0 %v306, 92
      %v505 = vpop.permute.xlu0 %504
      %506 = vrot.lane.b32.xlu0 %v307, 92
      %v507 = vpop.permute.xlu0 %506
      %vm508 = vcmask 752640
      %v509 = vsel %vm508, %v491, %v493
      %v510 = vsel %vm508, %v493, %v495
      %v511 = vsel %vm508, %v497, %v499
      %v512 = vsel %vm508, %v499, %v501
      %v513 = vsel %vm508, %v503, %v505
      %v514 = vsel %vm508, %v505, %v507
      %524 = vrot.lane.b32.xlu0 %v308, 91
      %v525 = vpop.permute.xlu0 %524
      %526 = vrot.lane.b32.xlu0 %v309, 91
      %v527 = vpop.permute.xlu0 %526
      %528 = vrot.lane.b32.xlu0 %v310, 91
      %v529 = vpop.permute.xlu0 %528
      %530 = vrot.lane.b32.xlu0 %v302, 91
      %v531 = vpop.permute.xlu0 %530
      %532 = vrot.lane.b32.xlu0 %v303, 91
      %v533 = vpop.permute.xlu0 %532
      %534 = vrot.lane.b32.xlu0 %v304, 91
      %v535 = vpop.permute.xlu0 %534
      %536 = vrot.lane.b32.xlu0 %v305, 91
      %v537 = vpop.permute.xlu0 %536
      %538 = vrot.lane.b32.xlu0 %v306, 91
      %v539 = vpop.permute.xlu0 %538
      %540 = vrot.lane.b32.xlu0 %v307, 91
      %v541 = vpop.permute.xlu0 %540
      %vm542 = vcmask 744448
      %v543 = vsel %vm542, %v525, %v527
      %v544 = vsel %vm542, %v527, %v529
      %v545 = vsel %vm542, %v531, %v533
      %v546 = vsel %vm542, %v533, %v535
      %v547 = vsel %vm542, %v537, %v539
      %v548 = vsel %vm542, %v539, %v541
      %558 = vrot.lane.b32.xlu0 %v308, 90
      %v559 = vpop.permute.xlu0 %558
      %560 = vrot.lane.b32.xlu0 %v309, 90
      %v561 = vpop.permute.xlu0 %560
      %562 = vrot.lane.b32.xlu0 %v310, 90
      %v563 = vpop.permute.xlu0 %562
      %564 = vrot.lane.b32.xlu0 %v302, 90
      %v565 = vpop.permute.xlu0 %564
      %566 = vrot.lane.b32.xlu0 %v303, 90
      %v567 = vpop.permute.xlu0 %566
      %568 = vrot.lane.b32.xlu0 %v304, 90
      %v569 = vpop.permute.xlu0 %568
      %570 = vrot.lane.b32.xlu0 %v305, 90
      %v571 = vpop.permute.xlu0 %570
      %572 = vrot.lane.b32.xlu0 %v306, 90
      %v573 = vpop.permute.xlu0 %572
      %574 = vrot.lane.b32.xlu0 %v307, 90
      %v575 = vpop.permute.xlu0 %574
      %vm576 = vcmask 736256
      %v577 = vsel %vm576, %v559, %v561
      %v578 = vsel %vm576, %v561, %v563
      %v579 = vsel %vm576, %v565, %v567
      %v580 = vsel %vm576, %v567, %v569
      %v581 = vsel %vm576, %v571, %v573
      %v582 = vsel %vm576, %v573, %v575
      %v592 = vld [vmem:[%s4] sm:$0xf]
      %v593 = vpack.c.bf16 %v302, %v308
      %v594 = vpack.c.bf16 %v303, %v309
      %v595 = vpack.c.bf16 %v304, %v310
      %v596 = vpack.c.bf16 %v339, %v305
      %v597 = vpack.c.bf16 %v340, %v306
      %v598 = vpack.c.bf16 %v325, %v307
      %v599 = vpack.c.bf16 %v343, %v341
      %v600 = vpack.c.bf16 %v344, %v342
      %v601 = vpack.c.bf16 %v337, %v331
      %v602 = vpack.c.bf16 %v375, %v373
      %v603 = vpack.c.bf16 %v376, %v374
      %v604 = vpack.c.bf16 %v365, %v359
      %v605 = vpack.c.bf16 %v407, %v377
      %v606 = vpack.c.bf16 %v408, %v378
      %v607 = vpack.c.bf16 %v393, %v371
      %v608 = vpack.c.bf16 %v411, %v409
      %v609 = vpack.c.bf16 %v412, %v410
      %v610 = vpack.c.bf16 %v405, %v399
      %v611 = vpack.c.bf16 %v443, %v441
      %v612 = vpack.c.bf16 %v444, %v442
      %v613 = vpack.c.bf16 %v433, %v427
      %v614 = vpack.c.bf16 %v475, %v445
      %v615 = vpack.c.bf16 %v476, %v446
      %v616 = vpack.c.bf16 %v461, %v439
      %v617 = vpack.c.bf16 %v479, %v477
      %v618 = vpack.c.bf16 %v480, %v478
      %v619 = vpack.c.bf16 %v473, %v467
      %v620 = vpack.c.bf16 %v511, %v509
      %v621 = vpack.c.bf16 %v512, %v510
      %v622 = vpack.c.bf16 %v501, %v495
      %v623 = vpack.c.bf16 %v543, %v513
      %v624 = vpack.c.bf16 %v544, %v514
      %v625 = vpack.c.bf16 %v529, %v507
      %v626 = vpack.c.bf16 %v547, %v545
      %v627 = vpack.c.bf16 %v548, %v546
      %v628 = vpack.c.bf16 %v541, %v535
      %v629 = vpack.c.bf16 %v579, %v577
      %v630 = vpack.c.bf16 %v580, %v578
      %v631 = vpack.c.bf16 %v569, %v563
      %v632 = vpack.c.bf16 %v581, %v581
      %v633 = vpack.c.bf16 %v582, %v582
      %v634 = vpack.c.bf16 %v575, %v575
      %v635 = vld [vmem:[%s5] sm:$0x7]
      %637 = vset.pattern.permute.xlu0 0
      %638 = vperm.xlu0 %637, %v635
      %v639 = vpop.permute.xlu0 %638
      %v643 = vunpack.c.l.s4 1983009808
      %v644 = vunpack.c.0.s8 %v643
      %v645 = vlaneseq
      %v646 = vshrl.u32 %v645, 7
      %v647 = vsub.s32 %v644, %v646
      %v648 = vrot.slane %v592, %v647
      %v649 = vcombine.high %v648, %v648
      %vm651 = vcmask 719872
      %v653 = vsel %vm651, %v649, 0
      %vm655 = vcmask 1043456
      %v657 = vsel %vm655, %v632, 0
      %v660 = vsel %vm655, %v633, 0
      %v663 = vsel %vm655, %v634, 0
      %665 = vmatprep.subr.bf16.mxu0 %v594
      %666 = vmatpush1.bf16.msra.mxu0 %v593
      %667 = vmatprep.subr.bf16.mxu0 %v597
      %668 = vmatpush1.bf16.msra.mxu0 %v596
      %669 = vmatprep.subr.bf16.mxu0 %v600
      %670 = vmatpush1.bf16.msra.mxu0 %v599
      %671 = vmatprep.subr.bf16.mxu0 %v603
      %672 = vmatpush1.bf16.msra.mxu0 %v602
      %673 = vmatprep.subr.bf16.mxu0 %v606
      %674 = vmatpush1.bf16.msra.mxu0 %v605
      %675 = vmatprep.subr.bf16.mxu0 %v609
      %676 = vmatpush1.bf16.msra.mxu0 %v608
      %677 = vmatprep.subr.bf16.mxu0 %v612
      %678 = vmatpush1.bf16.msra.mxu0 %v611
      %679 = vmatprep.subr.bf16.mxu0 %v615
      %680 = vmatpush1.bf16.msra.mxu0 %v614
      %681 = vmatprep.subr.bf16.mxu0 %v618
      %682 = vmatpush1.bf16.msra.mxu0 %v617
      %683 = vmatprep.subr.bf16.mxu0 %v621
      %684 = vmatpush1.bf16.msra.mxu0 %v620
      %685 = vmatprep.subr.bf16.mxu0 %v624
      %686 = vmatpush1.bf16.msra.mxu0 %v623
      %687 = vmatprep.subr.bf16.mxu0 %v627
      %688 = vmatpush1.bf16.msra.mxu0 %v626
      %689 = vmatprep.subr.bf16.mxu0 %v630
      %690 = vmatpush1.bf16.msra.mxu0 %v629
      %691 = vmatprep.subr.bf16.mxu0 %v660
      %692 = vmatpush1.bf16.msra.mxu0 %v657
      %693 = vmatprep.subr.bf16.mxu0 0
      %694 = vmatpush1.bf16.msra.mxu0 0
      %695 = vmatprep.subr.bf16.mxu0 0
      %696 = vmatpush1.bf16.msra.mxu0 0
      %697 = vmatprep.mubr.bf16.mxu0 %v653
      %698 = vmatmul.mubr.bf16.gmra.mrb[0].mxu0 %v648
      %v699 = vpop.f32.mrb[0].mxu0
      %v700 = vadd.f32 %v639, %v699
      %v701 = vpop.f32.mrb[0].mxu0
      %v702 = vadd.f32 %v639, %v701
      %v703 = vpop.f32.mrb[0].mxu0
      %v704 = vpop.f32.mrb[0].mxu0
      %705 = vdwg.mxu0
      %706 = vmatprep.subr.bf16.mxu0 0
      %707 = vmatpush1.bf16.msra.mxu0 %v595
      %708 = vmatprep.subr.bf16.mxu0 0
      %709 = vmatpush1.bf16.msra.mxu0 %v598
      %710 = vmatprep.subr.bf16.mxu0 0
      %711 = vmatpush1.bf16.msra.mxu0 %v601
      %712 = vmatprep.subr.bf16.mxu0 0
      %713 = vmatpush1.bf16.msra.mxu0 %v604
      %714 = vmatprep.subr.bf16.mxu0 0
      %715 = vmatpush1.bf16.msra.mxu0 %v607
      %716 = vmatprep.subr.bf16.mxu0 0
      %717 = vmatpush1.bf16.msra.mxu0 %v610
      %718 = vmatprep.subr.bf16.mxu0 0
      %719 = vmatpush1.bf16.msra.mxu0 %v613
      %720 = vmatprep.subr.bf16.mxu0 0
      %721 = vmatpush1.bf16.msra.mxu0 %v616
      %722 = vmatprep.subr.bf16.mxu0 0
      %723 = vmatpush1.bf16.msra.mxu0 %v619
      %724 = vmatprep.subr.bf16.mxu0 0
      %725 = vmatpush1.bf16.msra.mxu0 %v622
      %726 = vmatprep.subr.bf16.mxu0 0
      %727 = vmatpush1.bf16.msra.mxu0 %v625
      %728 = vmatprep.subr.bf16.mxu0 0
      %729 = vmatpush1.bf16.msra.mxu0 %v628
      %730 = vmatprep.subr.bf16.mxu0 0
      %731 = vmatpush1.bf16.msra.mxu0 %v631
      %732 = vmatprep.subr.bf16.mxu0 0
      %733 = vmatpush1.bf16.msra.mxu0 %v663
      %734 = vmatprep.subr.bf16.mxu0 0
      %735 = vmatpush1.bf16.msra.mxu0 0
      %736 = vmatprep.subr.bf16.mxu0 0
      %737 = vmatpush1.bf16.msra.mxu0 0
      %738 = vmatprep.mubr.bf16.mxu0 %v653
      %739 = vmatmul.mubr.bf16.gmra.mrb[0].mxu0 %v648
      %v740 = vpop.f32.mrb[0].mxu0
      %v741 = vadd.f32 %v639, %v740
      %v742 = vpop.f32.mrb[0].mxu0
      %v743 = vpop.f32.mrb[0].mxu0
      %v744 = vpop.f32.mrb[0].mxu0
      %745 = vdwg.mxu0
      %v746 = vtanh.pop %v700
      %v747 = vtanh.pop %v702
      %v748 = vtanh.pop %v741
      %v749 = vld [vmem:[%s3] sm:$0x7]
      %v751 = vlaneseq
      %v752 = vshrl.u32 %v751, 7
      %v753 = vsub.s32 0, %v752
      %v754 = vrot.slane %v749, %v753
      %v755 = vlaneseq
      %v756 = vshrl.u32 %v755, 7
      %v757 = vsub.s32 1, %v756
      %v758 = vrot.slane %v749, %v757
      %v759 = vlaneseq
      %v760 = vshrl.u32 %v759, 7
      %v761 = vsub.s32 2, %v760
      %v762 = vrot.slane %v749, %v761
      %v766 = vmul.f32 %v746, %v754
      %v767 = vmul.f32 %v747, %v758
      %v768 = vmul.f32 %v748, %v762
      %v771 = vcombine.low %v766, %v767
      %773 = vst [vmem:[%s271] sm:$0x77] %v771
      %vm774 = vcmask 256000
      %775 = vst.msk [vmem:[%s271 + $0x8] sm:$0x7] %vm774, %v768
      %p776 = scmp.lt.s32.totalorder %s17, 1
      %s777 = scalar_select %p776, %s17, 1
      %s778 = smul.addr %s777, 3
      %s779 = smul.addr %s778, 4
      %s780 = scalar_lea.vmem %s6, %s779
      // Predicated region
      $region45: #{solo_gan_forward.7} parent=43 // pred_check
        %p781 = pneg %p171
      $region46: #{solo_gan_forward.7} parent=43 // pred_check_branch
        %783 = sbr.rel (%p781) target = $region48
      $region47: #{solo_gan_forward.7} parent=43 // pred_region
        _
      $region48: #{solo_gan_forward.7} parent=43 // pred_fallthru
        _
    $region44: #{solo_gan_forward.7} parent=5 // pred_fallthru
      _
    %p784 = scmp.le.s32.totalorder 2, %s12
    // Predicated region
    $region49: #{solo_gan_forward.7} parent=5 // pred_check
      %p785 = pneg %p784
    $region50: #{solo_gan_forward.7} parent=5 // pred_check_branch
      %787 = sbr.rel (%p785) target = $region52
    $region51: #{solo_gan_forward.7} parent=5 // pred_region
      %s788 = ssub.s32 %s12, 2
      // Predicated region
      $region53: #{solo_gan_forward.7} parent=51 // pred_check
        %p789 = pneg %p177
      $region54: #{solo_gan_forward.7} parent=51 // pred_check_branch
        %791 = sbr.rel (%p789) target = $region56
      $region55: #{solo_gan_forward.7} parent=51 // pred_region
        %p792 = scmp.lt.s32.totalorder %s18, 1
        %s793 = scalar_select %p792, %s18, 1
        %s794 = smul.addr %s793, 3
        %s795 = smul.addr %s794, 4
        %s796 = scalar_lea.vmem %s6, %s795
      $region56: #{solo_gan_forward.7} parent=51 // pred_fallthru
        _
    $region52: #{solo_gan_forward.7} parent=5 // pred_fallthru
      _
  $region6: #{solo_gan_forward.7} parent=0 // loop_footer
    %s16 = sadd.s32 1, %s12
  $region7: #{solo_gan_forward.7} parent=0 // loop_footer_branch
    %11 = sbr.rel target = $region3
  $region8: #{solo_gan_forward.7} parent=0 // loop_exit
    _

</llo_original>
